<compile_context>
chip_gen: v7x
topology: tpu7x:2x2x1
jax: 0.10.0
libtpu: 0.0.40
codegen_flags: <defaults>
</compile_context>

<pallas_src>
import math

import jax
import jax.numpy as jnp
from jax import lax
from jax.experimental import pallas as pl
from jax.experimental.pallas import tpu as pltpu


def make_block_kernel(N, C, num_heads, tq, compute_dtype, fast_math):
    hd = C // num_heads
    scale = hd ** (-0.5)
    eps = 1e-5
    inv_sqrt2 = 1.0 / math.sqrt(2.0)
    cdt = compute_dtype

    def layernorm(x, g, b):
        mean = jnp.mean(x, axis=-1, keepdims=True)
        var = jnp.mean((x - mean) ** 2, axis=-1, keepdims=True)
        return (x - mean) * lax.rsqrt(var + eps) * g + b

    def gelu(h):
        if fast_math:
            c = 0.7978845608028654  # sqrt(2/pi); tanh form -> EUP slot
            return 0.5 * h * (1.0 + jnp.tanh(c * (h + 0.044715 * h * h * h)))
        return 0.5 * h * (1.0 + lax.erf(h * inv_sqrt2))  # exact, matches nn.GELU

    def kernel(x_ref, g1_ref, b1_ref, wq_ref, wkv_ref, wproj_ref, bproj_ref,
               g2_ref, b2_ref, w1_ref, bm1_ref, w2_ref, bm2_ref,
               o_ref, k_scr, v_scr, q_scr, ctx_scr):
        t = pl.program_id(1)

        # ---- once per batch element: K/V for the full sequence into scratch ----
        @pl.when(t == 0)
        def _():
            xf = x_ref[...].astype(jnp.float32)                           # (N, C)
            xnf = layernorm(xf, g1_ref[...], b1_ref[...]).astype(cdt)
            kv = jnp.dot(xnf, wkv_ref[...],
                         preferred_element_type=jnp.float32)              # (N, 2C)
            for h in range(num_heads):                                    # layout only
                k_scr[h] = kv[:, h * hd:(h + 1) * hd].astype(cdt)
                v_scr[h] = kv[:, C + h * hd:C + (h + 1) * hd].astype(cdt)

        # ---- queries for this row tile ----
        row0 = pl.multiple_of(t * tq, tq)
        xt = x_ref[pl.ds(row0, tq), :].astype(jnp.float32)                # (TQ, C)
        xn = layernorm(xt, g1_ref[...], b1_ref[...])
        # fold softmax scale into q instead of the (TQ, N) score matrix per head
        q2d = jnp.dot(xn.astype(cdt), wq_ref[...],
                      preferred_element_type=jnp.float32) * scale         # (TQ, C)
        for h in range(num_heads):                                        # layout only
            q_scr[h] = q2d[:, h * hd:(h + 1) * hd].astype(cdt)

        # ---- attention: all heads batched in a single matmul pair ----
        s = jnp.einsum('htd,hnd->htn', q_scr[...], k_scr[...],
                       preferred_element_type=jnp.float32)                # (nh, TQ, N)
        s = s - jnp.max(s, axis=-1, keepdims=True)
        p = jnp.exp(s)
        denom = jnp.sum(p, axis=-1, keepdims=True)
        if fast_math:
            p = p * pl.reciprocal(denom, approx=True)
        else:
            p = p / denom
        # torch masked_fill(isnan(attn), 0) omitted: rows are never all -inf here.
        ctx = jnp.einsum('htn,hnd->htd', p.astype(cdt), v_scr[...],
                         preferred_element_type=jnp.float32)              # (nh, TQ, hd)
        for h in range(num_heads):                                        # head merge
            ctx_scr[:, h * hd:(h + 1) * hd] = ctx[h].astype(cdt)

        y = jnp.dot(ctx_scr[...], wproj_ref[...],
                    preferred_element_type=jnp.float32) + bproj_ref[...]
        x1 = xt + y                                                       # residual 1

        # ---- norm2 + MLP ----
        xn2 = layernorm(x1, g2_ref[...], b2_ref[...])
        h1 = jnp.dot(xn2.astype(cdt), w1_ref[...],
                     preferred_element_type=jnp.float32) + bm1_ref[...]   # (TQ, H)
        h1 = gelu(h1)
        h2 = jnp.dot(h1.astype(cdt), w2_ref[...],
                     preferred_element_type=jnp.float32) + bm2_ref[...]   # (TQ, C)
        o_ref[...] = (x1 + h2).astype(o_ref.dtype)                        # residual 2

    return kernel


def transformer_block(x, params, num_heads, *, tq=None, fast_math=True):
    B, N, C = x.shape
    assert C % num_heads == 0
    hd = C // num_heads
    if tq is None:
        tq = min(N, 256)
    assert N % tq == 0 and tq % 8 == 0, "query tile must divide N and be sublane-aligned"
    # TODO(synk): pad/mask ragged sequence lengths instead of requiring N % tq == 0.

    cdt = jnp.bfloat16 if fast_math else jnp.float32
    f32 = lambda a: a.astype(jnp.float32)

    wq = params["wqkv"][:, :C].astype(cdt)        # (C, C)
    wkv = params["wqkv"][:, C:].astype(cdt)       # (C, 2C)
    weight_args = (
        f32(params["g1"]), f32(params["b1"]),
        wq, wkv,
        params["wproj"].astype(cdt), f32(params["bproj"]),
        f32(params["g2"]), f32(params["b2"]),
        params["w1"].astype(cdt), f32(params["bm1"]),
        params["w2"].astype(cdt), f32(params["bm2"]),
    )

    kernel = make_block_kernel(N, C, num_heads, tq, cdt, fast_math)

    def full_spec(a):
        return pl.BlockSpec(a.shape, lambda b, t: (0,) * a.ndim)

    in_specs = [pl.BlockSpec((None, N, C), lambda b, t: (b, 0, 0))] + \
               [full_spec(a) for a in weight_args]
    out_specs = pl.BlockSpec((None, tq, C), lambda b, t: (b, t, 0))

    scratch_shapes = [
        pltpu.VMEM((num_heads, N, hd), cdt),    # K (head-major, resident per batch)
        pltpu.VMEM((num_heads, N, hd), cdt),    # V
        pltpu.VMEM((num_heads, tq, hd), cdt),   # Q (current query tile)
        pltpu.VMEM((tq, C), cdt),               # merged attention context
    ]

    # Explicit VMEM budget (double-buffered inputs/outputs + persistent scratch).
    itemsize = jnp.dtype(cdt).itemsize
    weight_bytes = sum(a.size * a.dtype.itemsize for a in weight_args)
    block_bytes = (N * C + tq * C) * x.dtype.itemsize
    scratch_bytes = (2 * num_heads * N * hd + num_heads * tq * hd + tq * C) * itemsize
    needed = 2 * (weight_bytes + block_bytes) + scratch_bytes + (8 << 20)
    vmem_limit = int(min(max(needed, 32 << 20), 64 << 20))

    return pl.pallas_call(
        kernel,
        out_shape=jax.ShapeDtypeStruct((B, N, C), x.dtype),
        grid=(B, N // tq),
        in_specs=in_specs,
        out_specs=out_specs,
        scratch_shapes=scratch_shapes,
        compiler_params=pltpu.CompilerParams(
            dimension_semantics=("parallel", "arbitrary"),
            vmem_limit_bytes=vmem_limit),
    )(x, *weight_args)


def ref_block(x, params, num_heads):
    """Pure-JAX f32 reference mirroring the PyTorch forward (eval mode)."""
    B, N, C = x.shape
    hd = C // num_heads
    scale = hd ** (-0.5)

    def ln(t, g, b):
        m = t.mean(-1, keepdims=True)
        v = ((t - m) ** 2).mean(-1, keepdims=True)
        return (t - m) / jnp.sqrt(v + 1e-5) * g + b

    xn = ln(x, params["g1"], params["b1"])
    qkv = xn @ params["wqkv"]
    qkv = qkv.reshape(B, N, 3, num_heads, hd).transpose(2, 0, 3, 1, 4)
    q, k, v = qkv[0], qkv[1], qkv[2]
    attn = (q @ jnp.swapaxes(k, -2, -1)) * scale
    attn = jax.nn.softmax(attn, axis=-1)
    attn = jnp.where(jnp.isnan(attn), 0.0, attn)
    ao = (attn @ v).transpose(0, 2, 1, 3).reshape(B, N, C)
    ao = ao @ params["wproj"] + params["bproj"]
    x1 = x + ao

    xn2 = ln(x1, params["g2"], params["b2"])
    h1 = xn2 @ params["w1"] + params["bm1"]
    h1 = 0.5 * h1 * (1.0 + lax.erf(h1 / math.sqrt(2.0)))
    h2 = h1 @ params["w2"] + params["bm2"]
    return x1 + h2


def init_params(key, C, H):
    ks = jax.random.split(key, 8)
    return {
        "g1": jnp.ones((1, C), jnp.float32),
        "b1": jnp.zeros((1, C), jnp.float32),
        "wqkv": 0.05 * jax.random.normal(ks[0], (C, 3 * C), jnp.float32),
        "wproj": 0.05 * jax.random.normal(ks[1], (C, C), jnp.float32),
        "bproj": 0.05 * jax.random.normal(ks[2], (1, C), jnp.float32),
        "g2": jnp.ones((1, C), jnp.float32),
        "b2": jnp.zeros((1, C), jnp.float32),
        "w1": 0.05 * jax.random.normal(ks[3], (C, H), jnp.float32),
        "bm1": 0.05 * jax.random.normal(ks[4], (1, H), jnp.float32),
        "w2": 0.05 * jax.random.normal(ks[5], (H, C), jnp.float32),
        "bm2": 0.05 * jax.random.normal(ks[6], (1, C), jnp.float32),
    }


if __name__ == "__main__":
    B, N, C = 2, 16, 128        # batch, sequence, channels (dim) — lane-dense C
    num_heads = 8               # head_dim = 16
    mlp_ratio = 4.0
    H = int(C * mlp_ratio)      # 512
    TQ = 8                      # two query tiles per batch -> exercises K/V reuse

    key = jax.random.PRNGKey(0)
    kx, kp = jax.random.split(key)
    x = jax.random.normal(kx, (B, N, C), jnp.float32)
    params = init_params(kp, C, H)

    ref = ref_block(x, params, num_heads)

    # Exact path: f32 MXU operands + erf GELU, matches the PyTorch forward closely.
    out = transformer_block(x, params, num_heads, tq=TQ, fast_math=False)
    out = jax.block_until_ready(out)
    assert out.shape == (B, N, C)
    assert jnp.allclose(out, ref, atol=1e-4, rtol=1e-4), "f32 kernel mismatch vs reference"

    # Fast path: bf16 MXU operands, tanh GELU, approx reciprocal (loose tolerance).
    out_fast = transformer_block(x, params, num_heads, tq=TQ, fast_math=True)
    out_fast = jax.block_until_ready(out_fast)
    err = float(jnp.max(jnp.abs(out_fast - ref)))
    assert err < 1e-1, f"bf16 fast-math kernel drifted too far from reference: {err}"

    print("KERNEL_OK")
</pallas_src>

<mosaic_0001>
module attributes {stable_mosaic.version = 11 : i64} {
  func.func @kernel(%arg0: i32, %arg1: i32, %arg2: memref<1x16x128xf32, #tpu.memory_space<vmem>>, %arg3: memref<1x128xf32, #tpu.memory_space<vmem>>, %arg4: memref<1x128xf32, #tpu.memory_space<vmem>>, %arg5: memref<128x128xf32, #tpu.memory_space<vmem>>, %arg6: memref<128x256xf32, #tpu.memory_space<vmem>>, %arg7: memref<128x128xf32, #tpu.memory_space<vmem>>, %arg8: memref<1x128xf32, #tpu.memory_space<vmem>>, %arg9: memref<1x128xf32, #tpu.memory_space<vmem>>, %arg10: memref<1x128xf32, #tpu.memory_space<vmem>>, %arg11: memref<128x512xf32, #tpu.memory_space<vmem>>, %arg12: memref<1x512xf32, #tpu.memory_space<vmem>>, %arg13: memref<512x128xf32, #tpu.memory_space<vmem>>, %arg14: memref<1x128xf32, #tpu.memory_space<vmem>>, %arg15: memref<1x8x128xf32, #tpu.memory_space<vmem>>, %arg16: memref<8x16x16xf32, #tpu.memory_space<vmem>>, %arg17: memref<8x16x16xf32, #tpu.memory_space<vmem>>, %arg18: memref<8x8x16xf32, #tpu.memory_space<vmem>>, %arg19: memref<8x128xf32, #tpu.memory_space<vmem>>) attributes {dimension_semantics = [#tpu.dimension_semantics<parallel>, #tpu.dimension_semantics<arbitrary>], iteration_bounds = array<i64: 2, 2>, scalar_prefetch = 0 : i64, scratch_operands = 4 : i64, tpu.core_type = #tpu.core_type<tc>, window_params = [{transform_indices = @transform_0, window_bounds = array<i64: 1, 16, 128>}, {pipeline_mode = #tpu.pipeline_mode<synchronous>, transform_indices = @transform_1, window_bounds = array<i64: 1, 128>}, {pipeline_mode = #tpu.pipeline_mode<synchronous>, transform_indices = @transform_2, window_bounds = array<i64: 1, 128>}, {pipeline_mode = #tpu.pipeline_mode<synchronous>, transform_indices = @transform_3, window_bounds = array<i64: 128, 128>}, {pipeline_mode = #tpu.pipeline_mode<synchronous>, transform_indices = @transform_4, window_bounds = array<i64: 128, 256>}, {pipeline_mode = #tpu.pipeline_mode<synchronous>, transform_indices = @transform_5, window_bounds = array<i64: 128, 128>}, {pipeline_mode = #tpu.pipeline_mode<synchronous>, transform_indices = @transform_6, window_bounds = array<i64: 1, 128>}, {pipeline_mode = #tpu.pipeline_mode<synchronous>, transform_indices = @transform_7, window_bounds = array<i64: 1, 128>}, {pipeline_mode = #tpu.pipeline_mode<synchronous>, transform_indices = @transform_8, window_bounds = array<i64: 1, 128>}, {pipeline_mode = #tpu.pipeline_mode<synchronous>, transform_indices = @transform_9, window_bounds = array<i64: 128, 512>}, {pipeline_mode = #tpu.pipeline_mode<synchronous>, transform_indices = @transform_10, window_bounds = array<i64: 1, 512>}, {pipeline_mode = #tpu.pipeline_mode<synchronous>, transform_indices = @transform_11, window_bounds = array<i64: 512, 128>}, {pipeline_mode = #tpu.pipeline_mode<synchronous>, transform_indices = @transform_12, window_bounds = array<i64: 1, 128>}, {transform_indices = @transform_13, window_bounds = array<i64: 1, 8, 128>}]} {
    %c0_i32 = arith.constant 0 : i32
    %0 = arith.cmpi eq, %arg1, %c0_i32 : i32
    %1 = arith.extui %0 : i1 to i32
    %c0_i32_0 = arith.constant 0 : i32
    %2 = arith.cmpi ne, %1, %c0_i32_0 : i32
    scf.if %2 {
      %c0_85 = arith.constant 0 : index
      %c0_86 = arith.constant 0 : index
      %c0_87 = arith.constant 0 : index
      %159 = vector.load %arg2[%c0_85, %c0_86, %c0_87] : memref<1x16x128xf32, #tpu.memory_space<vmem>>, vector<1x16x128xf32>
      %160 = vector.shape_cast %159 : vector<1x16x128xf32> to vector<16x128xf32>
      %c0_88 = arith.constant 0 : index
      %c0_89 = arith.constant 0 : index
      %161 = vector.load %arg3[%c0_88, %c0_89] : memref<1x128xf32, #tpu.memory_space<vmem>>, vector<1x128xf32>
      %c0_90 = arith.constant 0 : index
      %c0_91 = arith.constant 0 : index
      %162 = vector.load %arg4[%c0_90, %c0_91] : memref<1x128xf32, #tpu.memory_space<vmem>>, vector<1x128xf32>
      %cst_92 = arith.constant dense<0.000000e+00> : vector<16xf32>
      %163 = vector.multi_reduction <add>, %160, %cst_92 [1] : vector<16x128xf32> to vector<16xf32>
      %164 = vector.shape_cast %163 : vector<16xf32> to vector<16x1xf32>
      %cst_93 = arith.constant 1.280000e+02 : f32
      %165 = vector.broadcast %cst_93 : f32 to vector<16x1xf32>
      %166 = arith.divf %164, %165 : vector<16x1xf32>
      %167 = vector.broadcast %166 : vector<16x1xf32> to vector<16x128xf32>
      %168 = arith.subf %160, %167 : vector<16x128xf32>
      %169 = arith.mulf %168, %168 : vector<16x128xf32>
      %cst_94 = arith.constant dense<0.000000e+00> : vector<16xf32>
      %170 = vector.multi_reduction <add>, %169, %cst_94 [1] : vector<16x128xf32> to vector<16xf32>
      %171 = vector.shape_cast %170 : vector<16xf32> to vector<16x1xf32>
      %cst_95 = arith.constant 1.280000e+02 : f32
      %172 = vector.broadcast %cst_95 : f32 to vector<16x1xf32>
      %173 = arith.divf %171, %172 : vector<16x1xf32>
      %174 = vector.broadcast %166 : vector<16x1xf32> to vector<16x128xf32>
      %175 = arith.subf %160, %174 : vector<16x128xf32>
      %cst_96 = arith.constant 9.99999974E-6 : f32
      %176 = vector.broadcast %cst_96 : f32 to vector<16x1xf32>
      %177 = arith.addf %173, %176 : vector<16x1xf32>
      %178 = math.rsqrt %177 : vector<16x1xf32>
      %179 = vector.broadcast %178 : vector<16x1xf32> to vector<16x128xf32>
      %180 = arith.mulf %175, %179 : vector<16x128xf32>
      %181 = vector.broadcast %161 : vector<1x128xf32> to vector<16x128xf32>
      %182 = arith.mulf %180, %181 : vector<16x128xf32>
      %183 = vector.broadcast %162 : vector<1x128xf32> to vector<16x128xf32>
      %184 = arith.addf %182, %183 : vector<16x128xf32>
      %c0_97 = arith.constant 0 : index
      %c0_98 = arith.constant 0 : index
      %185 = vector.load %arg6[%c0_97, %c0_98] : memref<128x256xf32, #tpu.memory_space<vmem>>, vector<128x256xf32>
      %cst_99 = arith.constant dense<0.000000e+00> : vector<16x256xf32>
      %186 = tpu.matmul %184, %185, %cst_99 {dimension_numbers = #tpu.dot_dimension_numbers<[1], [0], [0], [1], [0, 0, 1, 1], [], []>} : vector<16x128xf32>, vector<128x256xf32>, vector<16x256xf32> -> vector<16x256xf32>
      %187 = vector.extract_strided_slice %186 {offsets = [0, 0], sizes = [16, 16], strides = [1, 1]} : vector<16x256xf32> to vector<16x16xf32>
      %c0_100 = arith.constant 0 : index
      %c0_101 = arith.constant 0 : index
      %c0_102 = arith.constant 0 : index
      %188 = vector.load %arg16[%c0_100, %c0_101, %c0_102] : memref<8x16x16xf32, #tpu.memory_space<vmem>>, vector<1x16x16xf32>
      %189 = vector.shape_cast %188 : vector<1x16x16xf32> to vector<16x16xf32>
      %190 = vector.shape_cast %187 : vector<16x16xf32> to vector<1x16x16xf32>
      tpu.vector_store %arg16[%c0_100, %c0_101, %c0_102], %190 {strides = array<i32>} : memref<8x16x16xf32, #tpu.memory_space<vmem>>, vector<1x16x16xf32>,
      %191 = vector.extract_strided_slice %186 {offsets = [0, 128], sizes = [16, 16], strides = [1, 1]} : vector<16x256xf32> to vector<16x16xf32>
      %c0_103 = arith.constant 0 : index
      %c0_104 = arith.constant 0 : index
      %c0_105 = arith.constant 0 : index
      %192 = vector.load %arg17[%c0_103, %c0_104, %c0_105] : memref<8x16x16xf32, #tpu.memory_space<vmem>>, vector<1x16x16xf32>
      %193 = vector.shape_cast %192 : vector<1x16x16xf32> to vector<16x16xf32>
      %194 = vector.shape_cast %191 : vector<16x16xf32> to vector<1x16x16xf32>
      tpu.vector_store %arg17[%c0_103, %c0_104, %c0_105], %194 {strides = array<i32>} : memref<8x16x16xf32, #tpu.memory_space<vmem>>, vector<1x16x16xf32>,
      %195 = vector.extract_strided_slice %186 {offsets = [0, 16], sizes = [16, 16], strides = [1, 1]} : vector<16x256xf32> to vector<16x16xf32>
      %c1_106 = arith.constant 1 : index
      %c0_107 = arith.constant 0 : index
      %c0_108 = arith.constant 0 : index
      %196 = vector.load %arg16[%c1_106, %c0_107, %c0_108] : memref<8x16x16xf32, #tpu.memory_space<vmem>>, vector<1x16x16xf32>
      %197 = vector.shape_cast %196 : vector<1x16x16xf32> to vector<16x16xf32>
      %198 = vector.shape_cast %195 : vector<16x16xf32> to vector<1x16x16xf32>
      tpu.vector_store %arg16[%c1_106, %c0_107, %c0_108], %198 {strides = array<i32>} : memref<8x16x16xf32, #tpu.memory_space<vmem>>, vector<1x16x16xf32>,
      %199 = vector.extract_strided_slice %186 {offsets = [0, 144], sizes = [16, 16], strides = [1, 1]} : vector<16x256xf32> to vector<16x16xf32>
      %c1_109 = arith.constant 1 : index
      %c0_110 = arith.constant 0 : index
      %c0_111 = arith.constant 0 : index
      %200 = vector.load %arg17[%c1_109, %c0_110, %c0_111] : memref<8x16x16xf32, #tpu.memory_space<vmem>>, vector<1x16x16xf32>
      %201 = vector.shape_cast %200 : vector<1x16x16xf32> to vector<16x16xf32>
      %202 = vector.shape_cast %199 : vector<16x16xf32> to vector<1x16x16xf32>
      tpu.vector_store %arg17[%c1_109, %c0_110, %c0_111], %202 {strides = array<i32>} : memref<8x16x16xf32, #tpu.memory_space<vmem>>, vector<1x16x16xf32>,
      %203 = vector.extract_strided_slice %186 {offsets = [0, 32], sizes = [16, 16], strides = [1, 1]} : vector<16x256xf32> to vector<16x16xf32>
      %c2_112 = arith.constant 2 : index
      %c0_113 = arith.constant 0 : index
      %c0_114 = arith.constant 0 : index
      %204 = vector.load %arg16[%c2_112, %c0_113, %c0_114] : memref<8x16x16xf32, #tpu.memory_space<vmem>>, vector<1x16x16xf32>
      %205 = vector.shape_cast %204 : vector<1x16x16xf32> to vector<16x16xf32>
      %206 = vector.shape_cast %203 : vector<16x16xf32> to vector<1x16x16xf32>
      tpu.vector_store %arg16[%c2_112, %c0_113, %c0_114], %206 {strides = array<i32>} : memref<8x16x16xf32, #tpu.memory_space<vmem>>, vector<1x16x16xf32>,
      %207 = vector.extract_strided_slice %186 {offsets = [0, 160], sizes = [16, 16], strides = [1, 1]} : vector<16x256xf32> to vector<16x16xf32>
      %c2_115 = arith.constant 2 : index
      %c0_116 = arith.constant 0 : index
      %c0_117 = arith.constant 0 : index
      %208 = vector.load %arg17[%c2_115, %c0_116, %c0_117] : memref<8x16x16xf32, #tpu.memory_space<vmem>>, vector<1x16x16xf32>
      %209 = vector.shape_cast %208 : vector<1x16x16xf32> to vector<16x16xf32>
      %210 = vector.shape_cast %207 : vector<16x16xf32> to vector<1x16x16xf32>
      tpu.vector_store %arg17[%c2_115, %c0_116, %c0_117], %210 {strides = array<i32>} : memref<8x16x16xf32, #tpu.memory_space<vmem>>, vector<1x16x16xf32>,
      %211 = vector.extract_strided_slice %186 {offsets = [0, 48], sizes = [16, 16], strides = [1, 1]} : vector<16x256xf32> to vector<16x16xf32>
      %c3_118 = arith.constant 3 : index
      %c0_119 = arith.constant 0 : index
      %c0_120 = arith.constant 0 : index
      %212 = vector.load %arg16[%c3_118, %c0_119, %c0_120] : memref<8x16x16xf32, #tpu.memory_space<vmem>>, vector<1x16x16xf32>
      %213 = vector.shape_cast %212 : vector<1x16x16xf32> to vector<16x16xf32>
      %214 = vector.shape_cast %211 : vector<16x16xf32> to vector<1x16x16xf32>
      tpu.vector_store %arg16[%c3_118, %c0_119, %c0_120], %214 {strides = array<i32>} : memref<8x16x16xf32, #tpu.memory_space<vmem>>, vector<1x16x16xf32>,
      %215 = vector.extract_strided_slice %186 {offsets = [0, 176], sizes = [16, 16], strides = [1, 1]} : vector<16x256xf32> to vector<16x16xf32>
      %c3_121 = arith.constant 3 : index
      %c0_122 = arith.constant 0 : index
      %c0_123 = arith.constant 0 : index
      %216 = vector.load %arg17[%c3_121, %c0_122, %c0_123] : memref<8x16x16xf32, #tpu.memory_space<vmem>>, vector<1x16x16xf32>
      %217 = vector.shape_cast %216 : vector<1x16x16xf32> to vector<16x16xf32>
      %218 = vector.shape_cast %215 : vector<16x16xf32> to vector<1x16x16xf32>
      tpu.vector_store %arg17[%c3_121, %c0_122, %c0_123], %218 {strides = array<i32>} : memref<8x16x16xf32, #tpu.memory_space<vmem>>, vector<1x16x16xf32>,
      %219 = vector.extract_strided_slice %186 {offsets = [0, 64], sizes = [16, 16], strides = [1, 1]} : vector<16x256xf32> to vector<16x16xf32>
      %c4_124 = arith.constant 4 : index
      %c0_125 = arith.constant 0 : index
      %c0_126 = arith.constant 0 : index
      %220 = vector.load %arg16[%c4_124, %c0_125, %c0_126] : memref<8x16x16xf32, #tpu.memory_space<vmem>>, vector<1x16x16xf32>
      %221 = vector.shape_cast %220 : vector<1x16x16xf32> to vector<16x16xf32>
      %222 = vector.shape_cast %219 : vector<16x16xf32> to vector<1x16x16xf32>
      tpu.vector_store %arg16[%c4_124, %c0_125, %c0_126], %222 {strides = array<i32>} : memref<8x16x16xf32, #tpu.memory_space<vmem>>, vector<1x16x16xf32>,
      %223 = vector.extract_strided_slice %186 {offsets = [0, 192], sizes = [16, 16], strides = [1, 1]} : vector<16x256xf32> to vector<16x16xf32>
      %c4_127 = arith.constant 4 : index
      %c0_128 = arith.constant 0 : index
      %c0_129 = arith.constant 0 : index
      %224 = vector.load %arg17[%c4_127, %c0_128, %c0_129] : memref<8x16x16xf32, #tpu.memory_space<vmem>>, vector<1x16x16xf32>
      %225 = vector.shape_cast %224 : vector<1x16x16xf32> to vector<16x16xf32>
      %226 = vector.shape_cast %223 : vector<16x16xf32> to vector<1x16x16xf32>
      tpu.vector_store %arg17[%c4_127, %c0_128, %c0_129], %226 {strides = array<i32>} : memref<8x16x16xf32, #tpu.memory_space<vmem>>, vector<1x16x16xf32>,
      %227 = vector.extract_strided_slice %186 {offsets = [0, 80], sizes = [16, 16], strides = [1, 1]} : vector<16x256xf32> to vector<16x16xf32>
      %c5_130 = arith.constant 5 : index
      %c0_131 = arith.constant 0 : index
      %c0_132 = arith.constant 0 : index
      %228 = vector.load %arg16[%c5_130, %c0_131, %c0_132] : memref<8x16x16xf32, #tpu.memory_space<vmem>>, vector<1x16x16xf32>
      %229 = vector.shape_cast %228 : vector<1x16x16xf32> to vector<16x16xf32>
      %230 = vector.shape_cast %227 : vector<16x16xf32> to vector<1x16x16xf32>
      tpu.vector_store %arg16[%c5_130, %c0_131, %c0_132], %230 {strides = array<i32>} : memref<8x16x16xf32, #tpu.memory_space<vmem>>, vector<1x16x16xf32>,
      %231 = vector.extract_strided_slice %186 {offsets = [0, 208], sizes = [16, 16], strides = [1, 1]} : vector<16x256xf32> to vector<16x16xf32>
      %c5_133 = arith.constant 5 : index
      %c0_134 = arith.constant 0 : index
      %c0_135 = arith.constant 0 : index
      %232 = vector.load %arg17[%c5_133, %c0_134, %c0_135] : memref<8x16x16xf32, #tpu.memory_space<vmem>>, vector<1x16x16xf32>
      %233 = vector.shape_cast %232 : vector<1x16x16xf32> to vector<16x16xf32>
      %234 = vector.shape_cast %231 : vector<16x16xf32> to vector<1x16x16xf32>
      tpu.vector_store %arg17[%c5_133, %c0_134, %c0_135], %234 {strides = array<i32>} : memref<8x16x16xf32, #tpu.memory_space<vmem>>, vector<1x16x16xf32>,
      %235 = vector.extract_strided_slice %186 {offsets = [0, 96], sizes = [16, 16], strides = [1, 1]} : vector<16x256xf32> to vector<16x16xf32>
      %c6_136 = arith.constant 6 : index
      %c0_137 = arith.constant 0 : index
      %c0_138 = arith.constant 0 : index
      %236 = vector.load %arg16[%c6_136, %c0_137, %c0_138] : memref<8x16x16xf32, #tpu.memory_space<vmem>>, vector<1x16x16xf32>
      %237 = vector.shape_cast %236 : vector<1x16x16xf32> to vector<16x16xf32>
      %238 = vector.shape_cast %235 : vector<16x16xf32> to vector<1x16x16xf32>
      tpu.vector_store %arg16[%c6_136, %c0_137, %c0_138], %238 {strides = array<i32>} : memref<8x16x16xf32, #tpu.memory_space<vmem>>, vector<1x16x16xf32>,
      %239 = vector.extract_strided_slice %186 {offsets = [0, 224], sizes = [16, 16], strides = [1, 1]} : vector<16x256xf32> to vector<16x16xf32>
      %c6_139 = arith.constant 6 : index
      %c0_140 = arith.constant 0 : index
      %c0_141 = arith.constant 0 : index
      %240 = vector.load %arg17[%c6_139, %c0_140, %c0_141] : memref<8x16x16xf32, #tpu.memory_space<vmem>>, vector<1x16x16xf32>
      %241 = vector.shape_cast %240 : vector<1x16x16xf32> to vector<16x16xf32>
      %242 = vector.shape_cast %239 : vector<16x16xf32> to vector<1x16x16xf32>
      tpu.vector_store %arg17[%c6_139, %c0_140, %c0_141], %242 {strides = array<i32>} : memref<8x16x16xf32, #tpu.memory_space<vmem>>, vector<1x16x16xf32>,
      %243 = vector.extract_strided_slice %186 {offsets = [0, 112], sizes = [16, 16], strides = [1, 1]} : vector<16x256xf32> to vector<16x16xf32>
      %c7_142 = arith.constant 7 : index
      %c0_143 = arith.constant 0 : index
      %c0_144 = arith.constant 0 : index
      %244 = vector.load %arg16[%c7_142, %c0_143, %c0_144] : memref<8x16x16xf32, #tpu.memory_space<vmem>>, vector<1x16x16xf32>
      %245 = vector.shape_cast %244 : vector<1x16x16xf32> to vector<16x16xf32>
      %246 = vector.shape_cast %243 : vector<16x16xf32> to vector<1x16x16xf32>
      tpu.vector_store %arg16[%c7_142, %c0_143, %c0_144], %246 {strides = array<i32>} : memref<8x16x16xf32, #tpu.memory_space<vmem>>, vector<1x16x16xf32>,
      %247 = vector.extract_strided_slice %186 {offsets = [0, 240], sizes = [16, 16], strides = [1, 1]} : vector<16x256xf32> to vector<16x16xf32>
      %c7_145 = arith.constant 7 : index
      %c0_146 = arith.constant 0 : index
      %c0_147 = arith.constant 0 : index
      %248 = vector.load %arg17[%c7_145, %c0_146, %c0_147] : memref<8x16x16xf32, #tpu.memory_space<vmem>>, vector<1x16x16xf32>
      %249 = vector.shape_cast %248 : vector<1x16x16xf32> to vector<16x16xf32>
      %250 = vector.shape_cast %247 : vector<16x16xf32> to vector<1x16x16xf32>
      tpu.vector_store %arg17[%c7_145, %c0_146, %c0_147], %250 {strides = array<i32>} : memref<8x16x16xf32, #tpu.memory_space<vmem>>, vector<1x16x16xf32>,
    } else {
    }
    %c8_i32 = arith.constant 8 : i32
    %3 = arith.muli %arg1, %c8_i32 : i32
    %4 = tpu.assume_multiple %3, 8 : i32
    %c0 = arith.constant 0 : index
    %5 = arith.index_cast %4 : i32 to index
    %c0_1 = arith.constant 0 : index
    %6 = vector.load %arg2[%c0, %5, %c0_1] : memref<1x16x128xf32, #tpu.memory_space<vmem>>, vector<1x8x128xf32>
    %7 = vector.shape_cast %6 : vector<1x8x128xf32> to vector<8x128xf32>
    %c0_2 = arith.constant 0 : index
    %c0_3 = arith.constant 0 : index
    %8 = vector.load %arg3[%c0_2, %c0_3] : memref<1x128xf32, #tpu.memory_space<vmem>>, vector<1x128xf32>
    %c0_4 = arith.constant 0 : index
    %c0_5 = arith.constant 0 : index
    %9 = vector.load %arg4[%c0_4, %c0_5] : memref<1x128xf32, #tpu.memory_space<vmem>>, vector<1x128xf32>
    %cst = arith.constant dense<0.000000e+00> : vector<8xf32>
    %10 = vector.multi_reduction <add>, %7, %cst [1] : vector<8x128xf32> to vector<8xf32>
    %11 = vector.shape_cast %10 : vector<8xf32> to vector<8x1xf32>
    %cst_6 = arith.constant 1.280000e+02 : f32
    %12 = vector.broadcast %cst_6 : f32 to vector<8x1xf32>
    %13 = arith.divf %11, %12 : vector<8x1xf32>
    %14 = vector.broadcast %13 : vector<8x1xf32> to vector<8x128xf32>
    %15 = arith.subf %7, %14 : vector<8x128xf32>
    %16 = arith.mulf %15, %15 : vector<8x128xf32>
    %cst_7 = arith.constant dense<0.000000e+00> : vector<8xf32>
    %17 = vector.multi_reduction <add>, %16, %cst_7 [1] : vector<8x128xf32> to vector<8xf32>
    %18 = vector.shape_cast %17 : vector<8xf32> to vector<8x1xf32>
    %cst_8 = arith.constant 1.280000e+02 : f32
    %19 = vector.broadcast %cst_8 : f32 to vector<8x1xf32>
    %20 = arith.divf %18, %19 : vector<8x1xf32>
    %21 = vector.broadcast %13 : vector<8x1xf32> to vector<8x128xf32>
    %22 = arith.subf %7, %21 : vector<8x128xf32>
    %cst_9 = arith.constant 9.99999974E-6 : f32
    %23 = vector.broadcast %cst_9 : f32 to vector<8x1xf32>
    %24 = arith.addf %20, %23 : vector<8x1xf32>
    %25 = math.rsqrt %24 : vector<8x1xf32>
    %26 = vector.broadcast %25 : vector<8x1xf32> to vector<8x128xf32>
    %27 = arith.mulf %22, %26 : vector<8x128xf32>
    %28 = vector.broadcast %8 : vector<1x128xf32> to vector<8x128xf32>
    %29 = arith.mulf %27, %28 : vector<8x128xf32>
    %30 = vector.broadcast %9 : vector<1x128xf32> to vector<8x128xf32>
    %31 = arith.addf %29, %30 : vector<8x128xf32>
    %c0_10 = arith.constant 0 : index
    %c0_11 = arith.constant 0 : index
    %32 = vector.load %arg5[%c0_10, %c0_11] : memref<128x128xf32, #tpu.memory_space<vmem>>, vector<128x128xf32>
    %cst_12 = arith.constant dense<0.000000e+00> : vector<8x128xf32>
    %33 = tpu.matmul %31, %32, %cst_12 {dimension_numbers = #tpu.dot_dimension_numbers<[1], [0], [0], [1], [0, 0, 1, 1], [], []>} : vector<8x128xf32>, vector<128x128xf32>, vector<8x128xf32> -> vector<8x128xf32>
    %cst_13 = arith.constant 2.500000e-01 : f32
    %34 = vector.broadcast %cst_13 : f32 to vector<8x128xf32>
    %35 = arith.mulf %33, %34 : vector<8x128xf32>
    %36 = vector.extract_strided_slice %35 {offsets = [0, 0], sizes = [8, 16], strides = [1, 1]} : vector<8x128xf32> to vector<8x16xf32>
    %c0_14 = arith.constant 0 : index
    %c0_15 = arith.constant 0 : index
    %c0_16 = arith.constant 0 : index
    %37 = vector.load %arg18[%c0_14, %c0_15, %c0_16] : memref<8x8x16xf32, #tpu.memory_space<vmem>>, vector<1x8x16xf32>
    %38 = vector.shape_cast %37 : vector<1x8x16xf32> to vector<8x16xf32>
    %39 = vector.shape_cast %36 : vector<8x16xf32> to vector<1x8x16xf32>
    tpu.vector_store %arg18[%c0_14, %c0_15, %c0_16], %39 {strides = array<i32>} : memref<8x8x16xf32, #tpu.memory_space<vmem>>, vector<1x8x16xf32>,
    %40 = vector.extract_strided_slice %35 {offsets = [0, 16], sizes = [8, 16], strides = [1, 1]} : vector<8x128xf32> to vector<8x16xf32>
    %c1 = arith.constant 1 : index
    %c0_17 = arith.constant 0 : index
    %c0_18 = arith.constant 0 : index
    %41 = vector.load %arg18[%c1, %c0_17, %c0_18] : memref<8x8x16xf32, #tpu.memory_space<vmem>>, vector<1x8x16xf32>
    %42 = vector.shape_cast %41 : vector<1x8x16xf32> to vector<8x16xf32>
    %43 = vector.shape_cast %40 : vector<8x16xf32> to vector<1x8x16xf32>
    tpu.vector_store %arg18[%c1, %c0_17, %c0_18], %43 {strides = array<i32>} : memref<8x8x16xf32, #tpu.memory_space<vmem>>, vector<1x8x16xf32>,
    %44 = vector.extract_strided_slice %35 {offsets = [0, 32], sizes = [8, 16], strides = [1, 1]} : vector<8x128xf32> to vector<8x16xf32>
    %c2 = arith.constant 2 : index
    %c0_19 = arith.constant 0 : index
    %c0_20 = arith.constant 0 : index
    %45 = vector.load %arg18[%c2, %c0_19, %c0_20] : memref<8x8x16xf32, #tpu.memory_space<vmem>>, vector<1x8x16xf32>
    %46 = vector.shape_cast %45 : vector<1x8x16xf32> to vector<8x16xf32>
    %47 = vector.shape_cast %44 : vector<8x16xf32> to vector<1x8x16xf32>
    tpu.vector_store %arg18[%c2, %c0_19, %c0_20], %47 {strides = array<i32>} : memref<8x8x16xf32, #tpu.memory_space<vmem>>, vector<1x8x16xf32>,
    %48 = vector.extract_strided_slice %35 {offsets = [0, 48], sizes = [8, 16], strides = [1, 1]} : vector<8x128xf32> to vector<8x16xf32>
    %c3 = arith.constant 3 : index
    %c0_21 = arith.constant 0 : index
    %c0_22 = arith.constant 0 : index
    %49 = vector.load %arg18[%c3, %c0_21, %c0_22] : memref<8x8x16xf32, #tpu.memory_space<vmem>>, vector<1x8x16xf32>
    %50 = vector.shape_cast %49 : vector<1x8x16xf32> to vector<8x16xf32>
    %51 = vector.shape_cast %48 : vector<8x16xf32> to vector<1x8x16xf32>
    tpu.vector_store %arg18[%c3, %c0_21, %c0_22], %51 {strides = array<i32>} : memref<8x8x16xf32, #tpu.memory_space<vmem>>, vector<1x8x16xf32>,
    %52 = vector.extract_strided_slice %35 {offsets = [0, 64], sizes = [8, 16], strides = [1, 1]} : vector<8x128xf32> to vector<8x16xf32>
    %c4 = arith.constant 4 : index
    %c0_23 = arith.constant 0 : index
    %c0_24 = arith.constant 0 : index
    %53 = vector.load %arg18[%c4, %c0_23, %c0_24] : memref<8x8x16xf32, #tpu.memory_space<vmem>>, vector<1x8x16xf32>
    %54 = vector.shape_cast %53 : vector<1x8x16xf32> to vector<8x16xf32>
    %55 = vector.shape_cast %52 : vector<8x16xf32> to vector<1x8x16xf32>
    tpu.vector_store %arg18[%c4, %c0_23, %c0_24], %55 {strides = array<i32>} : memref<8x8x16xf32, #tpu.memory_space<vmem>>, vector<1x8x16xf32>,
    %56 = vector.extract_strided_slice %35 {offsets = [0, 80], sizes = [8, 16], strides = [1, 1]} : vector<8x128xf32> to vector<8x16xf32>
    %c5 = arith.constant 5 : index
    %c0_25 = arith.constant 0 : index
    %c0_26 = arith.constant 0 : index
    %57 = vector.load %arg18[%c5, %c0_25, %c0_26] : memref<8x8x16xf32, #tpu.memory_space<vmem>>, vector<1x8x16xf32>
    %58 = vector.shape_cast %57 : vector<1x8x16xf32> to vector<8x16xf32>
    %59 = vector.shape_cast %56 : vector<8x16xf32> to vector<1x8x16xf32>
    tpu.vector_store %arg18[%c5, %c0_25, %c0_26], %59 {strides = array<i32>} : memref<8x8x16xf32, #tpu.memory_space<vmem>>, vector<1x8x16xf32>,
    %60 = vector.extract_strided_slice %35 {offsets = [0, 96], sizes = [8, 16], strides = [1, 1]} : vector<8x128xf32> to vector<8x16xf32>
    %c6 = arith.constant 6 : index
    %c0_27 = arith.constant 0 : index
    %c0_28 = arith.constant 0 : index
    %61 = vector.load %arg18[%c6, %c0_27, %c0_28] : memref<8x8x16xf32, #tpu.memory_space<vmem>>, vector<1x8x16xf32>
    %62 = vector.shape_cast %61 : vector<1x8x16xf32> to vector<8x16xf32>
    %63 = vector.shape_cast %60 : vector<8x16xf32> to vector<1x8x16xf32>
    tpu.vector_store %arg18[%c6, %c0_27, %c0_28], %63 {strides = array<i32>} : memref<8x8x16xf32, #tpu.memory_space<vmem>>, vector<1x8x16xf32>,
    %64 = vector.extract_strided_slice %35 {offsets = [0, 112], sizes = [8, 16], strides = [1, 1]} : vector<8x128xf32> to vector<8x16xf32>
    %c7 = arith.constant 7 : index
    %c0_29 = arith.constant 0 : index
    %c0_30 = arith.constant 0 : index
    %65 = vector.load %arg18[%c7, %c0_29, %c0_30] : memref<8x8x16xf32, #tpu.memory_space<vmem>>, vector<1x8x16xf32>
    %66 = vector.shape_cast %65 : vector<1x8x16xf32> to vector<8x16xf32>
    %67 = vector.shape_cast %64 : vector<8x16xf32> to vector<1x8x16xf32>
    tpu.vector_store %arg18[%c7, %c0_29, %c0_30], %67 {strides = array<i32>} : memref<8x8x16xf32, #tpu.memory_space<vmem>>, vector<1x8x16xf32>,
    %c0_31 = arith.constant 0 : index
    %c0_32 = arith.constant 0 : index
    %c0_33 = arith.constant 0 : index
    %68 = vector.load %arg18[%c0_31, %c0_32, %c0_33] : memref<8x8x16xf32, #tpu.memory_space<vmem>>, vector<8x8x16xf32>
    %c0_34 = arith.constant 0 : index
    %c0_35 = arith.constant 0 : index
    %c0_36 = arith.constant 0 : index
    %69 = vector.load %arg16[%c0_34, %c0_35, %c0_36] : memref<8x16x16xf32, #tpu.memory_space<vmem>>, vector<8x16x16xf32>
    "tpu.trace_start"() <{level = 10 : i32, message = "htd,hnd->htn"}> : () -> ()
    %cst_37 = arith.constant dense<0.000000e+00> : vector<8x8x16xf32>
    %70 = tpu.matmul %68, %69, %cst_37 {dimension_numbers = #tpu.dot_dimension_numbers<[2], [2], [1], [1], [0, 0, 0, 1, 1, 1], [0], [0]>} : vector<8x8x16xf32>, vector<8x16x16xf32>, vector<8x8x16xf32> -> vector<8x8x16xf32>
    "tpu.trace_stop"() : () -> ()
    %cst_38 = arith.constant dense<0xFF800000> : vector<8x8xf32>
    %71 = vector.multi_reduction <maximumf>, %70, %cst_38 [2] : vector<8x8x16xf32> to vector<8x8xf32>
    %72 = vector.shape_cast %71 : vector<8x8xf32> to vector<8x8x1xf32>
    %73 = vector.broadcast %72 : vector<8x8x1xf32> to vector<8x8x16xf32>
    %74 = arith.subf %70, %73 : vector<8x8x16xf32>
    %75 = math.exp %74 : vector<8x8x16xf32>
    %cst_39 = arith.constant dense<0.000000e+00> : vector<8x8xf32>
    %76 = vector.multi_reduction <add>, %75, %cst_39 [2] : vector<8x8x16xf32> to vector<8x8xf32>
    %77 = vector.shape_cast %76 : vector<8x8xf32> to vector<8x8x1xf32>
    %78 = vector.broadcast %77 : vector<8x8x1xf32> to vector<8x8x16xf32>
    %79 = arith.divf %75, %78 : vector<8x8x16xf32>
    %c0_40 = arith.constant 0 : index
    %c0_41 = arith.constant 0 : index
    %c0_42 = arith.constant 0 : index
    %80 = vector.load %arg17[%c0_40, %c0_41, %c0_42] : memref<8x16x16xf32, #tpu.memory_space<vmem>>, vector<8x16x16xf32>
    "tpu.trace_start"() <{level = 10 : i32, message = "htn,hnd->htd"}> : () -> ()
    %cst_43 = arith.constant dense<0.000000e+00> : vector<8x8x16xf32>
    %81 = tpu.matmul %79, %80, %cst_43 {dimension_numbers = #tpu.dot_dimension_numbers<[2], [1], [1], [2], [0, 0, 0, 1, 1, 2], [0], [0]>} : vector<8x8x16xf32>, vector<8x16x16xf32>, vector<8x8x16xf32> -> vector<8x8x16xf32>
    "tpu.trace_stop"() : () -> ()
    %82 = vector.extract_strided_slice %81 {offsets = [0, 0, 0], sizes = [1, 8, 16], strides = [1, 1, 1]} : vector<8x8x16xf32> to vector<1x8x16xf32>
    %83 = vector.shape_cast %82 : vector<1x8x16xf32> to vector<8x16xf32>
    %c0_44 = arith.constant 0 : index
    %c0_45 = arith.constant 0 : index
    %84 = vector.load %arg19[%c0_44, %c0_45] : memref<8x128xf32, #tpu.memory_space<vmem>>, vector<8x16xf32>
    tpu.vector_store %arg19[%c0_44, %c0_45], %83 {strides = array<i32>} : memref<8x128xf32, #tpu.memory_space<vmem>>, vector<8x16xf32>,
    %85 = vector.extract_strided_slice %81 {offsets = [1, 0, 0], sizes = [1, 8, 16], strides = [1, 1, 1]} : vector<8x8x16xf32> to vector<1x8x16xf32>
    %86 = vector.shape_cast %85 : vector<1x8x16xf32> to vector<8x16xf32>
    %c0_46 = arith.constant 0 : index
    %c16 = arith.constant 16 : index
    %87 = vector.load %arg19[%c0_46, %c16] : memref<8x128xf32, #tpu.memory_space<vmem>>, vector<8x16xf32>
    tpu.vector_store %arg19[%c0_46, %c16], %86 {strides = array<i32>} : memref<8x128xf32, #tpu.memory_space<vmem>>, vector<8x16xf32>,
    %88 = vector.extract_strided_slice %81 {offsets = [2, 0, 0], sizes = [1, 8, 16], strides = [1, 1, 1]} : vector<8x8x16xf32> to vector<1x8x16xf32>
    %89 = vector.shape_cast %88 : vector<1x8x16xf32> to vector<8x16xf32>
    %c0_47 = arith.constant 0 : index
    %c32 = arith.constant 32 : index
    %90 = vector.load %arg19[%c0_47, %c32] : memref<8x128xf32, #tpu.memory_space<vmem>>, vector<8x16xf32>
    tpu.vector_store %arg19[%c0_47, %c32], %89 {strides = array<i32>} : memref<8x128xf32, #tpu.memory_space<vmem>>, vector<8x16xf32>,
    %91 = vector.extract_strided_slice %81 {offsets = [3, 0, 0], sizes = [1, 8, 16], strides = [1, 1, 1]} : vector<8x8x16xf32> to vector<1x8x16xf32>
    %92 = vector.shape_cast %91 : vector<1x8x16xf32> to vector<8x16xf32>
    %c0_48 = arith.constant 0 : index
    %c48 = arith.constant 48 : index
    %93 = vector.load %arg19[%c0_48, %c48] : memref<8x128xf32, #tpu.memory_space<vmem>>, vector<8x16xf32>
    tpu.vector_store %arg19[%c0_48, %c48], %92 {strides = array<i32>} : memref<8x128xf32, #tpu.memory_space<vmem>>, vector<8x16xf32>,
    %94 = vector.extract_strided_slice %81 {offsets = [4, 0, 0], sizes = [1, 8, 16], strides = [1, 1, 1]} : vector<8x8x16xf32> to vector<1x8x16xf32>
    %95 = vector.shape_cast %94 : vector<1x8x16xf32> to vector<8x16xf32>
    %c0_49 = arith.constant 0 : index
    %c64 = arith.constant 64 : index
    %96 = vector.load %arg19[%c0_49, %c64] : memref<8x128xf32, #tpu.memory_space<vmem>>, vector<8x16xf32>
    tpu.vector_store %arg19[%c0_49, %c64], %95 {strides = array<i32>} : memref<8x128xf32, #tpu.memory_space<vmem>>, vector<8x16xf32>,
    %97 = vector.extract_strided_slice %81 {offsets = [5, 0, 0], sizes = [1, 8, 16], strides = [1, 1, 1]} : vector<8x8x16xf32> to vector<1x8x16xf32>
    %98 = vector.shape_cast %97 : vector<1x8x16xf32> to vector<8x16xf32>
    %c0_50 = arith.constant 0 : index
    %c80 = arith.constant 80 : index
    %99 = vector.load %arg19[%c0_50, %c80] : memref<8x128xf32, #tpu.memory_space<vmem>>, vector<8x16xf32>
    tpu.vector_store %arg19[%c0_50, %c80], %98 {strides = array<i32>} : memref<8x128xf32, #tpu.memory_space<vmem>>, vector<8x16xf32>,
    %100 = vector.extract_strided_slice %81 {offsets = [6, 0, 0], sizes = [1, 8, 16], strides = [1, 1, 1]} : vector<8x8x16xf32> to vector<1x8x16xf32>
    %101 = vector.shape_cast %100 : vector<1x8x16xf32> to vector<8x16xf32>
    %c0_51 = arith.constant 0 : index
    %c96 = arith.constant 96 : index
    %102 = vector.load %arg19[%c0_51, %c96] : memref<8x128xf32, #tpu.memory_space<vmem>>, vector<8x16xf32>
    tpu.vector_store %arg19[%c0_51, %c96], %101 {strides = array<i32>} : memref<8x128xf32, #tpu.memory_space<vmem>>, vector<8x16xf32>,
    %103 = vector.extract_strided_slice %81 {offsets = [7, 0, 0], sizes = [1, 8, 16], strides = [1, 1, 1]} : vector<8x8x16xf32> to vector<1x8x16xf32>
    %104 = vector.shape_cast %103 : vector<1x8x16xf32> to vector<8x16xf32>
    %c0_52 = arith.constant 0 : index
    %c112 = arith.constant 112 : index
    %105 = vector.load %arg19[%c0_52, %c112] : memref<8x128xf32, #tpu.memory_space<vmem>>, vector<8x16xf32>
    tpu.vector_store %arg19[%c0_52, %c112], %104 {strides = array<i32>} : memref<8x128xf32, #tpu.memory_space<vmem>>, vector<8x16xf32>,
    %c0_53 = arith.constant 0 : index
    %c0_54 = arith.constant 0 : index
    %106 = vector.load %arg19[%c0_53, %c0_54] : memref<8x128xf32, #tpu.memory_space<vmem>>, vector<8x128xf32>
    %c0_55 = arith.constant 0 : index
    %c0_56 = arith.constant 0 : index
    %107 = vector.load %arg7[%c0_55, %c0_56] : memref<128x128xf32, #tpu.memory_space<vmem>>, vector<128x128xf32>
    %cst_57 = arith.constant dense<0.000000e+00> : vector<8x128xf32>
    %108 = tpu.matmul %106, %107, %cst_57 {dimension_numbers = #tpu.dot_dimension_numbers<[1], [0], [0], [1], [0, 0, 1, 1], [], []>} : vector<8x128xf32>, vector<128x128xf32>, vector<8x128xf32> -> vector<8x128xf32>
    %c0_58 = arith.constant 0 : index
    %c0_59 = arith.constant 0 : index
    %109 = vector.load %arg8[%c0_58, %c0_59] : memref<1x128xf32, #tpu.memory_space<vmem>>, vector<1x128xf32>
    %110 = vector.broadcast %109 : vector<1x128xf32> to vector<8x128xf32>
    %111 = arith.addf %108, %110 : vector<8x128xf32>
    %112 = arith.addf %7, %111 : vector<8x128xf32>
    %c0_60 = arith.constant 0 : index
    %c0_61 = arith.constant 0 : index
    %113 = vector.load %arg9[%c0_60, %c0_61] : memref<1x128xf32, #tpu.memory_space<vmem>>, vector<1x128xf32>
    %c0_62 = arith.constant 0 : index
    %c0_63 = arith.constant 0 : index
    %114 = vector.load %arg10[%c0_62, %c0_63] : memref<1x128xf32, #tpu.memory_space<vmem>>, vector<1x128xf32>
    %cst_64 = arith.constant dense<0.000000e+00> : vector<8xf32>
    %115 = vector.multi_reduction <add>, %112, %cst_64 [1] : vector<8x128xf32> to vector<8xf32>
    %116 = vector.shape_cast %115 : vector<8xf32> to vector<8x1xf32>
    %cst_65 = arith.constant 1.280000e+02 : f32
    %117 = vector.broadcast %cst_65 : f32 to vector<8x1xf32>
    %118 = arith.divf %116, %117 : vector<8x1xf32>
    %119 = vector.broadcast %118 : vector<8x1xf32> to vector<8x128xf32>
    %120 = arith.subf %112, %119 : vector<8x128xf32>
    %121 = arith.mulf %120, %120 : vector<8x128xf32>
    %cst_66 = arith.constant dense<0.000000e+00> : vector<8xf32>
    %122 = vector.multi_reduction <add>, %121, %cst_66 [1] : vector<8x128xf32> to vector<8xf32>
    %123 = vector.shape_cast %122 : vector<8xf32> to vector<8x1xf32>
    %cst_67 = arith.constant 1.280000e+02 : f32
    %124 = vector.broadcast %cst_67 : f32 to vector<8x1xf32>
    %125 = arith.divf %123, %124 : vector<8x1xf32>
    %126 = vector.broadcast %118 : vector<8x1xf32> to vector<8x128xf32>
    %127 = arith.subf %112, %126 : vector<8x128xf32>
    %cst_68 = arith.constant 9.99999974E-6 : f32
    %128 = vector.broadcast %cst_68 : f32 to vector<8x1xf32>
    %129 = arith.addf %125, %128 : vector<8x1xf32>
    %130 = math.rsqrt %129 : vector<8x1xf32>
    %131 = vector.broadcast %130 : vector<8x1xf32> to vector<8x128xf32>
    %132 = arith.mulf %127, %131 : vector<8x128xf32>
    %133 = vector.broadcast %113 : vector<1x128xf32> to vector<8x128xf32>
    %134 = arith.mulf %132, %133 : vector<8x128xf32>
    %135 = vector.broadcast %114 : vector<1x128xf32> to vector<8x128xf32>
    %136 = arith.addf %134, %135 : vector<8x128xf32>
    %c0_69 = arith.constant 0 : index
    %c0_70 = arith.constant 0 : index
    %137 = vector.load %arg11[%c0_69, %c0_70] : memref<128x512xf32, #tpu.memory_space<vmem>>, vector<128x512xf32>
    %cst_71 = arith.constant dense<0.000000e+00> : vector<8x512xf32>
    %138 = tpu.matmul %136, %137, %cst_71 {dimension_numbers = #tpu.dot_dimension_numbers<[1], [0], [0], [1], [0, 0, 1, 1], [], []>} : vector<8x128xf32>, vector<128x512xf32>, vector<8x512xf32> -> vector<8x512xf32>
    %c0_72 = arith.constant 0 : index
    %c0_73 = arith.constant 0 : index
    %139 = vector.load %arg12[%c0_72, %c0_73] : memref<1x512xf32, #tpu.memory_space<vmem>>, vector<1x512xf32>
    %140 = vector.broadcast %139 : vector<1x512xf32> to vector<8x512xf32>
    %141 = arith.addf %138, %140 : vector<8x512xf32>
    %cst_74 = arith.constant 5.000000e-01 : f32
    %142 = vector.broadcast %cst_74 : f32 to vector<8x512xf32>
    %143 = arith.mulf %142, %141 : vector<8x512xf32>
    %cst_75 = arith.constant 0.707106769 : f32
    %144 = vector.broadcast %cst_75 : f32 to vector<8x512xf32>
    %145 = arith.mulf %141, %144 : vector<8x512xf32>
    %146 = math.erf %145 : vector<8x512xf32>
    %cst_76 = arith.constant 1.000000e+00 : f32
    %147 = vector.broadcast %cst_76 : f32 to vector<8x512xf32>
    %148 = arith.addf %147, %146 : vector<8x512xf32>
    %149 = arith.mulf %143, %148 : vector<8x512xf32>
    %c0_77 = arith.constant 0 : index
    %c0_78 = arith.constant 0 : index
    %150 = vector.load %arg13[%c0_77, %c0_78] : memref<512x128xf32, #tpu.memory_space<vmem>>, vector<512x128xf32>
    %cst_79 = arith.constant dense<0.000000e+00> : vector<8x128xf32>
    %151 = tpu.matmul %149, %150, %cst_79 {dimension_numbers = #tpu.dot_dimension_numbers<[1], [0], [0], [1], [0, 0, 1, 1], [], []>} : vector<8x512xf32>, vector<512x128xf32>, vector<8x128xf32> -> vector<8x128xf32>
    %c0_80 = arith.constant 0 : index
    %c0_81 = arith.constant 0 : index
    %152 = vector.load %arg14[%c0_80, %c0_81] : memref<1x128xf32, #tpu.memory_space<vmem>>, vector<1x128xf32>
    %153 = vector.broadcast %152 : vector<1x128xf32> to vector<8x128xf32>
    %154 = arith.addf %151, %153 : vector<8x128xf32>
    %155 = arith.addf %112, %154 : vector<8x128xf32>
    %c0_82 = arith.constant 0 : index
    %c0_83 = arith.constant 0 : index
    %c0_84 = arith.constant 0 : index
    %156 = vector.load %arg15[%c0_82, %c0_83, %c0_84] : memref<1x8x128xf32, #tpu.memory_space<vmem>>, vector<1x8x128xf32>
    %157 = vector.shape_cast %156 : vector<1x8x128xf32> to vector<8x128xf32>
    %158 = vector.shape_cast %155 : vector<8x128xf32> to vector<1x8x128xf32>
    tpu.vector_store %arg15[%c0_82, %c0_83, %c0_84], %158 {strides = array<i32>} : memref<1x8x128xf32, #tpu.memory_space<vmem>>, vector<1x8x128xf32>,
    return
  }
  func.func @transform_0(%arg0: i32, %arg1: i32) -> (i32, i32, i32) {
    %c0_i32 = arith.constant 0 : i32
    %c0_i32_0 = arith.constant 0 : i32
    %c0_i32_1 = arith.constant 0 : i32
    return %arg0, %c0_i32, %c0_i32_0 : i32, i32, i32
  }
  func.func @transform_1(%arg0: i32, %arg1: i32) -> (i32, i32) {
    %c0_i32 = arith.constant 0 : i32
    %c0_i32_0 = arith.constant 0 : i32
    %c0_i32_1 = arith.constant 0 : i32
    return %c0_i32, %c0_i32_0 : i32, i32
  }
  func.func @transform_2(%arg0: i32, %arg1: i32) -> (i32, i32) {
    %c0_i32 = arith.constant 0 : i32
    %c0_i32_0 = arith.constant 0 : i32
    %c0_i32_1 = arith.constant 0 : i32
    return %c0_i32, %c0_i32_0 : i32, i32
  }
  func.func @transform_3(%arg0: i32, %arg1: i32) -> (i32, i32) {
    %c0_i32 = arith.constant 0 : i32
    %c0_i32_0 = arith.constant 0 : i32
    %c0_i32_1 = arith.constant 0 : i32
    return %c0_i32, %c0_i32_0 : i32, i32
  }
  func.func @transform_4(%arg0: i32, %arg1: i32) -> (i32, i32) {
    %c0_i32 = arith.constant 0 : i32
    %c0_i32_0 = arith.constant 0 : i32
    %c0_i32_1 = arith.constant 0 : i32
    return %c0_i32, %c0_i32_0 : i32, i32
  }
  func.func @transform_5(%arg0: i32, %arg1: i32) -> (i32, i32) {
    %c0_i32 = arith.constant 0 : i32
    %c0_i32_0 = arith.constant 0 : i32
    %c0_i32_1 = arith.constant 0 : i32
    return %c0_i32, %c0_i32_0 : i32, i32
  }
  func.func @transform_6(%arg0: i32, %arg1: i32) -> (i32, i32) {
    %c0_i32 = arith.constant 0 : i32
    %c0_i32_0 = arith.constant 0 : i32
    %c0_i32_1 = arith.constant 0 : i32
    return %c0_i32, %c0_i32_0 : i32, i32
  }
  func.func @transform_7(%arg0: i32, %arg1: i32) -> (i32, i32) {
    %c0_i32 = arith.constant 0 : i32
    %c0_i32_0 = arith.constant 0 : i32
    %c0_i32_1 = arith.constant 0 : i32
    return %c0_i32, %c0_i32_0 : i32, i32
  }
  func.func @transform_8(%arg0: i32, %arg1: i32) -> (i32, i32) {
    %c0_i32 = arith.constant 0 : i32
    %c0_i32_0 = arith.constant 0 : i32
    %c0_i32_1 = arith.constant 0 : i32
    return %c0_i32, %c0_i32_0 : i32, i32
  }
  func.func @transform_9(%arg0: i32, %arg1: i32) -> (i32, i32) {
    %c0_i32 = arith.constant 0 : i32
    %c0_i32_0 = arith.constant 0 : i32
    %c0_i32_1 = arith.constant 0 : i32
    return %c0_i32, %c0_i32_0 : i32, i32
  }
  func.func @transform_10(%arg0: i32, %arg1: i32) -> (i32, i32) {
    %c0_i32 = arith.constant 0 : i32
    %c0_i32_0 = arith.constant 0 : i32
    %c0_i32_1 = arith.constant 0 : i32
    return %c0_i32, %c0_i32_0 : i32, i32
  }
  func.func @transform_11(%arg0: i32, %arg1: i32) -> (i32, i32) {
    %c0_i32 = arith.constant 0 : i32
    %c0_i32_0 = arith.constant 0 : i32
    %c0_i32_1 = arith.constant 0 : i32
    return %c0_i32, %c0_i32_0 : i32, i32
  }
  func.func @transform_12(%arg0: i32, %arg1: i32) -> (i32, i32) {
    %c0_i32 = arith.constant 0 : i32
    %c0_i32_0 = arith.constant 0 : i32
    %c0_i32_1 = arith.constant 0 : i32
    return %c0_i32, %c0_i32_0 : i32, i32
  }
  func.func @transform_13(%arg0: i32, %arg1: i32) -> (i32, i32, i32) {
    %c0_i32 = arith.constant 0 : i32
    %c0_i32_0 = arith.constant 0 : i32
    return %arg0, %arg1, %c0_i32 : i32, i32, i32
  }
}

</mosaic_0001>

<llo_original>
// kernel: tpu_custom_call.1
$region0: #{tpu_custom_call.1}
  #allocation0 [shape = 'u32[]', space=smem, size = 0x4, offset = 0x4, fixed_abs, tag = 'smem constant byte address 0x4 - core index']
  #allocation1 [shape = 'u32[144,128]{1,0:T(1,128)}', space=vmem, size = 0x12000, scoped, tag = 'internal scratch']
  #allocation2 [shape = 'f32[8,16,16]{2,1,0:T(8,128)}', space=vmem, size = 0x10000, scoped, tag = 'scratch operand']
  #allocation3 [shape = 'f32[8,16,16]{2,1,0:T(8,128)}', space=vmem, size = 0x10000, scoped, tag = 'scratch operand']
  #allocation4 [shape = 'f32[8,8,16]{2,1,0:T(8,128)}', space=vmem, size = 0x8000, scoped, tag = 'scratch operand']
  #allocation5 [shape = 'f32[8,128]{1,0:T(8,128)}', space=vmem, size = 0x1000, scoped, tag = 'scratch operand']
  %s0 = inlined_call_operand.hbm [shape: f32[2,16,128], index: 0, kind: input, shape index: {}]
  %s1 = inlined_call_operand.vmem [shape: f32[1,128], index: 1, kind: input, shape index: {}]
  %s2 = inlined_call_operand.vmem [shape: f32[1,128], index: 2, kind: input, shape index: {}]
  %s3 = inlined_call_operand.hbm [shape: f32[128,128], index: 3, kind: input, shape index: {}]
  %s4 = inlined_call_operand.hbm [shape: f32[128,256], index: 4, kind: input, shape index: {}]
  %s5 = inlined_call_operand.hbm [shape: f32[128,128], index: 5, kind: input, shape index: {}]
  %s6 = inlined_call_operand.vmem [shape: f32[1,128], index: 6, kind: input, shape index: {}]
  %s7 = inlined_call_operand.vmem [shape: f32[1,128], index: 7, kind: input, shape index: {}]
  %s8 = inlined_call_operand.vmem [shape: f32[1,128], index: 8, kind: input, shape index: {}]
  %s9 = inlined_call_operand.hbm [shape: f32[128,512], index: 9, kind: input, shape index: {}]
  %s10 = inlined_call_operand.vmem [shape: f32[1,512], index: 10, kind: input, shape index: {}]
  %s11 = inlined_call_operand.hbm [shape: f32[512,128], index: 11, kind: input, shape index: {}]
  %s12 = inlined_call_operand.vmem [shape: f32[1,128], index: 12, kind: input, shape index: {}]
  %s13 = inlined_call_operand.hbm [shape: f32[2,16,128], index: 13, kind: output, shape index: {}]
  %s14 = sld [smem:[#allocation0]]
  $region113: #{tpu_custom_call.1} parent=0
    _
  %s16 = ssub.s32 1, %s14
  %s17 = scalar_select 0, %s16, %s14
  $region1: #{tpu_custom_call.1} parent=0
    #allocation6 [shape = 'u8[16384]{0}', space=vmem, size = 0x4000, scoped, tag = 'input window, operand 0']
    #allocation7 [shape = 's32[2]{0}', space=sflag, size = 0x8, scoped, tag = 'scoped memory for tpu_custom_call.1']
    #allocation8 [shape = 's32[2]{0}', space=sflag, size = 0x8, scoped, tag = 'scoped memory for tpu_custom_call.1']
    #allocation9 [shape = 'u8[65536]{0}', space=vmem, size = 0x10000, scoped, tag = 'input window, operand 3, single buffered']
    #allocation10 [shape = 's32[1]{0}', space=sflag, size = 0x4, scoped, tag = 'scoped memory for tpu_custom_call.1']
    #allocation11 [shape = 'u8[131072]{0}', space=vmem, size = 0x20000, scoped, tag = 'input window, operand 4, single buffered']
    #allocation12 [shape = 'u8[65536]{0}', space=vmem, size = 0x10000, scoped, tag = 'input window, operand 5, single buffered']
    #allocation13 [shape = 's32[1]{0}', space=sflag, size = 0x4, scoped, tag = 'scoped memory for tpu_custom_call.1']
    #allocation14 [shape = 'u8[262144]{0}', space=vmem, size = 0x40000, scoped, tag = 'input window, operand 9, single buffered']
    #allocation15 [shape = 'u8[262144]{0}', space=vmem, size = 0x40000, scoped, tag = 'input window, operand 11, single buffered']
    #allocation16 [shape = 's32[1]{0}', space=sflag, size = 0x4, scoped, tag = 'scoped memory for tpu_custom_call.1']
    #allocation17 [shape = 'u8[8192]{0}', space=vmem, size = 0x2000, scoped, tag = 'output window, operand 0']
    %18 = vsyncpa [#allocation7], 0
    %s19 = scalar_lea.sflag [#allocation7], 1
    %20 = vsyncpa %s19, 0
    %21 = vsyncpa [#allocation10], 0
    %22 = vsyncpa [#allocation13], 0
    %23 = vsyncpa [#allocation16], 0
    %24 = vsyncpa [#allocation8], 0
    %s25 = scalar_lea.sflag [#allocation8], 1
    %26 = vsyncpa %s25, 0
    loop: start=0, step=1, limit=6
    $region2: #{tpu_custom_call.1} parent=1 // loop_pre_header
      _
    $region3: #{tpu_custom_call.1} parent=1 // loop_header
      %s28 = sphi 0, %s32
      %p29 = scmp.ge.s32.totalorder %s28, 6
      %s35 = sphi 0, %s47
      %s36 = sphi 0, %s43
      %s37 = sphi 0, %s35
      %s38 = sphi 0, %s36
      %s39 = sphi 0, %s37
      %s40 = sphi 0, %s38
      %s50 = sphi 0, %s52
      %s53 = sphi 0, %s50
      %s54 = sphi 0, %s53
      %s70 = sphi 0, %s54
      %s74 = sphi 0, %s74
      %s76 = sphi 0, %s74
      %s77 = sphi 0, %s76
      %s91 = sphi 0, %s77
      %s95 = sphi 0, %s95
      %s97 = sphi 0, %s95
      %s98 = sphi 0, %s97
      %s112 = sphi 0, %s98
      %s116 = sphi 0, %s116
      %s118 = sphi 0, %s116
      %s119 = sphi 0, %s118
      %s133 = sphi 0, %s119
      %s137 = sphi 0, %s137
      %s139 = sphi 0, %s137
      %s140 = sphi 0, %s139
      %s154 = sphi 0, %s140
      %s158 = sphi 0, %s158
      %s160 = sphi 0, %s158
      %s161 = sphi 0, %s160
      %s175 = sphi 0, %s161
      %s179 = sphi 0, %s179
      %s181 = sphi 0, %s179
      %s182 = sphi 0, %s181
      %s196 = sphi 0, %s182
      %s200 = sphi 0, %s200
      %s202 = sphi 0, %s200
      %s203 = sphi 0, %s202
      %s217 = sphi 0, %s203
      %s221 = sphi 0, %s221
      %s223 = sphi 0, %s221
      %s224 = sphi 0, %s223
      %s238 = sphi 0, %s224
      %s242 = sphi 0, %s242
      %s244 = sphi 0, %s242
      %s245 = sphi 0, %s244
      %s259 = sphi 0, %s245
      %s263 = sphi 0, %s263
      %s265 = sphi 0, %s263
      %s266 = sphi 0, %s265
      %s280 = sphi 0, %s266
      %s284 = sphi 0, %s284
      %s286 = sphi 0, %s284
      %s287 = sphi 0, %s286
      %s301 = sphi 0, %s287
      %s305 = sphi 0, %s305
      %s307 = sphi 0, %s305
      %s308 = sphi 0, %s307
      %s322 = sphi 0, %s308
      %s330 = sphi 0, %s332
      %s333 = sphi 0, %s330
      %s334 = sphi 0, %s333
      %s350 = sphi 0, %s334
    $region4: #{tpu_custom_call.1} parent=1 // loop_header_branch
      %31 = sbr.rel (%p29) target = $region8
    $region5: #{tpu_custom_call.1} parent=1 // loop_body
      %s33 = ssub.s32 %s28, 1
      %s34 = ssub.s32 %s28, 2
      %s41 = sadd.s32 1, %s36
      %p42 = scmp.ge.s32.totalorder %s41, 2
      %s43 = scalar_select %p42, 0, %s41
      %s44 = sadd.s32 1, %s35
      %s45 = scalar_select %p42, %s44, %s35
      %p46 = scmp.ge.s32.totalorder %s45, 2
      %s47 = scalar_select %p46, 0, %s45
      %s48 = ssub.s32 %s35, %s47
      %p49 = scmp.eq.s32.totalorder %s48, 0
      %s51 = sadd.s32 %s50, 1
      %s52 = scalar_select %p49, %s50, %s51
      %p55 = pneg %p49
      %p56 = scmp.eq.s32.totalorder %s28, 3
      %p57 = por %p55, %p56
      %p58 = scmp.ne.s32.totalorder %s50, %s53
      %p59 = scmp.eq.s32.totalorder %s28, 0
      %p60 = por %p58, %p59
      %p61 = scmp.ne.s32.totalorder %s50, %s53
      %p62 = scmp.eq.s32.totalorder %s33, 3
      %p63 = por %p61, %p62
      %p64 = scmp.ne.s32.totalorder %s53, %s54
      %p65 = scmp.eq.s32.totalorder %s33, 0
      %p66 = por %p64, %p65
      %p67 = scmp.ne.s32.totalorder %s53, %s54
      %p68 = scmp.eq.s32.totalorder %s34, 3
      %p69 = por %p67, %p68
      %p71 = scmp.ne.s32.totalorder %s54, %s70
      %p72 = scmp.eq.s32.totalorder %s34, 0
      %p73 = por %p71, %p72
      %s75 = sadd.s32 %s74, 1
      %p78 = scmp.eq.s32.totalorder %s28, 3
      %p79 = scmp.ne.s32.totalorder %s74, %s76
      %p80 = scmp.eq.s32.totalorder %s28, 0
      %p81 = por %p79, %p80
      %p82 = scmp.ne.s32.totalorder %s74, %s76
      %p83 = scmp.eq.s32.totalorder %s33, 3
      %p84 = por %p82, %p83
      %p85 = scmp.ne.s32.totalorder %s76, %s77
      %p86 = scmp.eq.s32.totalorder %s33, 0
      %p87 = por %p85, %p86
      %p88 = scmp.ne.s32.totalorder %s76, %s77
      %p89 = scmp.eq.s32.totalorder %s34, 3
      %p90 = por %p88, %p89
      %p92 = scmp.ne.s32.totalorder %s77, %s91
      %p93 = scmp.eq.s32.totalorder %s34, 0
      %p94 = por %p92, %p93
      %s96 = sadd.s32 %s95, 1
      %p99 = scmp.eq.s32.totalorder %s28, 3
      %p100 = scmp.ne.s32.totalorder %s95, %s97
      %p101 = scmp.eq.s32.totalorder %s28, 0
      %p102 = por %p100, %p101
      %p103 = scmp.ne.s32.totalorder %s95, %s97
      %p104 = scmp.eq.s32.totalorder %s33, 3
      %p105 = por %p103, %p104
      %p106 = scmp.ne.s32.totalorder %s97, %s98
      %p107 = scmp.eq.s32.totalorder %s33, 0
      %p108 = por %p106, %p107
      %p109 = scmp.ne.s32.totalorder %s97, %s98
      %p110 = scmp.eq.s32.totalorder %s34, 3
      %p111 = por %p109, %p110
      %p113 = scmp.ne.s32.totalorder %s98, %s112
      %p114 = scmp.eq.s32.totalorder %s34, 0
      %p115 = por %p113, %p114
      %s117 = sadd.s32 %s116, 1
      %p120 = scmp.eq.s32.totalorder %s28, 3
      %p121 = scmp.ne.s32.totalorder %s116, %s118
      %p122 = scmp.eq.s32.totalorder %s28, 0
      %p123 = por %p121, %p122
      %p124 = scmp.ne.s32.totalorder %s116, %s118
      %p125 = scmp.eq.s32.totalorder %s33, 3
      %p126 = por %p124, %p125
      %p127 = scmp.ne.s32.totalorder %s118, %s119
      %p128 = scmp.eq.s32.totalorder %s33, 0
      %p129 = por %p127, %p128
      %p130 = scmp.ne.s32.totalorder %s118, %s119
      %p131 = scmp.eq.s32.totalorder %s34, 3
      %p132 = por %p130, %p131
      %p134 = scmp.ne.s32.totalorder %s119, %s133
      %p135 = scmp.eq.s32.totalorder %s34, 0
      %p136 = por %p134, %p135
      %s138 = sadd.s32 %s137, 1
      %p141 = scmp.eq.s32.totalorder %s28, 3
      %p142 = scmp.ne.s32.totalorder %s137, %s139
      %p143 = scmp.eq.s32.totalorder %s28, 0
      %p144 = por %p142, %p143
      %p145 = scmp.ne.s32.totalorder %s137, %s139
      %p146 = scmp.eq.s32.totalorder %s33, 3
      %p147 = por %p145, %p146
      %p148 = scmp.ne.s32.totalorder %s139, %s140
      %p149 = scmp.eq.s32.totalorder %s33, 0
      %p150 = por %p148, %p149
      %p151 = scmp.ne.s32.totalorder %s139, %s140
      %p152 = scmp.eq.s32.totalorder %s34, 3
      %p153 = por %p151, %p152
      %p155 = scmp.ne.s32.totalorder %s140, %s154
      %p156 = scmp.eq.s32.totalorder %s34, 0
      %p157 = por %p155, %p156
      %s159 = sadd.s32 %s158, 1
      %p162 = scmp.eq.s32.totalorder %s28, 3
      %p163 = scmp.ne.s32.totalorder %s158, %s160
      %p164 = scmp.eq.s32.totalorder %s28, 0
      %p165 = por %p163, %p164
      %p166 = scmp.ne.s32.totalorder %s158, %s160
      %p167 = scmp.eq.s32.totalorder %s33, 3
      %p168 = por %p166, %p167
      %p169 = scmp.ne.s32.totalorder %s160, %s161
      %p170 = scmp.eq.s32.totalorder %s33, 0
      %p171 = por %p169, %p170
      %p172 = scmp.ne.s32.totalorder %s160, %s161
      %p173 = scmp.eq.s32.totalorder %s34, 3
      %p174 = por %p172, %p173
      %p176 = scmp.ne.s32.totalorder %s161, %s175
      %p177 = scmp.eq.s32.totalorder %s34, 0
      %p178 = por %p176, %p177
      %s180 = sadd.s32 %s179, 1
      %p183 = scmp.eq.s32.totalorder %s28, 3
      %p184 = scmp.ne.s32.totalorder %s179, %s181
      %p185 = scmp.eq.s32.totalorder %s28, 0
      %p186 = por %p184, %p185
      %p187 = scmp.ne.s32.totalorder %s179, %s181
      %p188 = scmp.eq.s32.totalorder %s33, 3
      %p189 = por %p187, %p188
      %p190 = scmp.ne.s32.totalorder %s181, %s182
      %p191 = scmp.eq.s32.totalorder %s33, 0
      %p192 = por %p190, %p191
      %p193 = scmp.ne.s32.totalorder %s181, %s182
      %p194 = scmp.eq.s32.totalorder %s34, 3
      %p195 = por %p193, %p194
      %p197 = scmp.ne.s32.totalorder %s182, %s196
      %p198 = scmp.eq.s32.totalorder %s34, 0
      %p199 = por %p197, %p198
      %s201 = sadd.s32 %s200, 1
      %p204 = scmp.eq.s32.totalorder %s28, 3
      %p205 = scmp.ne.s32.totalorder %s200, %s202
      %p206 = scmp.eq.s32.totalorder %s28, 0
      %p207 = por %p205, %p206
      %p208 = scmp.ne.s32.totalorder %s200, %s202
      %p209 = scmp.eq.s32.totalorder %s33, 3
      %p210 = por %p208, %p209
      %p211 = scmp.ne.s32.totalorder %s202, %s203
      %p212 = scmp.eq.s32.totalorder %s33, 0
      %p213 = por %p211, %p212
      %p214 = scmp.ne.s32.totalorder %s202, %s203
      %p215 = scmp.eq.s32.totalorder %s34, 3
      %p216 = por %p214, %p215
      %p218 = scmp.ne.s32.totalorder %s203, %s217
      %p219 = scmp.eq.s32.totalorder %s34, 0
      %p220 = por %p218, %p219
      %s222 = sadd.s32 %s221, 1
      %p225 = scmp.eq.s32.totalorder %s28, 3
      %p226 = scmp.ne.s32.totalorder %s221, %s223
      %p227 = scmp.eq.s32.totalorder %s28, 0
      %p228 = por %p226, %p227
      %p229 = scmp.ne.s32.totalorder %s221, %s223
      %p230 = scmp.eq.s32.totalorder %s33, 3
      %p231 = por %p229, %p230
      %p232 = scmp.ne.s32.totalorder %s223, %s224
      %p233 = scmp.eq.s32.totalorder %s33, 0
      %p234 = por %p232, %p233
      %p235 = scmp.ne.s32.totalorder %s223, %s224
      %p236 = scmp.eq.s32.totalorder %s34, 3
      %p237 = por %p235, %p236
      %p239 = scmp.ne.s32.totalorder %s224, %s238
      %p240 = scmp.eq.s32.totalorder %s34, 0
      %p241 = por %p239, %p240
      %s243 = sadd.s32 %s242, 1
      %p246 = scmp.eq.s32.totalorder %s28, 3
      %p247 = scmp.ne.s32.totalorder %s242, %s244
      %p248 = scmp.eq.s32.totalorder %s28, 0
      %p249 = por %p247, %p248
      %p250 = scmp.ne.s32.totalorder %s242, %s244
      %p251 = scmp.eq.s32.totalorder %s33, 3
      %p252 = por %p250, %p251
      %p253 = scmp.ne.s32.totalorder %s244, %s245
      %p254 = scmp.eq.s32.totalorder %s33, 0
      %p255 = por %p253, %p254
      %p256 = scmp.ne.s32.totalorder %s244, %s245
      %p257 = scmp.eq.s32.totalorder %s34, 3
      %p258 = por %p256, %p257
      %p260 = scmp.ne.s32.totalorder %s245, %s259
      %p261 = scmp.eq.s32.totalorder %s34, 0
      %p262 = por %p260, %p261
      %s264 = sadd.s32 %s263, 1
      %p267 = scmp.eq.s32.totalorder %s28, 3
      %p268 = scmp.ne.s32.totalorder %s263, %s265
      %p269 = scmp.eq.s32.totalorder %s28, 0
      %p270 = por %p268, %p269
      %p271 = scmp.ne.s32.totalorder %s263, %s265
      %p272 = scmp.eq.s32.totalorder %s33, 3
      %p273 = por %p271, %p272
      %p274 = scmp.ne.s32.totalorder %s265, %s266
      %p275 = scmp.eq.s32.totalorder %s33, 0
      %p276 = por %p274, %p275
      %p277 = scmp.ne.s32.totalorder %s265, %s266
      %p278 = scmp.eq.s32.totalorder %s34, 3
      %p279 = por %p277, %p278
      %p281 = scmp.ne.s32.totalorder %s266, %s280
      %p282 = scmp.eq.s32.totalorder %s34, 0
      %p283 = por %p281, %p282
      %s285 = sadd.s32 %s284, 1
      %p288 = scmp.eq.s32.totalorder %s28, 3
      %p289 = scmp.ne.s32.totalorder %s284, %s286
      %p290 = scmp.eq.s32.totalorder %s28, 0
      %p291 = por %p289, %p290
      %p292 = scmp.ne.s32.totalorder %s284, %s286
      %p293 = scmp.eq.s32.totalorder %s33, 3
      %p294 = por %p292, %p293
      %p295 = scmp.ne.s32.totalorder %s286, %s287
      %p296 = scmp.eq.s32.totalorder %s33, 0
      %p297 = por %p295, %p296
      %p298 = scmp.ne.s32.totalorder %s286, %s287
      %p299 = scmp.eq.s32.totalorder %s34, 3
      %p300 = por %p298, %p299
      %p302 = scmp.ne.s32.totalorder %s287, %s301
      %p303 = scmp.eq.s32.totalorder %s34, 0
      %p304 = por %p302, %p303
      %s306 = sadd.s32 %s305, 1
      %p309 = scmp.eq.s32.totalorder %s28, 3
      %p310 = scmp.ne.s32.totalorder %s305, %s307
      %p311 = scmp.eq.s32.totalorder %s28, 0
      %p312 = por %p310, %p311
      %p313 = scmp.ne.s32.totalorder %s305, %s307
      %p314 = scmp.eq.s32.totalorder %s33, 3
      %p315 = por %p313, %p314
      %p316 = scmp.ne.s32.totalorder %s307, %s308
      %p317 = scmp.eq.s32.totalorder %s33, 0
      %p318 = por %p316, %p317
      %p319 = scmp.ne.s32.totalorder %s307, %s308
      %p320 = scmp.eq.s32.totalorder %s34, 3
      %p321 = por %p319, %p320
      %p323 = scmp.ne.s32.totalorder %s308, %s322
      %p324 = scmp.eq.s32.totalorder %s34, 0
      %p325 = por %p323, %p324
      %s326 = ssub.s32 %s35, %s47
      %s327 = ssub.s32 %s36, %s43
      %s328 = sor.u32 %s326, %s327
      %p329 = scmp.eq.s32.totalorder %s328, 0
      %s331 = sadd.s32 %s330, 1
      %s332 = scalar_select %p329, %s330, %s331
      %p335 = pneg %p329
      %p336 = scmp.eq.s32.totalorder %s28, 3
      %p337 = por %p335, %p336
      %p338 = scmp.ne.s32.totalorder %s330, %s333
      %p339 = scmp.eq.s32.totalorder %s28, 0
      %p340 = por %p338, %p339
      %p341 = scmp.ne.s32.totalorder %s330, %s333
      %p342 = scmp.eq.s32.totalorder %s33, 3
      %p343 = por %p341, %p342
      %p344 = scmp.ne.s32.totalorder %s333, %s334
      %p345 = scmp.eq.s32.totalorder %s33, 0
      %p346 = por %p344, %p345
      %p347 = scmp.ne.s32.totalorder %s333, %s334
      %p348 = scmp.eq.s32.totalorder %s34, 3
      %p349 = por %p347, %p348
      %p351 = scmp.ne.s32.totalorder %s334, %s350
      %p352 = scmp.eq.s32.totalorder %s34, 0
      %p353 = por %p351, %p352
      %p354 = scmp.le.s32.totalorder 1, %s28
      %p355 = scmp.lt.s32.totalorder %s28, 5
      %p356 = pnand %p354, %p355
      %p357 = pneg %p356
      // Predicated region
      $region9: #{tpu_custom_call.1} parent=5 // pred_check
        _
      $region10: #{tpu_custom_call.1} parent=5 // pred_check_branch
        %359 = sbr.rel (%p356) target = $region12
      $region11: #{tpu_custom_call.1} parent=5 // pred_region
        %s360 = ssub.s32 %s28, 1
        // Predicated region
        $region13: #{tpu_custom_call.1} parent=11 // pred_check
          %p361 = pneg %p87
        $region14: #{tpu_custom_call.1} parent=11 // pred_check_branch
          %363 = sbr.rel (%p361) target = $region16
        $region15: #{tpu_custom_call.1} parent=11 // pred_region
          _
        $region16: #{tpu_custom_call.1} parent=11 // pred_fallthru
          _
        // Predicated region
        $region17: #{tpu_custom_call.1} parent=11 // pred_check
          %p364 = pneg %p108
        $region18: #{tpu_custom_call.1} parent=11 // pred_check_branch
          %366 = sbr.rel (%p364) target = $region20
        $region19: #{tpu_custom_call.1} parent=11 // pred_region
          _
        $region20: #{tpu_custom_call.1} parent=11 // pred_fallthru
          _
        // Predicated region
        $region21: #{tpu_custom_call.1} parent=11 // pred_check
          %p367 = pneg %p129
        $region22: #{tpu_custom_call.1} parent=11 // pred_check_branch
          %369 = sbr.rel (%p367) target = $region24
        $region23: #{tpu_custom_call.1} parent=11 // pred_region
          %s371 = ssub.s32 2048, 2048
          %372 = vsyncadd [#allocation10], %s371
          %s373 = sshll.u32 [#allocation9], 4
          %s374 = int_to_ptr.vmem [resolvable:$true] %s373
          %379 = dma.hbm_to_vmem [thread:$0]  %s3, 2048, %s374, [#allocation10], 128, 128, 8
        $region24: #{tpu_custom_call.1} parent=11 // pred_fallthru
          _
        // Predicated region
        $region25: #{tpu_custom_call.1} parent=11 // pred_check
          %p380 = pneg %p150
        $region26: #{tpu_custom_call.1} parent=11 // pred_check_branch
          %382 = sbr.rel (%p380) target = $region28
        $region27: #{tpu_custom_call.1} parent=11 // pred_region
          %s384 = ssub.s32 4096, 4096
          %385 = vsyncadd [#allocation10], %s384
          %s386 = sshll.u32 [#allocation11], 4
          %s387 = int_to_ptr.vmem [resolvable:$true] %s386
          %392 = dma.hbm_to_vmem [thread:$0]  %s4, 4096, %s387, [#allocation10], 256, 256, 16
        $region28: #{tpu_custom_call.1} parent=11 // pred_fallthru
          _
        // Predicated region
        $region29: #{tpu_custom_call.1} parent=11 // pred_check
          %p393 = pneg %p171
        $region30: #{tpu_custom_call.1} parent=11 // pred_check_branch
          %395 = sbr.rel (%p393) target = $region32
        $region31: #{tpu_custom_call.1} parent=11 // pred_region
          %s397 = ssub.s32 2048, 2048
          %398 = vsyncadd [#allocation13], %s397
          %s399 = sshll.u32 [#allocation12], 4
          %s400 = int_to_ptr.vmem [resolvable:$true] %s399
          %405 = dma.hbm_to_vmem [thread:$0]  %s5, 2048, %s400, [#allocation13], 128, 128, 8
        $region32: #{tpu_custom_call.1} parent=11 // pred_fallthru
          _
        // Predicated region
        $region33: #{tpu_custom_call.1} parent=11 // pred_check
          %p406 = pneg %p192
        $region34: #{tpu_custom_call.1} parent=11 // pred_check_branch
          %408 = sbr.rel (%p406) target = $region36
        $region35: #{tpu_custom_call.1} parent=11 // pred_region
          _
        $region36: #{tpu_custom_call.1} parent=11 // pred_fallthru
          _
        // Predicated region
        $region37: #{tpu_custom_call.1} parent=11 // pred_check
          %p409 = pneg %p213
        $region38: #{tpu_custom_call.1} parent=11 // pred_check_branch
          %411 = sbr.rel (%p409) target = $region40
        $region39: #{tpu_custom_call.1} parent=11 // pred_region
          _
        $region40: #{tpu_custom_call.1} parent=11 // pred_fallthru
          _
        // Predicated region
        $region41: #{tpu_custom_call.1} parent=11 // pred_check
          %p412 = pneg %p234
        $region42: #{tpu_custom_call.1} parent=11 // pred_check_branch
          %414 = sbr.rel (%p412) target = $region44
        $region43: #{tpu_custom_call.1} parent=11 // pred_region
          _
        $region44: #{tpu_custom_call.1} parent=11 // pred_fallthru
          _
        // Predicated region
        $region45: #{tpu_custom_call.1} parent=11 // pred_check
          %p415 = pneg %p255
        $region46: #{tpu_custom_call.1} parent=11 // pred_check_branch
          %417 = sbr.rel (%p415) target = $region48
        $region47: #{tpu_custom_call.1} parent=11 // pred_region
          %s419 = ssub.s32 8192, 8192
          %420 = vsyncadd [#allocation13], %s419
          %s421 = sshll.u32 [#allocation14], 4
          %s422 = int_to_ptr.vmem [resolvable:$true] %s421
          %427 = dma.hbm_to_vmem [thread:$0]  %s9, 8192, %s422, [#allocation13], 512, 512, 32
        $region48: #{tpu_custom_call.1} parent=11 // pred_fallthru
          _
        // Predicated region
        $region49: #{tpu_custom_call.1} parent=11 // pred_check
          %p428 = pneg %p276
        $region50: #{tpu_custom_call.1} parent=11 // pred_check_branch
          %430 = sbr.rel (%p428) target = $region52
        $region51: #{tpu_custom_call.1} parent=11 // pred_region
          _
        $region52: #{tpu_custom_call.1} parent=11 // pred_fallthru
          _
        // Predicated region
        $region53: #{tpu_custom_call.1} parent=11 // pred_check
          %p431 = pneg %p297
        $region54: #{tpu_custom_call.1} parent=11 // pred_check_branch
          %433 = sbr.rel (%p431) target = $region56
        $region55: #{tpu_custom_call.1} parent=11 // pred_region
          %s435 = ssub.s32 8192, 8192
          %436 = vsyncadd [#allocation16], %s435
          %s437 = sshll.u32 [#allocation15], 4
          %s438 = int_to_ptr.vmem [resolvable:$true] %s437
          %443 = dma.hbm_to_vmem [thread:$0]  %s11, 8192, %s438, [#allocation16], 128, 128, 8
        $region56: #{tpu_custom_call.1} parent=11 // pred_fallthru
          _
        // Predicated region
        $region57: #{tpu_custom_call.1} parent=11 // pred_check
          %p444 = pneg %p318
        $region58: #{tpu_custom_call.1} parent=11 // pred_check_branch
          %446 = sbr.rel (%p444) target = $region60
        $region59: #{tpu_custom_call.1} parent=11 // pred_region
          _
        $region60: #{tpu_custom_call.1} parent=11 // pred_fallthru
          _
      $region12: #{tpu_custom_call.1} parent=5 // pred_fallthru
        _
      %p447 = scmp.lt.s32.totalorder %s28, 4
      // Predicated region
      $region61: #{tpu_custom_call.1} parent=5 // pred_check
        %p448 = pneg %p447
      $region62: #{tpu_custom_call.1} parent=5 // pred_check_branch
        %450 = sbr.rel (%p448) target = $region64
      $region63: #{tpu_custom_call.1} parent=5 // pred_region
        // Predicated region
        $region65: #{tpu_custom_call.1} parent=63 // pred_check
          %p451 = pneg %p60
        $region66: #{tpu_custom_call.1} parent=63 // pred_check_branch
          %453 = sbr.rel (%p451) target = $region68
        $region67: #{tpu_custom_call.1} parent=63 // pred_region
          %s454 = sand.u32 %s50, 1
          %s455 = scalar_lea.sflag [#allocation7], %s454
          %s456 = sand.u32 %s50, 1
          %s457 = smul.addr %s456, 16
          %s458 = scalar_lea.vmem [#allocation6], %s457
          %s460 = ssub.s32 256, 256
          %461 = vsyncadd %s455, %s460
          %s462 = smul.addr %s35, 2
          %s463 = smul.addr %s462, 128
          %s464 = scalar_lea.hbm %s0, %s463
          %s465 = sshll.u32 %s458, 4
          %s466 = int_to_ptr.vmem [resolvable:$true] %s465
          %471 = dma.hbm_to_vmem [thread:$0]  %s464, 256, %s466, %s455, 128, 128, 8
        $region68: #{tpu_custom_call.1} parent=63 // pred_fallthru
          _
      $region64: #{tpu_custom_call.1} parent=5 // pred_fallthru
        _
      %p472 = scmp.le.s32.totalorder 1, %s28
      %p473 = scmp.lt.s32.totalorder %s28, 5
      %p474 = pnand %p472, %p473
      %p475 = pneg %p474
      // Predicated region
      $region69: #{tpu_custom_call.1} parent=5 // pred_check
        _
      $region70: #{tpu_custom_call.1} parent=5 // pred_check_branch
        %477 = sbr.rel (%p474) target = $region72
      $region71: #{tpu_custom_call.1} parent=5 // pred_region
        %s478 = ssub.s32 %s28, 1
        %s479 = sand.u32 %s53, 1
        %s480 = scalar_lea.sflag [#allocation7], %s479
        %s481 = sand.u32 %s53, 1
        %s482 = smul.addr %s481, 16
        %s483 = scalar_lea.vmem [#allocation6], %s482
        // Predicated region
        $region73: #{tpu_custom_call.1} parent=71 // pred_check
          %p484 = pneg %p66
        $region74: #{tpu_custom_call.1} parent=71 // pred_check_branch
          %486 = sbr.rel (%p484) target = $region76
        $region75: #{tpu_custom_call.1} parent=71 // pred_region
          %487 = dma.done %s480, 256
        $region76: #{tpu_custom_call.1} parent=71 // pred_fallthru
          _
        // Predicated region
        $region77: #{tpu_custom_call.1} parent=71 // pred_check
          %p488 = pneg %p129
        $region78: #{tpu_custom_call.1} parent=71 // pred_check_branch
          %490 = sbr.rel (%p488) target = $region80
        $region79: #{tpu_custom_call.1} parent=71 // pred_region
          %491 = dma.done [#allocation10], 2048
        $region80: #{tpu_custom_call.1} parent=71 // pred_fallthru
          _
        // Predicated region
        $region81: #{tpu_custom_call.1} parent=71 // pred_check
          %p492 = pneg %p150
        $region82: #{tpu_custom_call.1} parent=71 // pred_check_branch
          %494 = sbr.rel (%p492) target = $region84
        $region83: #{tpu_custom_call.1} parent=71 // pred_region
          %495 = dma.done [#allocation10], 4096
        $region84: #{tpu_custom_call.1} parent=71 // pred_fallthru
          _
        // Predicated region
        $region85: #{tpu_custom_call.1} parent=71 // pred_check
          %p496 = pneg %p171
        $region86: #{tpu_custom_call.1} parent=71 // pred_check_branch
          %498 = sbr.rel (%p496) target = $region88
        $region87: #{tpu_custom_call.1} parent=71 // pred_region
          %499 = dma.done [#allocation13], 2048
        $region88: #{tpu_custom_call.1} parent=71 // pred_fallthru
          _
        // Predicated region
        $region89: #{tpu_custom_call.1} parent=71 // pred_check
          %p500 = pneg %p255
        $region90: #{tpu_custom_call.1} parent=71 // pred_check_branch
          %502 = sbr.rel (%p500) target = $region92
        $region91: #{tpu_custom_call.1} parent=71 // pred_region
          %503 = dma.done [#allocation13], 8192
        $region92: #{tpu_custom_call.1} parent=71 // pred_fallthru
          _
        // Predicated region
        $region93: #{tpu_custom_call.1} parent=71 // pred_check
          %p504 = pneg %p297
        $region94: #{tpu_custom_call.1} parent=71 // pred_check_branch
          %506 = sbr.rel (%p504) target = $region96
        $region95: #{tpu_custom_call.1} parent=71 // pred_region
          %507 = dma.done [#allocation16], 8192
        $region96: #{tpu_custom_call.1} parent=71 // pred_fallthru
          _
        %s508 = sand.u32 %s53, 1
        %s509 = scalar_lea.sflag [#allocation7], %s508
        %s510 = sand.u32 %s53, 1
        %s511 = smul.addr %s510, 16
        %s512 = scalar_lea.vmem [#allocation6], %s511
        %p513 = pneg %p66
        %p514 = pneg %p63
        %p515 = pneg %p87
        %p516 = pneg %p84
        %p517 = pneg %p108
        %p518 = pneg %p105
        %p519 = pneg %p129
        %p520 = pneg %p126
        %p521 = pneg %p150
        %p522 = pneg %p147
        %p523 = pneg %p171
        %p524 = pneg %p168
        %p525 = pneg %p192
        %p526 = pneg %p189
        %p527 = pneg %p213
        %p528 = pneg %p210
        %p529 = pneg %p234
        %p530 = pneg %p231
        %p531 = pneg %p255
        %p532 = pneg %p252
        %p533 = pneg %p276
        %p534 = pneg %p273
        %p535 = pneg %p297
        %p536 = pneg %p294
        %p537 = pneg %p318
        %p538 = pneg %p315
        %p539 = pneg %p346
        %p540 = pneg %p343
        %s541 = sand.u32 %s333, 1
        %s542 = scalar_lea.sflag [#allocation8], %s541
        %s543 = sand.u32 %s333, 1
        %s544 = smul.addr %s543, 8
        %s545 = scalar_lea.vmem [#allocation17], %s544
        %p546 = scmp.eq.s32.totalorder %s38, 0
        // Predicated region
        $region97: #{tpu_custom_call.1} parent=71 // pred_check
          %p547 = pneg %p546
        $region98: #{tpu_custom_call.1} parent=71 // pred_check_branch
          %549 = sbr.rel (%p547) target = $region100
        $region99: #{tpu_custom_call.1} parent=71 // pred_region
          %v550 = vld [vmem:[%s483] sm:$0xff]
          %v551 = vld [vmem:[%s483 + $0x8] sm:$0xff]
          %v552 = vld [vmem:[%s1] sm:$0x1]
          %v553 = vld [vmem:[%s2] sm:$0x1]
          %554 = vadd.xlane.f32.xlu0 %v550
          %v555 = vpop.xlane.xlu0 %554
          %556 = vadd.xlane.f32.xlu0 %v551
          %v557 = vpop.xlane.xlu0 %556
          %v558 = vrcp.pop 128.0
          %v559 = vmul.f32 %v555, %v558
          %v560 = vmul.f32 %v557, %v558
          %v561 = vsub.f32 %v550, %v559
          %v562 = vsub.f32 %v551, %v560
          %v563 = vmul.f32 %v561, %v561
          %v564 = vmul.f32 %v562, %v562
          %565 = vadd.xlane.f32.xlu0 %v563
          %v566 = vpop.xlane.xlu0 %565
          %567 = vadd.xlane.f32.xlu0 %v564
          %v568 = vpop.xlane.xlu0 %567
          %v569 = vmul.f32 %v566, %v558
          %v570 = vmul.f32 %v568, %v558
          %v571 = vadd.f32 %v569, 1e-05
          %v572 = vadd.f32 %v570, 1e-05
          %v573 = vrsqrt.pop %v571
          %v574 = vrsqrt.pop %v572
          %v575 = vmul.f32 %v561, %v573
          %v576 = vmul.f32 %v562, %v574
          %v578 = vlaneseq
          %v579 = vshrl.u32 %v578, 7
          %v580 = vsub.s32 0, %v579
          %v581 = vrot.slane %v552, %v580
          %v583 = vmul.f32 %v575, %v581
          %v584 = vmul.f32 %v576, %v581
          %v586 = vlaneseq
          %v587 = vshrl.u32 %v586, 7
          %v588 = vsub.s32 0, %v587
          %v589 = vrot.slane %v553, %v588
          %v591 = vadd.f32 %v583, %v589
          %v592 = vadd.f32 %v584, %v589
          %v593 = vld [vmem:[#allocation11] sm:$0xff]
          %v594 = vld [vmem:[#allocation11 + $0x8] sm:$0xff]
          %v595 = vld [vmem:[#allocation11 + $0x10] sm:$0xff]
          %v596 = vld [vmem:[#allocation11 + $0x18] sm:$0xff]
          %v597 = vld [vmem:[#allocation11 + $0x20] sm:$0xff]
          %v598 = vld [vmem:[#allocation11 + $0x28] sm:$0xff]
          %v599 = vld [vmem:[#allocation11 + $0x30] sm:$0xff]
          %v600 = vld [vmem:[#allocation11 + $0x38] sm:$0xff]
          %v601 = vld [vmem:[#allocation11 + $0x40] sm:$0xff]
          %v602 = vld [vmem:[#allocation11 + $0x48] sm:$0xff]
          %v603 = vld [vmem:[#allocation11 + $0x50] sm:$0xff]
          %v604 = vld [vmem:[#allocation11 + $0x58] sm:$0xff]
          %v605 = vld [vmem:[#allocation11 + $0x60] sm:$0xff]
          %v606 = vld [vmem:[#allocation11 + $0x68] sm:$0xff]
          %v607 = vld [vmem:[#allocation11 + $0x70] sm:$0xff]
          %v608 = vld [vmem:[#allocation11 + $0x78] sm:$0xff]
          %v609 = vld [vmem:[#allocation11 + $0x80] sm:$0xff]
          %v610 = vld [vmem:[#allocation11 + $0x88] sm:$0xff]
          %v611 = vld [vmem:[#allocation11 + $0x90] sm:$0xff]
          %v612 = vld [vmem:[#allocation11 + $0x98] sm:$0xff]
          %v613 = vld [vmem:[#allocation11 + $0xa0] sm:$0xff]
          %v614 = vld [vmem:[#allocation11 + $0xa8] sm:$0xff]
          %v615 = vld [vmem:[#allocation11 + $0xb0] sm:$0xff]
          %v616 = vld [vmem:[#allocation11 + $0xb8] sm:$0xff]
          %v617 = vld [vmem:[#allocation11 + $0xc0] sm:$0xff]
          %v618 = vld [vmem:[#allocation11 + $0xc8] sm:$0xff]
          %v619 = vld [vmem:[#allocation11 + $0xd0] sm:$0xff]
          %v620 = vld [vmem:[#allocation11 + $0xd8] sm:$0xff]
          %v621 = vld [vmem:[#allocation11 + $0xe0] sm:$0xff]
          %v622 = vld [vmem:[#allocation11 + $0xe8] sm:$0xff]
          %v623 = vld [vmem:[#allocation11 + $0xf0] sm:$0xff]
          %v624 = vld [vmem:[#allocation11 + $0xf8] sm:$0xff]
          %625 = vmatprep.subr.mxu0 %v594
          %626 = vmatpush1.msra.mxu0 %v593
          %627 = vmatprep.subr.mxu0 %v596
          %628 = vmatpush1.msra.mxu0 %v595
          %629 = vmatprep.subr.mxu0 %v598
          %630 = vmatpush1.msra.mxu0 %v597
          %631 = vmatprep.subr.mxu0 %v600
          %632 = vmatpush1.msra.mxu0 %v599
          %633 = vmatprep.subr.mxu0 %v602
          %634 = vmatpush1.msra.mxu0 %v601
          %635 = vmatprep.subr.mxu0 %v604
          %636 = vmatpush1.msra.mxu0 %v603
          %637 = vmatprep.subr.mxu0 %v606
          %638 = vmatpush1.msra.mxu0 %v605
          %639 = vmatprep.subr.mxu0 %v608
          %640 = vmatpush1.msra.mxu0 %v607
          %641 = vmatprep.subr.mxu0 %v610
          %642 = vmatpush1.msra.mxu0 %v609
          %643 = vmatprep.subr.mxu0 %v612
          %644 = vmatpush1.msra.mxu0 %v611
          %645 = vmatprep.subr.mxu0 %v614
          %646 = vmatpush1.msra.mxu0 %v613
          %647 = vmatprep.subr.mxu0 %v616
          %648 = vmatpush1.msra.mxu0 %v615
          %649 = vmatprep.subr.mxu0 %v618
          %650 = vmatpush1.msra.mxu0 %v617
          %651 = vmatprep.subr.mxu0 %v620
          %652 = vmatpush1.msra.mxu0 %v619
          %653 = vmatprep.subr.mxu0 %v622
          %654 = vmatpush1.msra.mxu0 %v621
          %655 = vmatprep.subr.mxu0 %v624
          %656 = vmatpush1.msra.mxu0 %v623
          %657 = vmatprep.subr.mxu0 0.0
          %658 = vmatpush1.msra.mxu0 0.0
          %659 = vmatprep.subr.mxu0 0.0
          %660 = vmatpush1.msra.mxu0 0.0
          %661 = vmatprep.subr.mxu0 0.0
          %662 = vmatpush1.msra.mxu0 0.0
          %663 = vmatprep.subr.mxu0 0.0
          %664 = vmatpush1.msra.mxu0 0.0
          %665 = vmatprep.subr.mxu0 0.0
          %666 = vmatpush1.msra.mxu0 0.0
          %667 = vmatprep.subr.mxu0 0.0
          %668 = vmatpush1.msra.mxu0 0.0
          %669 = vmatprep.subr.mxu0 0.0
          %670 = vmatpush1.msra.mxu0 0.0
          %671 = vmatprep.subr.mxu0 0.0
          %672 = vmatpush1.msra.mxu0 0.0
          %673 = vmatprep.subr.mxu0 0.0
          %674 = vmatpush1.msra.mxu0 0.0
          %675 = vmatprep.subr.mxu0 0.0
          %676 = vmatpush1.msra.mxu0 0.0
          %677 = vmatprep.subr.mxu0 0.0
          %678 = vmatpush1.msra.mxu0 0.0
          %679 = vmatprep.subr.mxu0 0.0
          %680 = vmatpush1.msra.mxu0 0.0
          %681 = vmatprep.subr.mxu0 0.0
          %682 = vmatpush1.msra.mxu0 0.0
          %683 = vmatprep.subr.mxu0 0.0
          %684 = vmatpush1.msra.mxu0 0.0
          %685 = vmatprep.subr.mxu0 0.0
          %686 = vmatpush1.msra.mxu0 0.0
          %687 = vmatprep.subr.mxu0 0.0
          %688 = vmatpush1.msra.mxu0 0.0
          %689 = vmatprep.mubr.f32.mxu0 0.0
          %690 = vmatmul.mubr.f32.gmra.mrb[0].mxu0 %v591
          %v691 = vpop.f32.mrb[0].mxu0
          %v692 = vadd.f32 0.0, %v691
          %v693 = vpop.f32.mrb[0].mxu0
          %v694 = vadd.f32 0.0, %v693
          %695 = vmatprep.mubr.f32.mxu0 0.0
          %696 = vmatmul.mubr.f32.gmra.mrb[0].mxu0 %v592
          %v697 = vpop.f32.mrb[0].mxu0
          %v698 = vadd.f32 0.0, %v697
          %v699 = vpop.f32.mrb[0].mxu0
          %v700 = vadd.f32 0.0, %v699
          %701 = vdwg.mxu0
          %vm702 = vcmask 130048
          %703 = vst.msk [vmem:[#allocation2] sm:$0xff] %vm702, %v692
          %704 = vst.msk [vmem:[#allocation2 + $0x8] sm:$0xff] %vm702, %v698
          %705 = vst.msk [vmem:[#allocation3] sm:$0xff] %vm702, %v694
          %706 = vst.msk [vmem:[#allocation3 + $0x8] sm:$0xff] %vm702, %v700
          %709 = vrot.lane.b32.xlu0 %v692, 112
          %v710 = vpop.permute.xlu0 %709
          %711 = vrot.lane.b32.xlu0 %v698, 112
          %v712 = vpop.permute.xlu0 %711
          %s715 = scalar_lea.vmem [#allocation2], 16
          %716 = vst.msk [vmem:[%s715] sm:$0xff] %vm702, %v710
          %717 = vst.msk [vmem:[%s715 + $0x8] sm:$0xff] %vm702, %v712
          %720 = vrot.lane.b32.xlu0 %v694, 112
          %v721 = vpop.permute.xlu0 %720
          %722 = vrot.lane.b32.xlu0 %v700, 112
          %v723 = vpop.permute.xlu0 %722
          %s726 = scalar_lea.vmem [#allocation3], 16
          %727 = vst.msk [vmem:[%s726] sm:$0xff] %vm702, %v721
          %728 = vst.msk [vmem:[%s726 + $0x8] sm:$0xff] %vm702, %v723
          %729 = vrot.lane.b32.xlu0 %v692, 96
          %v730 = vpop.permute.xlu0 %729
          %731 = vrot.lane.b32.xlu0 %v698, 96
          %v732 = vpop.permute.xlu0 %731
          %s735 = scalar_lea.vmem [#allocation2], 32
          %736 = vst.msk [vmem:[%s735] sm:$0xff] %vm702, %v730
          %737 = vst.msk [vmem:[%s735 + $0x8] sm:$0xff] %vm702, %v732
          %738 = vrot.lane.b32.xlu0 %v694, 96
          %v739 = vpop.permute.xlu0 %738
          %740 = vrot.lane.b32.xlu0 %v700, 96
          %v741 = vpop.permute.xlu0 %740
          %s744 = scalar_lea.vmem [#allocation3], 32
          %745 = vst.msk [vmem:[%s744] sm:$0xff] %vm702, %v739
          %746 = vst.msk [vmem:[%s744 + $0x8] sm:$0xff] %vm702, %v741
          %747 = vrot.lane.b32.xlu0 %v692, 80
          %v748 = vpop.permute.xlu0 %747
          %749 = vrot.lane.b32.xlu0 %v698, 80
          %v750 = vpop.permute.xlu0 %749
          %s753 = scalar_lea.vmem [#allocation2], 48
          %754 = vst.msk [vmem:[%s753] sm:$0xff] %vm702, %v748
          %755 = vst.msk [vmem:[%s753 + $0x8] sm:$0xff] %vm702, %v750
          %756 = vrot.lane.b32.xlu0 %v694, 80
          %v757 = vpop.permute.xlu0 %756
          %758 = vrot.lane.b32.xlu0 %v700, 80
          %v759 = vpop.permute.xlu0 %758
          %s762 = scalar_lea.vmem [#allocation3], 48
          %763 = vst.msk [vmem:[%s762] sm:$0xff] %vm702, %v757
          %764 = vst.msk [vmem:[%s762 + $0x8] sm:$0xff] %vm702, %v759
          %765 = vrot.lane.b32.xlu0 %v692, 64
          %v766 = vpop.permute.xlu0 %765
          %767 = vrot.lane.b32.xlu0 %v698, 64
          %v768 = vpop.permute.xlu0 %767
          %s771 = scalar_lea.vmem [#allocation2], 64
          %772 = vst.msk [vmem:[%s771] sm:$0xff] %vm702, %v766
          %773 = vst.msk [vmem:[%s771 + $0x8] sm:$0xff] %vm702, %v768
          %774 = vrot.lane.b32.xlu0 %v694, 64
          %v775 = vpop.permute.xlu0 %774
          %776 = vrot.lane.b32.xlu0 %v700, 64
          %v777 = vpop.permute.xlu0 %776
          %s780 = scalar_lea.vmem [#allocation3], 64
          %781 = vst.msk [vmem:[%s780] sm:$0xff] %vm702, %v775
          %782 = vst.msk [vmem:[%s780 + $0x8] sm:$0xff] %vm702, %v777
          %783 = vrot.lane.b32.xlu0 %v692, 48
          %v784 = vpop.permute.xlu0 %783
          %785 = vrot.lane.b32.xlu0 %v698, 48
          %v786 = vpop.permute.xlu0 %785
          %s789 = scalar_lea.vmem [#allocation2], 80
          %790 = vst.msk [vmem:[%s789] sm:$0xff] %vm702, %v784
          %791 = vst.msk [vmem:[%s789 + $0x8] sm:$0xff] %vm702, %v786
          %792 = vrot.lane.b32.xlu0 %v694, 48
          %v793 = vpop.permute.xlu0 %792
          %794 = vrot.lane.b32.xlu0 %v700, 48
          %v795 = vpop.permute.xlu0 %794
          %s798 = scalar_lea.vmem [#allocation3], 80
          %799 = vst.msk [vmem:[%s798] sm:$0xff] %vm702, %v793
          %800 = vst.msk [vmem:[%s798 + $0x8] sm:$0xff] %vm702, %v795
          %801 = vrot.lane.b32.xlu0 %v692, 32
          %v802 = vpop.permute.xlu0 %801
          %803 = vrot.lane.b32.xlu0 %v698, 32
          %v804 = vpop.permute.xlu0 %803
          %s807 = scalar_lea.vmem [#allocation2], 96
          %808 = vst.msk [vmem:[%s807] sm:$0xff] %vm702, %v802
          %809 = vst.msk [vmem:[%s807 + $0x8] sm:$0xff] %vm702, %v804
          %810 = vrot.lane.b32.xlu0 %v694, 32
          %v811 = vpop.permute.xlu0 %810
          %812 = vrot.lane.b32.xlu0 %v700, 32
          %v813 = vpop.permute.xlu0 %812
          %s816 = scalar_lea.vmem [#allocation3], 96
          %817 = vst.msk [vmem:[%s816] sm:$0xff] %vm702, %v811
          %818 = vst.msk [vmem:[%s816 + $0x8] sm:$0xff] %vm702, %v813
          %819 = vrot.lane.b32.xlu0 %v692, 16
          %v820 = vpop.permute.xlu0 %819
          %821 = vrot.lane.b32.xlu0 %v698, 16
          %v822 = vpop.permute.xlu0 %821
          %s825 = scalar_lea.vmem [#allocation2], 112
          %826 = vst.msk [vmem:[%s825] sm:$0xff] %vm702, %v820
          %827 = vst.msk [vmem:[%s825 + $0x8] sm:$0xff] %vm702, %v822
          %828 = vrot.lane.b32.xlu0 %v694, 16
          %v829 = vpop.permute.xlu0 %828
          %830 = vrot.lane.b32.xlu0 %v700, 16
          %v831 = vpop.permute.xlu0 %830
          %s834 = scalar_lea.vmem [#allocation3], 112
          %835 = vst.msk [vmem:[%s834] sm:$0xff] %vm702, %v829
          %836 = vst.msk [vmem:[%s834 + $0x8] sm:$0xff] %vm702, %v831
        $region100: #{tpu_custom_call.1} parent=71 // pred_fallthru
          _
        %s837 = smul.u32 %s38, 8
        %s838 = scalar_lea.vmem %s483, %s837 [#allocation6]
        %v839 = vld [vmem:[%s838] sm:$0xff]
        %v840 = vld [vmem:[%s1] sm:$0x1]
        %v841 = vld [vmem:[%s2] sm:$0x1]
        %842 = vadd.xlane.f32.xlu0 %v839
        %v843 = vpop.xlane.xlu0 %842
        %v844 = vrcp.pop 128.0
        %v845 = vmul.f32 %v843, %v844
        %v846 = vsub.f32 %v839, %v845
        %v847 = vmul.f32 %v846, %v846
        %848 = vadd.xlane.f32.xlu0 %v847
        %v849 = vpop.xlane.xlu0 %848
        %v850 = vmul.f32 %v849, %v844
        %v851 = vadd.f32 %v850, 1e-05
        %v852 = vrsqrt.pop %v851
        %v853 = vmul.f32 %v846, %v852
        %v855 = vlaneseq
        %v856 = vshrl.u32 %v855, 7
        %v857 = vsub.s32 0, %v856
        %v858 = vrot.slane %v840, %v857
        %v860 = vmul.f32 %v853, %v858
        %v862 = vlaneseq
        %v863 = vshrl.u32 %v862, 7
        %v864 = vsub.s32 0, %v863
        %v865 = vrot.slane %v841, %v864
        %v867 = vadd.f32 %v860, %v865
        %v868 = vld [vmem:[#allocation9] sm:$0xff]
        %v869 = vld [vmem:[#allocation9 + $0x8] sm:$0xff]
        %v870 = vld [vmem:[#allocation9 + $0x10] sm:$0xff]
        %v871 = vld [vmem:[#allocation9 + $0x18] sm:$0xff]
        %v872 = vld [vmem:[#allocation9 + $0x20] sm:$0xff]
        %v873 = vld [vmem:[#allocation9 + $0x28] sm:$0xff]
        %v874 = vld [vmem:[#allocation9 + $0x30] sm:$0xff]
        %v875 = vld [vmem:[#allocation9 + $0x38] sm:$0xff]
        %v876 = vld [vmem:[#allocation9 + $0x40] sm:$0xff]
        %v877 = vld [vmem:[#allocation9 + $0x48] sm:$0xff]
        %v878 = vld [vmem:[#allocation9 + $0x50] sm:$0xff]
        %v879 = vld [vmem:[#allocation9 + $0x58] sm:$0xff]
        %v880 = vld [vmem:[#allocation9 + $0x60] sm:$0xff]
        %v881 = vld [vmem:[#allocation9 + $0x68] sm:$0xff]
        %v882 = vld [vmem:[#allocation9 + $0x70] sm:$0xff]
        %v883 = vld [vmem:[#allocation9 + $0x78] sm:$0xff]
        %884 = vmatprep.subr.mxu0 0.0
        %885 = vmatpush1.msra.mxu0 %v868
        %886 = vmatprep.subr.mxu0 0.0
        %887 = vmatpush1.msra.mxu0 %v869
        %888 = vmatprep.subr.mxu0 0.0
        %889 = vmatpush1.msra.mxu0 %v870
        %890 = vmatprep.subr.mxu0 0.0
        %891 = vmatpush1.msra.mxu0 %v871
        %892 = vmatprep.subr.mxu0 0.0
        %893 = vmatpush1.msra.mxu0 %v872
        %894 = vmatprep.subr.mxu0 0.0
        %895 = vmatpush1.msra.mxu0 %v873
        %896 = vmatprep.subr.mxu0 0.0
        %897 = vmatpush1.msra.mxu0 %v874
        %898 = vmatprep.subr.mxu0 0.0
        %899 = vmatpush1.msra.mxu0 %v875
        %900 = vmatprep.subr.mxu0 0.0
        %901 = vmatpush1.msra.mxu0 %v876
        %902 = vmatprep.subr.mxu0 0.0
        %903 = vmatpush1.msra.mxu0 %v877
        %904 = vmatprep.subr.mxu0 0.0
        %905 = vmatpush1.msra.mxu0 %v878
        %906 = vmatprep.subr.mxu0 0.0
        %907 = vmatpush1.msra.mxu0 %v879
        %908 = vmatprep.subr.mxu0 0.0
        %909 = vmatpush1.msra.mxu0 %v880
        %910 = vmatprep.subr.mxu0 0.0
        %911 = vmatpush1.msra.mxu0 %v881
        %912 = vmatprep.subr.mxu0 0.0
        %913 = vmatpush1.msra.mxu0 %v882
        %914 = vmatprep.subr.mxu0 0.0
        %915 = vmatpush1.msra.mxu0 %v883
        %916 = vmatprep.subr.mxu0 0.0
        %917 = vmatpush1.msra.mxu0 0.0
        %918 = vmatprep.subr.mxu0 0.0
        %919 = vmatpush1.msra.mxu0 0.0
        %920 = vmatprep.subr.mxu0 0.0
        %921 = vmatpush1.msra.mxu0 0.0
        %922 = vmatprep.subr.mxu0 0.0
        %923 = vmatpush1.msra.mxu0 0.0
        %924 = vmatprep.subr.mxu0 0.0
        %925 = vmatpush1.msra.mxu0 0.0
        %926 = vmatprep.subr.mxu0 0.0
        %927 = vmatpush1.msra.mxu0 0.0
        %928 = vmatprep.subr.mxu0 0.0
        %929 = vmatpush1.msra.mxu0 0.0
        %930 = vmatprep.subr.mxu0 0.0
        %931 = vmatpush1.msra.mxu0 0.0
        %932 = vmatprep.subr.mxu0 0.0
        %933 = vmatpush1.msra.mxu0 0.0
        %934 = vmatprep.subr.mxu0 0.0
        %935 = vmatpush1.msra.mxu0 0.0
        %936 = vmatprep.subr.mxu0 0.0
        %937 = vmatpush1.msra.mxu0 0.0
        %938 = vmatprep.subr.mxu0 0.0
        %939 = vmatpush1.msra.mxu0 0.0
        %940 = vmatprep.subr.mxu0 0.0
        %941 = vmatpush1.msra.mxu0 0.0
        %942 = vmatprep.subr.mxu0 0.0
        %943 = vmatpush1.msra.mxu0 0.0
        %944 = vmatprep.subr.mxu0 0.0
        %945 = vmatpush1.msra.mxu0 0.0
        %946 = vmatprep.subr.mxu0 0.0
        %947 = vmatpush1.msra.mxu0 0.0
        %948 = vmatprep.mubr.f32.mxu0 0.0
        %949 = vmatmul.mubr.f32.gmra.mrb[0].mxu0 %v867
        %v950 = vpop.f32.mrb[0].mxu0
        %v951 = vadd.f32 0.0, %v950
        %v952 = vpop.f32.mrb[0].mxu0
        %953 = vdwg.mxu0
        %v954 = vmul.f32 %v951, 0.25
        %vm955 = vcmask 130048
        %956 = vst.msk [vmem:[#allocation4] sm:$0xff] %vm955, %v954
        %958 = vrot.lane.b32.xlu0 %v954, 112
        %v959 = vpop.permute.xlu0 %958
        %s961 = scalar_lea.vmem [#allocation4], 8
        %962 = vst.msk [vmem:[%s961] sm:$0xff] %vm955, %v959
        %963 = vrot.lane.b32.xlu0 %v954, 96
        %v964 = vpop.permute.xlu0 %963
        %s966 = scalar_lea.vmem [#allocation4], 16
        %967 = vst.msk [vmem:[%s966] sm:$0xff] %vm955, %v964
        %968 = vrot.lane.b32.xlu0 %v954, 80
        %v969 = vpop.permute.xlu0 %968
        %s971 = scalar_lea.vmem [#allocation4], 24
        %972 = vst.msk [vmem:[%s971] sm:$0xff] %vm955, %v969
        %973 = vrot.lane.b32.xlu0 %v954, 64
        %v974 = vpop.permute.xlu0 %973
        %s976 = scalar_lea.vmem [#allocation4], 32
        %977 = vst.msk [vmem:[%s976] sm:$0xff] %vm955, %v974
        %978 = vrot.lane.b32.xlu0 %v954, 48
        %v979 = vpop.permute.xlu0 %978
        %s981 = scalar_lea.vmem [#allocation4], 40
        %982 = vst.msk [vmem:[%s981] sm:$0xff] %vm955, %v979
        %983 = vrot.lane.b32.xlu0 %v954, 32
        %v984 = vpop.permute.xlu0 %983
        %s986 = scalar_lea.vmem [#allocation4], 48
        %987 = vst.msk [vmem:[%s986] sm:$0xff] %vm955, %v984
        %988 = vrot.lane.b32.xlu0 %v954, 16
        %v989 = vpop.permute.xlu0 %988
        %s991 = scalar_lea.vmem [#allocation4], 56
        %992 = vst.msk [vmem:[%s991] sm:$0xff] %vm955, %v989
        %v993 = vld [vmem:[#allocation4] sm:$0xff]
        %v994 = vld [vmem:[#allocation4 + $0x8] sm:$0xff]
        %v995 = vld [vmem:[#allocation4 + $0x10] sm:$0xff]
        %v996 = vld [vmem:[#allocation4 + $0x18] sm:$0xff]
        %v997 = vld [vmem:[#allocation4 + $0x20] sm:$0xff]
        %v998 = vld [vmem:[#allocation4 + $0x28] sm:$0xff]
        %v999 = vld [vmem:[#allocation4 + $0x30] sm:$0xff]
        %v1000 = vld [vmem:[#allocation4 + $0x38] sm:$0xff]
        %v1001 = vld [vmem:[#allocation2] sm:$0xff]
        %v1002 = vld [vmem:[#allocation2 + $0x8] sm:$0xff]
        %v1003 = vld [vmem:[#allocation2 + $0x10] sm:$0xff]
        %v1004 = vld [vmem:[#allocation2 + $0x18] sm:$0xff]
        %v1005 = vld [vmem:[#allocation2 + $0x20] sm:$0xff]
        %v1006 = vld [vmem:[#allocation2 + $0x28] sm:$0xff]
        %v1007 = vld [vmem:[#allocation2 + $0x30] sm:$0xff]
        %v1008 = vld [vmem:[#allocation2 + $0x38] sm:$0xff]
        %v1009 = vld [vmem:[#allocation2 + $0x40] sm:$0xff]
        %v1010 = vld [vmem:[#allocation2 + $0x48] sm:$0xff]
        %v1011 = vld [vmem:[#allocation2 + $0x50] sm:$0xff]
        %v1012 = vld [vmem:[#allocation2 + $0x58] sm:$0xff]
        %v1013 = vld [vmem:[#allocation2 + $0x60] sm:$0xff]
        %v1014 = vld [vmem:[#allocation2 + $0x68] sm:$0xff]
        %v1015 = vld [vmem:[#allocation2 + $0x70] sm:$0xff]
        %v1016 = vld [vmem:[#allocation2 + $0x78] sm:$0xff]
        %v1018 = vsel %vm955, %v993, 0
        %v1021 = vsel %vm955, %v1001, 0
        %v1024 = vsel %vm955, %v1002, 0
        %1026 = vmatprep.subr.mxu0 0.0
        %1027 = vmatpush1.xpose.msra.mxu0 %v1021
        %1028 = vmatprep.subr.mxu0 0.0
        %1029 = vmatpush1.xpose.msra.mxu0 %v1024
        %1030 = vmatprep.subr.mxu0 0.0
        %1031 = vmatpush1.xpose.msra.mxu0 0.0
        %1032 = vmatprep.subr.mxu0 0.0
        %1033 = vmatpush1.xpose.msra.mxu0 0.0
        %1034 = vmatprep.subr.mxu0 0.0
        %1035 = vmatpush1.xpose.msra.mxu0 0.0
        %1036 = vmatprep.subr.mxu0 0.0
        %1037 = vmatpush1.xpose.msra.mxu0 0.0
        %1038 = vmatprep.subr.mxu0 0.0
        %1039 = vmatpush1.xpose.msra.mxu0 0.0
        %1040 = vmatprep.subr.mxu0 0.0
        %1041 = vmatpush1.xpose.msra.mxu0 0.0
        %1042 = vmatprep.subr.mxu0 0.0
        %1043 = vmatpush1.xpose.msra.mxu0 0.0
        %1044 = vmatprep.subr.mxu0 0.0
        %1045 = vmatpush1.xpose.msra.mxu0 0.0
        %1046 = vmatprep.subr.mxu0 0.0
        %1047 = vmatpush1.xpose.msra.mxu0 0.0
        %1048 = vmatprep.subr.mxu0 0.0
        %1049 = vmatpush1.xpose.msra.mxu0 0.0
        %1050 = vmatprep.subr.mxu0 0.0
        %1051 = vmatpush1.xpose.msra.mxu0 0.0
        %1052 = vmatprep.subr.mxu0 0.0
        %1053 = vmatpush1.xpose.msra.mxu0 0.0
        %1054 = vmatprep.subr.mxu0 0.0
        %1055 = vmatpush1.xpose.msra.mxu0 0.0
        %1056 = vmatprep.subr.mxu0 0.0
        %1057 = vmatpush1.xpose.msra.mxu0 0.0
        %1058 = vmatprep.subr.mxu0 0.0
        %1059 = vmatpush1.xpose.msra.mxu0 0.0
        %1060 = vmatprep.subr.mxu0 0.0
        %1061 = vmatpush1.xpose.msra.mxu0 0.0
        %1062 = vmatprep.subr.mxu0 0.0
        %1063 = vmatpush1.xpose.msra.mxu0 0.0
        %1064 = vmatprep.subr.mxu0 0.0
        %1065 = vmatpush1.xpose.msra.mxu0 0.0
        %1066 = vmatprep.subr.mxu0 0.0
        %1067 = vmatpush1.xpose.msra.mxu0 0.0
        %1068 = vmatprep.subr.mxu0 0.0
        %1069 = vmatpush1.xpose.msra.mxu0 0.0
        %1070 = vmatprep.subr.mxu0 0.0
        %1071 = vmatpush1.xpose.msra.mxu0 0.0
        %1072 = vmatprep.subr.mxu0 0.0
        %1073 = vmatpush1.xpose.msra.mxu0 0.0
        %1074 = vmatprep.subr.mxu0 0.0
        %1075 = vmatpush1.xpose.msra.mxu0 0.0
        %1076 = vmatprep.subr.mxu0 0.0
        %1077 = vmatpush1.xpose.msra.mxu0 0.0
        %1078 = vmatprep.subr.mxu0 0.0
        %1079 = vmatpush1.xpose.msra.mxu0 0.0
        %1080 = vmatprep.subr.mxu0 0.0
        %1081 = vmatpush1.xpose.msra.mxu0 0.0
        %1082 = vmatprep.subr.mxu0 0.0
        %1083 = vmatpush1.xpose.msra.mxu0 0.0
        %1084 = vmatprep.subr.mxu0 0.0
        %1085 = vmatpush1.xpose.msra.mxu0 0.0
        %1086 = vmatprep.subr.mxu0 0.0
        %1087 = vmatpush1.xpose.msra.mxu0 0.0
        %1088 = vmatprep.subr.mxu0 0.0
        %1089 = vmatpush1.xpose.msra.mxu0 0.0
        %1090 = vmatprep.mubr.f32.mxu0 0.0
        %1091 = vmatmul.mubr.f32.gmra.mrb[0].mxu0 %v1018
        %v1092 = vpop.f32.mrb[0].mxu0
        %v1093 = vadd.f32 0.0, %v1092
        %v1094 = vpop.f32.mrb[0].mxu0
        %1095 = vdwg.mxu0
        %v1097 = vsel %vm955, %v994, 0
        %v1100 = vsel %vm955, %v1003, 0
        %v1103 = vsel %vm955, %v1004, 0
        %1105 = vmatprep.subr.mxu0 0.0
        %1106 = vmatpush1.xpose.msra.mxu0 %v1100
        %1107 = vmatprep.subr.mxu0 0.0
        %1108 = vmatpush1.xpose.msra.mxu0 %v1103
        %1109 = vmatprep.subr.mxu0 0.0
        %1110 = vmatpush1.xpose.msra.mxu0 0.0
        %1111 = vmatprep.subr.mxu0 0.0
        %1112 = vmatpush1.xpose.msra.mxu0 0.0
        %1113 = vmatprep.subr.mxu0 0.0
        %1114 = vmatpush1.xpose.msra.mxu0 0.0
        %1115 = vmatprep.subr.mxu0 0.0
        %1116 = vmatpush1.xpose.msra.mxu0 0.0
        %1117 = vmatprep.subr.mxu0 0.0
        %1118 = vmatpush1.xpose.msra.mxu0 0.0
        %1119 = vmatprep.subr.mxu0 0.0
        %1120 = vmatpush1.xpose.msra.mxu0 0.0
        %1121 = vmatprep.subr.mxu0 0.0
        %1122 = vmatpush1.xpose.msra.mxu0 0.0
        %1123 = vmatprep.subr.mxu0 0.0
        %1124 = vmatpush1.xpose.msra.mxu0 0.0
        %1125 = vmatprep.subr.mxu0 0.0
        %1126 = vmatpush1.xpose.msra.mxu0 0.0
        %1127 = vmatprep.subr.mxu0 0.0
        %1128 = vmatpush1.xpose.msra.mxu0 0.0
        %1129 = vmatprep.subr.mxu0 0.0
        %1130 = vmatpush1.xpose.msra.mxu0 0.0
        %1131 = vmatprep.subr.mxu0 0.0
        %1132 = vmatpush1.xpose.msra.mxu0 0.0
        %1133 = vmatprep.subr.mxu0 0.0
        %1134 = vmatpush1.xpose.msra.mxu0 0.0
        %1135 = vmatprep.subr.mxu0 0.0
        %1136 = vmatpush1.xpose.msra.mxu0 0.0
        %1137 = vmatprep.subr.mxu0 0.0
        %1138 = vmatpush1.xpose.msra.mxu0 0.0
        %1139 = vmatprep.subr.mxu0 0.0
        %1140 = vmatpush1.xpose.msra.mxu0 0.0
        %1141 = vmatprep.subr.mxu0 0.0
        %1142 = vmatpush1.xpose.msra.mxu0 0.0
        %1143 = vmatprep.subr.mxu0 0.0
        %1144 = vmatpush1.xpose.msra.mxu0 0.0
        %1145 = vmatprep.subr.mxu0 0.0
        %1146 = vmatpush1.xpose.msra.mxu0 0.0
        %1147 = vmatprep.subr.mxu0 0.0
        %1148 = vmatpush1.xpose.msra.mxu0 0.0
        %1149 = vmatprep.subr.mxu0 0.0
        %1150 = vmatpush1.xpose.msra.mxu0 0.0
        %1151 = vmatprep.subr.mxu0 0.0
        %1152 = vmatpush1.xpose.msra.mxu0 0.0
        %1153 = vmatprep.subr.mxu0 0.0
        %1154 = vmatpush1.xpose.msra.mxu0 0.0
        %1155 = vmatprep.subr.mxu0 0.0
        %1156 = vmatpush1.xpose.msra.mxu0 0.0
        %1157 = vmatprep.subr.mxu0 0.0
        %1158 = vmatpush1.xpose.msra.mxu0 0.0
        %1159 = vmatprep.subr.mxu0 0.0
        %1160 = vmatpush1.xpose.msra.mxu0 0.0
        %1161 = vmatprep.subr.mxu0 0.0
        %1162 = vmatpush1.xpose.msra.mxu0 0.0
        %1163 = vmatprep.subr.mxu0 0.0
        %1164 = vmatpush1.xpose.msra.mxu0 0.0
        %1165 = vmatprep.subr.mxu0 0.0
        %1166 = vmatpush1.xpose.msra.mxu0 0.0
        %1167 = vmatprep.subr.mxu0 0.0
        %1168 = vmatpush1.xpose.msra.mxu0 0.0
        %1169 = vmatprep.mubr.f32.mxu0 0.0
        %1170 = vmatmul.mubr.f32.gmra.mrb[0].mxu0 %v1097
        %v1171 = vpop.f32.mrb[0].mxu0
        %v1172 = vadd.f32 0.0, %v1171
        %v1173 = vpop.f32.mrb[0].mxu0
        %1174 = vdwg.mxu0
        %v1176 = vsel %vm955, %v995, 0
        %v1179 = vsel %vm955, %v1005, 0
        %v1182 = vsel %vm955, %v1006, 0
        %1184 = vmatprep.subr.mxu0 0.0
        %1185 = vmatpush1.xpose.msra.mxu0 %v1179
        %1186 = vmatprep.subr.mxu0 0.0
        %1187 = vmatpush1.xpose.msra.mxu0 %v1182
        %1188 = vmatprep.subr.mxu0 0.0
        %1189 = vmatpush1.xpose.msra.mxu0 0.0
        %1190 = vmatprep.subr.mxu0 0.0
        %1191 = vmatpush1.xpose.msra.mxu0 0.0
        %1192 = vmatprep.subr.mxu0 0.0
        %1193 = vmatpush1.xpose.msra.mxu0 0.0
        %1194 = vmatprep.subr.mxu0 0.0
        %1195 = vmatpush1.xpose.msra.mxu0 0.0
        %1196 = vmatprep.subr.mxu0 0.0
        %1197 = vmatpush1.xpose.msra.mxu0 0.0
        %1198 = vmatprep.subr.mxu0 0.0
        %1199 = vmatpush1.xpose.msra.mxu0 0.0
        %1200 = vmatprep.subr.mxu0 0.0
        %1201 = vmatpush1.xpose.msra.mxu0 0.0
        %1202 = vmatprep.subr.mxu0 0.0
        %1203 = vmatpush1.xpose.msra.mxu0 0.0
        %1204 = vmatprep.subr.mxu0 0.0
        %1205 = vmatpush1.xpose.msra.mxu0 0.0
        %1206 = vmatprep.subr.mxu0 0.0
        %1207 = vmatpush1.xpose.msra.mxu0 0.0
        %1208 = vmatprep.subr.mxu0 0.0
        %1209 = vmatpush1.xpose.msra.mxu0 0.0
        %1210 = vmatprep.subr.mxu0 0.0
        %1211 = vmatpush1.xpose.msra.mxu0 0.0
        %1212 = vmatprep.subr.mxu0 0.0
        %1213 = vmatpush1.xpose.msra.mxu0 0.0
        %1214 = vmatprep.subr.mxu0 0.0
        %1215 = vmatpush1.xpose.msra.mxu0 0.0
        %1216 = vmatprep.subr.mxu0 0.0
        %1217 = vmatpush1.xpose.msra.mxu0 0.0
        %1218 = vmatprep.subr.mxu0 0.0
        %1219 = vmatpush1.xpose.msra.mxu0 0.0
        %1220 = vmatprep.subr.mxu0 0.0
        %1221 = vmatpush1.xpose.msra.mxu0 0.0
        %1222 = vmatprep.subr.mxu0 0.0
        %1223 = vmatpush1.xpose.msra.mxu0 0.0
        %1224 = vmatprep.subr.mxu0 0.0
        %1225 = vmatpush1.xpose.msra.mxu0 0.0
        %1226 = vmatprep.subr.mxu0 0.0
        %1227 = vmatpush1.xpose.msra.mxu0 0.0
        %1228 = vmatprep.subr.mxu0 0.0
        %1229 = vmatpush1.xpose.msra.mxu0 0.0
        %1230 = vmatprep.subr.mxu0 0.0
        %1231 = vmatpush1.xpose.msra.mxu0 0.0
        %1232 = vmatprep.subr.mxu0 0.0
        %1233 = vmatpush1.xpose.msra.mxu0 0.0
        %1234 = vmatprep.subr.mxu0 0.0
        %1235 = vmatpush1.xpose.msra.mxu0 0.0
        %1236 = vmatprep.subr.mxu0 0.0
        %1237 = vmatpush1.xpose.msra.mxu0 0.0
        %1238 = vmatprep.subr.mxu0 0.0
        %1239 = vmatpush1.xpose.msra.mxu0 0.0
        %1240 = vmatprep.subr.mxu0 0.0
        %1241 = vmatpush1.xpose.msra.mxu0 0.0
        %1242 = vmatprep.subr.mxu0 0.0
        %1243 = vmatpush1.xpose.msra.mxu0 0.0
        %1244 = vmatprep.subr.mxu0 0.0
        %1245 = vmatpush1.xpose.msra.mxu0 0.0
        %1246 = vmatprep.subr.mxu0 0.0
        %1247 = vmatpush1.xpose.msra.mxu0 0.0
        %1248 = vmatprep.mubr.f32.mxu0 0.0
        %1249 = vmatmul.mubr.f32.gmra.mrb[0].mxu0 %v1176
        %v1250 = vpop.f32.mrb[0].mxu0
        %v1251 = vadd.f32 0.0, %v1250
        %v1252 = vpop.f32.mrb[0].mxu0
        %1253 = vdwg.mxu0
        %v1255 = vsel %vm955, %v996, 0
        %v1258 = vsel %vm955, %v1007, 0
        %v1261 = vsel %vm955, %v1008, 0
        %1263 = vmatprep.subr.mxu0 0.0
        %1264 = vmatpush1.xpose.msra.mxu0 %v1258
        %1265 = vmatprep.subr.mxu0 0.0
        %1266 = vmatpush1.xpose.msra.mxu0 %v1261
        %1267 = vmatprep.subr.mxu0 0.0
        %1268 = vmatpush1.xpose.msra.mxu0 0.0
        %1269 = vmatprep.subr.mxu0 0.0
        %1270 = vmatpush1.xpose.msra.mxu0 0.0
        %1271 = vmatprep.subr.mxu0 0.0
        %1272 = vmatpush1.xpose.msra.mxu0 0.0
        %1273 = vmatprep.subr.mxu0 0.0
        %1274 = vmatpush1.xpose.msra.mxu0 0.0
        %1275 = vmatprep.subr.mxu0 0.0
        %1276 = vmatpush1.xpose.msra.mxu0 0.0
        %1277 = vmatprep.subr.mxu0 0.0
        %1278 = vmatpush1.xpose.msra.mxu0 0.0
        %1279 = vmatprep.subr.mxu0 0.0
        %1280 = vmatpush1.xpose.msra.mxu0 0.0
        %1281 = vmatprep.subr.mxu0 0.0
        %1282 = vmatpush1.xpose.msra.mxu0 0.0
        %1283 = vmatprep.subr.mxu0 0.0
        %1284 = vmatpush1.xpose.msra.mxu0 0.0
        %1285 = vmatprep.subr.mxu0 0.0
        %1286 = vmatpush1.xpose.msra.mxu0 0.0
        %1287 = vmatprep.subr.mxu0 0.0
        %1288 = vmatpush1.xpose.msra.mxu0 0.0
        %1289 = vmatprep.subr.mxu0 0.0
        %1290 = vmatpush1.xpose.msra.mxu0 0.0
        %1291 = vmatprep.subr.mxu0 0.0
        %1292 = vmatpush1.xpose.msra.mxu0 0.0
        %1293 = vmatprep.subr.mxu0 0.0
        %1294 = vmatpush1.xpose.msra.mxu0 0.0
        %1295 = vmatprep.subr.mxu0 0.0
        %1296 = vmatpush1.xpose.msra.mxu0 0.0
        %1297 = vmatprep.subr.mxu0 0.0
        %1298 = vmatpush1.xpose.msra.mxu0 0.0
        %1299 = vmatprep.subr.mxu0 0.0
        %1300 = vmatpush1.xpose.msra.mxu0 0.0
        %1301 = vmatprep.subr.mxu0 0.0
        %1302 = vmatpush1.xpose.msra.mxu0 0.0
        %1303 = vmatprep.subr.mxu0 0.0
        %1304 = vmatpush1.xpose.msra.mxu0 0.0
        %1305 = vmatprep.subr.mxu0 0.0
        %1306 = vmatpush1.xpose.msra.mxu0 0.0
        %1307 = vmatprep.subr.mxu0 0.0
        %1308 = vmatpush1.xpose.msra.mxu0 0.0
        %1309 = vmatprep.subr.mxu0 0.0
        %1310 = vmatpush1.xpose.msra.mxu0 0.0
        %1311 = vmatprep.subr.mxu0 0.0
        %1312 = vmatpush1.xpose.msra.mxu0 0.0
        %1313 = vmatprep.subr.mxu0 0.0
        %1314 = vmatpush1.xpose.msra.mxu0 0.0
        %1315 = vmatprep.subr.mxu0 0.0
        %1316 = vmatpush1.xpose.msra.mxu0 0.0
        %1317 = vmatprep.subr.mxu0 0.0
        %1318 = vmatpush1.xpose.msra.mxu0 0.0
        %1319 = vmatprep.subr.mxu0 0.0
        %1320 = vmatpush1.xpose.msra.mxu0 0.0
        %1321 = vmatprep.subr.mxu0 0.0
        %1322 = vmatpush1.xpose.msra.mxu0 0.0
        %1323 = vmatprep.subr.mxu0 0.0
        %1324 = vmatpush1.xpose.msra.mxu0 0.0
        %1325 = vmatprep.subr.mxu0 0.0
        %1326 = vmatpush1.xpose.msra.mxu0 0.0
        %1327 = vmatprep.mubr.f32.mxu0 0.0
        %1328 = vmatmul.mubr.f32.gmra.mrb[0].mxu0 %v1255
        %v1329 = vpop.f32.mrb[0].mxu0
        %v1330 = vadd.f32 0.0, %v1329
        %v1331 = vpop.f32.mrb[0].mxu0
        %1332 = vdwg.mxu0
        %v1334 = vsel %vm955, %v997, 0
        %v1337 = vsel %vm955, %v1009, 0
        %v1340 = vsel %vm955, %v1010, 0
        %1342 = vmatprep.subr.mxu0 0.0
        %1343 = vmatpush1.xpose.msra.mxu0 %v1337
        %1344 = vmatprep.subr.mxu0 0.0
        %1345 = vmatpush1.xpose.msra.mxu0 %v1340
        %1346 = vmatprep.subr.mxu0 0.0
        %1347 = vmatpush1.xpose.msra.mxu0 0.0
        %1348 = vmatprep.subr.mxu0 0.0
        %1349 = vmatpush1.xpose.msra.mxu0 0.0
        %1350 = vmatprep.subr.mxu0 0.0
        %1351 = vmatpush1.xpose.msra.mxu0 0.0
        %1352 = vmatprep.subr.mxu0 0.0
        %1353 = vmatpush1.xpose.msra.mxu0 0.0
        %1354 = vmatprep.subr.mxu0 0.0
        %1355 = vmatpush1.xpose.msra.mxu0 0.0
        %1356 = vmatprep.subr.mxu0 0.0
        %1357 = vmatpush1.xpose.msra.mxu0 0.0
        %1358 = vmatprep.subr.mxu0 0.0
        %1359 = vmatpush1.xpose.msra.mxu0 0.0
        %1360 = vmatprep.subr.mxu0 0.0
        %1361 = vmatpush1.xpose.msra.mxu0 0.0
        %1362 = vmatprep.subr.mxu0 0.0
        %1363 = vmatpush1.xpose.msra.mxu0 0.0
        %1364 = vmatprep.subr.mxu0 0.0
        %1365 = vmatpush1.xpose.msra.mxu0 0.0
        %1366 = vmatprep.subr.mxu0 0.0
        %1367 = vmatpush1.xpose.msra.mxu0 0.0
        %1368 = vmatprep.subr.mxu0 0.0
        %1369 = vmatpush1.xpose.msra.mxu0 0.0
        %1370 = vmatprep.subr.mxu0 0.0
        %1371 = vmatpush1.xpose.msra.mxu0 0.0
        %1372 = vmatprep.subr.mxu0 0.0
        %1373 = vmatpush1.xpose.msra.mxu0 0.0
        %1374 = vmatprep.subr.mxu0 0.0
        %1375 = vmatpush1.xpose.msra.mxu0 0.0
        %1376 = vmatprep.subr.mxu0 0.0
        %1377 = vmatpush1.xpose.msra.mxu0 0.0
        %1378 = vmatprep.subr.mxu0 0.0
        %1379 = vmatpush1.xpose.msra.mxu0 0.0
        %1380 = vmatprep.subr.mxu0 0.0
        %1381 = vmatpush1.xpose.msra.mxu0 0.0
        %1382 = vmatprep.subr.mxu0 0.0
        %1383 = vmatpush1.xpose.msra.mxu0 0.0
        %1384 = vmatprep.subr.mxu0 0.0
        %1385 = vmatpush1.xpose.msra.mxu0 0.0
        %1386 = vmatprep.subr.mxu0 0.0
        %1387 = vmatpush1.xpose.msra.mxu0 0.0
        %1388 = vmatprep.subr.mxu0 0.0
        %1389 = vmatpush1.xpose.msra.mxu0 0.0
        %1390 = vmatprep.subr.mxu0 0.0
        %1391 = vmatpush1.xpose.msra.mxu0 0.0
        %1392 = vmatprep.subr.mxu0 0.0
        %1393 = vmatpush1.xpose.msra.mxu0 0.0
        %1394 = vmatprep.subr.mxu0 0.0
        %1395 = vmatpush1.xpose.msra.mxu0 0.0
        %1396 = vmatprep.subr.mxu0 0.0
        %1397 = vmatpush1.xpose.msra.mxu0 0.0
        %1398 = vmatprep.subr.mxu0 0.0
        %1399 = vmatpush1.xpose.msra.mxu0 0.0
        %1400 = vmatprep.subr.mxu0 0.0
        %1401 = vmatpush1.xpose.msra.mxu0 0.0
        %1402 = vmatprep.subr.mxu0 0.0
        %1403 = vmatpush1.xpose.msra.mxu0 0.0
        %1404 = vmatprep.subr.mxu0 0.0
        %1405 = vmatpush1.xpose.msra.mxu0 0.0
        %1406 = vmatprep.mubr.f32.mxu0 0.0
        %1407 = vmatmul.mubr.f32.gmra.mrb[0].mxu0 %v1334
        %v1408 = vpop.f32.mrb[0].mxu0
        %v1409 = vadd.f32 0.0, %v1408
        %v1410 = vpop.f32.mrb[0].mxu0
        %1411 = vdwg.mxu0
        %v1413 = vsel %vm955, %v998, 0
        %v1416 = vsel %vm955, %v1011, 0
        %v1419 = vsel %vm955, %v1012, 0
        %1421 = vmatprep.subr.mxu0 0.0
        %1422 = vmatpush1.xpose.msra.mxu0 %v1416
        %1423 = vmatprep.subr.mxu0 0.0
        %1424 = vmatpush1.xpose.msra.mxu0 %v1419
        %1425 = vmatprep.subr.mxu0 0.0
        %1426 = vmatpush1.xpose.msra.mxu0 0.0
        %1427 = vmatprep.subr.mxu0 0.0
        %1428 = vmatpush1.xpose.msra.mxu0 0.0
        %1429 = vmatprep.subr.mxu0 0.0
        %1430 = vmatpush1.xpose.msra.mxu0 0.0
        %1431 = vmatprep.subr.mxu0 0.0
        %1432 = vmatpush1.xpose.msra.mxu0 0.0
        %1433 = vmatprep.subr.mxu0 0.0
        %1434 = vmatpush1.xpose.msra.mxu0 0.0
        %1435 = vmatprep.subr.mxu0 0.0
        %1436 = vmatpush1.xpose.msra.mxu0 0.0
        %1437 = vmatprep.subr.mxu0 0.0
        %1438 = vmatpush1.xpose.msra.mxu0 0.0
        %1439 = vmatprep.subr.mxu0 0.0
        %1440 = vmatpush1.xpose.msra.mxu0 0.0
        %1441 = vmatprep.subr.mxu0 0.0
        %1442 = vmatpush1.xpose.msra.mxu0 0.0
        %1443 = vmatprep.subr.mxu0 0.0
        %1444 = vmatpush1.xpose.msra.mxu0 0.0
        %1445 = vmatprep.subr.mxu0 0.0
        %1446 = vmatpush1.xpose.msra.mxu0 0.0
        %1447 = vmatprep.subr.mxu0 0.0
        %1448 = vmatpush1.xpose.msra.mxu0 0.0
        %1449 = vmatprep.subr.mxu0 0.0
        %1450 = vmatpush1.xpose.msra.mxu0 0.0
        %1451 = vmatprep.subr.mxu0 0.0
        %1452 = vmatpush1.xpose.msra.mxu0 0.0
        %1453 = vmatprep.subr.mxu0 0.0
        %1454 = vmatpush1.xpose.msra.mxu0 0.0
        %1455 = vmatprep.subr.mxu0 0.0
        %1456 = vmatpush1.xpose.msra.mxu0 0.0
        %1457 = vmatprep.subr.mxu0 0.0
        %1458 = vmatpush1.xpose.msra.mxu0 0.0
        %1459 = vmatprep.subr.mxu0 0.0
        %1460 = vmatpush1.xpose.msra.mxu0 0.0
        %1461 = vmatprep.subr.mxu0 0.0
        %1462 = vmatpush1.xpose.msra.mxu0 0.0
        %1463 = vmatprep.subr.mxu0 0.0
        %1464 = vmatpush1.xpose.msra.mxu0 0.0
        %1465 = vmatprep.subr.mxu0 0.0
        %1466 = vmatpush1.xpose.msra.mxu0 0.0
        %1467 = vmatprep.subr.mxu0 0.0
        %1468 = vmatpush1.xpose.msra.mxu0 0.0
        %1469 = vmatprep.subr.mxu0 0.0
        %1470 = vmatpush1.xpose.msra.mxu0 0.0
        %1471 = vmatprep.subr.mxu0 0.0
        %1472 = vmatpush1.xpose.msra.mxu0 0.0
        %1473 = vmatprep.subr.mxu0 0.0
        %1474 = vmatpush1.xpose.msra.mxu0 0.0
        %1475 = vmatprep.subr.mxu0 0.0
        %1476 = vmatpush1.xpose.msra.mxu0 0.0
        %1477 = vmatprep.subr.mxu0 0.0
        %1478 = vmatpush1.xpose.msra.mxu0 0.0
        %1479 = vmatprep.subr.mxu0 0.0
        %1480 = vmatpush1.xpose.msra.mxu0 0.0
        %1481 = vmatprep.subr.mxu0 0.0
        %1482 = vmatpush1.xpose.msra.mxu0 0.0
        %1483 = vmatprep.subr.mxu0 0.0
        %1484 = vmatpush1.xpose.msra.mxu0 0.0
        %1485 = vmatprep.mubr.f32.mxu0 0.0
        %1486 = vmatmul.mubr.f32.gmra.mrb[0].mxu0 %v1413
        %v1487 = vpop.f32.mrb[0].mxu0
        %v1488 = vadd.f32 0.0, %v1487
        %v1489 = vpop.f32.mrb[0].mxu0
        %1490 = vdwg.mxu0
        %v1492 = vsel %vm955, %v999, 0
        %v1495 = vsel %vm955, %v1013, 0
        %v1498 = vsel %vm955, %v1014, 0
        %1500 = vmatprep.subr.mxu0 0.0
        %1501 = vmatpush1.xpose.msra.mxu0 %v1495
        %1502 = vmatprep.subr.mxu0 0.0
        %1503 = vmatpush1.xpose.msra.mxu0 %v1498
        %1504 = vmatprep.subr.mxu0 0.0
        %1505 = vmatpush1.xpose.msra.mxu0 0.0
        %1506 = vmatprep.subr.mxu0 0.0
        %1507 = vmatpush1.xpose.msra.mxu0 0.0
        %1508 = vmatprep.subr.mxu0 0.0
        %1509 = vmatpush1.xpose.msra.mxu0 0.0
        %1510 = vmatprep.subr.mxu0 0.0
        %1511 = vmatpush1.xpose.msra.mxu0 0.0
        %1512 = vmatprep.subr.mxu0 0.0
        %1513 = vmatpush1.xpose.msra.mxu0 0.0
        %1514 = vmatprep.subr.mxu0 0.0
        %1515 = vmatpush1.xpose.msra.mxu0 0.0
        %1516 = vmatprep.subr.mxu0 0.0
        %1517 = vmatpush1.xpose.msra.mxu0 0.0
        %1518 = vmatprep.subr.mxu0 0.0
        %1519 = vmatpush1.xpose.msra.mxu0 0.0
        %1520 = vmatprep.subr.mxu0 0.0
        %1521 = vmatpush1.xpose.msra.mxu0 0.0
        %1522 = vmatprep.subr.mxu0 0.0
        %1523 = vmatpush1.xpose.msra.mxu0 0.0
        %1524 = vmatprep.subr.mxu0 0.0
        %1525 = vmatpush1.xpose.msra.mxu0 0.0
        %1526 = vmatprep.subr.mxu0 0.0
        %1527 = vmatpush1.xpose.msra.mxu0 0.0
        %1528 = vmatprep.subr.mxu0 0.0
        %1529 = vmatpush1.xpose.msra.mxu0 0.0
        %1530 = vmatprep.subr.mxu0 0.0
        %1531 = vmatpush1.xpose.msra.mxu0 0.0
        %1532 = vmatprep.subr.mxu0 0.0
        %1533 = vmatpush1.xpose.msra.mxu0 0.0
        %1534 = vmatprep.subr.mxu0 0.0
        %1535 = vmatpush1.xpose.msra.mxu0 0.0
        %1536 = vmatprep.subr.mxu0 0.0
        %1537 = vmatpush1.xpose.msra.mxu0 0.0
        %1538 = vmatprep.subr.mxu0 0.0
        %1539 = vmatpush1.xpose.msra.mxu0 0.0
        %1540 = vmatprep.subr.mxu0 0.0
        %1541 = vmatpush1.xpose.msra.mxu0 0.0
        %1542 = vmatprep.subr.mxu0 0.0
        %1543 = vmatpush1.xpose.msra.mxu0 0.0
        %1544 = vmatprep.subr.mxu0 0.0
        %1545 = vmatpush1.xpose.msra.mxu0 0.0
        %1546 = vmatprep.subr.mxu0 0.0
        %1547 = vmatpush1.xpose.msra.mxu0 0.0
        %1548 = vmatprep.subr.mxu0 0.0
        %1549 = vmatpush1.xpose.msra.mxu0 0.0
        %1550 = vmatprep.subr.mxu0 0.0
        %1551 = vmatpush1.xpose.msra.mxu0 0.0
        %1552 = vmatprep.subr.mxu0 0.0
        %1553 = vmatpush1.xpose.msra.mxu0 0.0
        %1554 = vmatprep.subr.mxu0 0.0
        %1555 = vmatpush1.xpose.msra.mxu0 0.0
        %1556 = vmatprep.subr.mxu0 0.0
        %1557 = vmatpush1.xpose.msra.mxu0 0.0
        %1558 = vmatprep.subr.mxu0 0.0
        %1559 = vmatpush1.xpose.msra.mxu0 0.0
        %1560 = vmatprep.subr.mxu0 0.0
        %1561 = vmatpush1.xpose.msra.mxu0 0.0
        %1562 = vmatprep.subr.mxu0 0.0
        %1563 = vmatpush1.xpose.msra.mxu0 0.0
        %1564 = vmatprep.mubr.f32.mxu0 0.0
        %1565 = vmatmul.mubr.f32.gmra.mrb[0].mxu0 %v1492
        %v1566 = vpop.f32.mrb[0].mxu0
        %v1567 = vadd.f32 0.0, %v1566
        %v1568 = vpop.f32.mrb[0].mxu0
        %1569 = vdwg.mxu0
        %v1571 = vsel %vm955, %v1000, 0
        %v1574 = vsel %vm955, %v1015, 0
        %v1577 = vsel %vm955, %v1016, 0
        %1579 = vmatprep.subr.mxu0 0.0
        %1580 = vmatpush1.xpose.msra.mxu0 %v1574
        %1581 = vmatprep.subr.mxu0 0.0
        %1582 = vmatpush1.xpose.msra.mxu0 %v1577
        %1583 = vmatprep.subr.mxu0 0.0
        %1584 = vmatpush1.xpose.msra.mxu0 0.0
        %1585 = vmatprep.subr.mxu0 0.0
        %1586 = vmatpush1.xpose.msra.mxu0 0.0
        %1587 = vmatprep.subr.mxu0 0.0
        %1588 = vmatpush1.xpose.msra.mxu0 0.0
        %1589 = vmatprep.subr.mxu0 0.0
        %1590 = vmatpush1.xpose.msra.mxu0 0.0
        %1591 = vmatprep.subr.mxu0 0.0
        %1592 = vmatpush1.xpose.msra.mxu0 0.0
        %1593 = vmatprep.subr.mxu0 0.0
        %1594 = vmatpush1.xpose.msra.mxu0 0.0
        %1595 = vmatprep.subr.mxu0 0.0
        %1596 = vmatpush1.xpose.msra.mxu0 0.0
        %1597 = vmatprep.subr.mxu0 0.0
        %1598 = vmatpush1.xpose.msra.mxu0 0.0
        %1599 = vmatprep.subr.mxu0 0.0
        %1600 = vmatpush1.xpose.msra.mxu0 0.0
        %1601 = vmatprep.subr.mxu0 0.0
        %1602 = vmatpush1.xpose.msra.mxu0 0.0
        %1603 = vmatprep.subr.mxu0 0.0
        %1604 = vmatpush1.xpose.msra.mxu0 0.0
        %1605 = vmatprep.subr.mxu0 0.0
        %1606 = vmatpush1.xpose.msra.mxu0 0.0
        %1607 = vmatprep.subr.mxu0 0.0
        %1608 = vmatpush1.xpose.msra.mxu0 0.0
        %1609 = vmatprep.subr.mxu0 0.0
        %1610 = vmatpush1.xpose.msra.mxu0 0.0
        %1611 = vmatprep.subr.mxu0 0.0
        %1612 = vmatpush1.xpose.msra.mxu0 0.0
        %1613 = vmatprep.subr.mxu0 0.0
        %1614 = vmatpush1.xpose.msra.mxu0 0.0
        %1615 = vmatprep.subr.mxu0 0.0
        %1616 = vmatpush1.xpose.msra.mxu0 0.0
        %1617 = vmatprep.subr.mxu0 0.0
        %1618 = vmatpush1.xpose.msra.mxu0 0.0
        %1619 = vmatprep.subr.mxu0 0.0
        %1620 = vmatpush1.xpose.msra.mxu0 0.0
        %1621 = vmatprep.subr.mxu0 0.0
        %1622 = vmatpush1.xpose.msra.mxu0 0.0
        %1623 = vmatprep.subr.mxu0 0.0
        %1624 = vmatpush1.xpose.msra.mxu0 0.0
        %1625 = vmatprep.subr.mxu0 0.0
        %1626 = vmatpush1.xpose.msra.mxu0 0.0
        %1627 = vmatprep.subr.mxu0 0.0
        %1628 = vmatpush1.xpose.msra.mxu0 0.0
        %1629 = vmatprep.subr.mxu0 0.0
        %1630 = vmatpush1.xpose.msra.mxu0 0.0
        %1631 = vmatprep.subr.mxu0 0.0
        %1632 = vmatpush1.xpose.msra.mxu0 0.0
        %1633 = vmatprep.subr.mxu0 0.0
        %1634 = vmatpush1.xpose.msra.mxu0 0.0
        %1635 = vmatprep.subr.mxu0 0.0
        %1636 = vmatpush1.xpose.msra.mxu0 0.0
        %1637 = vmatprep.subr.mxu0 0.0
        %1638 = vmatpush1.xpose.msra.mxu0 0.0
        %1639 = vmatprep.subr.mxu0 0.0
        %1640 = vmatpush1.xpose.msra.mxu0 0.0
        %1641 = vmatprep.subr.mxu0 0.0
        %1642 = vmatpush1.xpose.msra.mxu0 0.0
        %1643 = vmatprep.mubr.f32.mxu0 0.0
        %1644 = vmatmul.mubr.f32.gmra.mrb[0].mxu0 %v1571
        %v1645 = vpop.f32.mrb[0].mxu0
        %v1646 = vadd.f32 0.0, %v1645
        %v1647 = vpop.f32.mrb[0].mxu0
        %1648 = vdwg.mxu0
        %v1649 = vsel %vm955, %v1093, -inf
        %1650 = vmax.xlane.f32.xlu0 %v1649
        %v1651 = vpop.xlane.xlu0 %1650
        %v1652 = vsel %vm955, %v1172, -inf
        %1653 = vmax.xlane.f32.xlu0 %v1652
        %v1654 = vpop.xlane.xlu0 %1653
        %v1655 = vsel %vm955, %v1251, -inf
        %1656 = vmax.xlane.f32.xlu0 %v1655
        %v1657 = vpop.xlane.xlu0 %1656
        %v1658 = vsel %vm955, %v1330, -inf
        %1659 = vmax.xlane.f32.xlu0 %v1658
        %v1660 = vpop.xlane.xlu0 %1659
        %v1661 = vsel %vm955, %v1409, -inf
        %1662 = vmax.xlane.f32.xlu0 %v1661
        %v1663 = vpop.xlane.xlu0 %1662
        %v1664 = vsel %vm955, %v1488, -inf
        %1665 = vmax.xlane.f32.xlu0 %v1664
        %v1666 = vpop.xlane.xlu0 %1665
        %v1667 = vsel %vm955, %v1567, -inf
        %1668 = vmax.xlane.f32.xlu0 %v1667
        %v1669 = vpop.xlane.xlu0 %1668
        %v1670 = vsel %vm955, %v1646, -inf
        %1671 = vmax.xlane.f32.xlu0 %v1670
        %v1672 = vpop.xlane.xlu0 %1671
        %v1673 = vsub.f32 %v1093, %v1651
        %v1674 = vsub.f32 %v1172, %v1654
        %v1675 = vsub.f32 %v1251, %v1657
        %v1676 = vsub.f32 %v1330, %v1660
        %v1677 = vsub.f32 %v1409, %v1663
        %v1678 = vsub.f32 %v1488, %v1666
        %v1679 = vsub.f32 %v1567, %v1669
        %v1680 = vsub.f32 %v1646, %v1672
        %v1681 = vmul.f32 %v1673, 1.442695
        %v1682 = vpow.pop %v1681
        %v1683 = vmul.f32 %v1674, 1.442695
        %v1684 = vpow.pop %v1683
        %v1685 = vmul.f32 %v1675, 1.442695
        %v1686 = vpow.pop %v1685
        %v1687 = vmul.f32 %v1676, 1.442695
        %v1688 = vpow.pop %v1687
        %v1689 = vmul.f32 %v1677, 1.442695
        %v1690 = vpow.pop %v1689
        %v1691 = vmul.f32 %v1678, 1.442695
        %v1692 = vpow.pop %v1691
        %v1693 = vmul.f32 %v1679, 1.442695
        %v1694 = vpow.pop %v1693
        %v1695 = vmul.f32 %v1680, 1.442695
        %v1696 = vpow.pop %v1695
        %v1697 = vsel %vm955, %v1682, 0.0
        %1698 = vadd.xlane.f32.xlu0 %v1697
        %v1699 = vpop.xlane.xlu0 %1698
        %v1700 = vsel %vm955, %v1684, 0.0
        %1701 = vadd.xlane.f32.xlu0 %v1700
        %v1702 = vpop.xlane.xlu0 %1701
        %v1703 = vsel %vm955, %v1686, 0.0
        %1704 = vadd.xlane.f32.xlu0 %v1703
        %v1705 = vpop.xlane.xlu0 %1704
        %v1706 = vsel %vm955, %v1688, 0.0
        %1707 = vadd.xlane.f32.xlu0 %v1706
        %v1708 = vpop.xlane.xlu0 %1707
        %v1709 = vsel %vm955, %v1690, 0.0
        %1710 = vadd.xlane.f32.xlu0 %v1709
        %v1711 = vpop.xlane.xlu0 %1710
        %v1712 = vsel %vm955, %v1692, 0.0
        %1713 = vadd.xlane.f32.xlu0 %v1712
        %v1714 = vpop.xlane.xlu0 %1713
        %v1715 = vsel %vm955, %v1694, 0.0
        %1716 = vadd.xlane.f32.xlu0 %v1715
        %v1717 = vpop.xlane.xlu0 %1716
        %v1718 = vsel %vm955, %v1696, 0.0
        %1719 = vadd.xlane.f32.xlu0 %v1718
        %v1720 = vpop.xlane.xlu0 %1719
        %v1721 = vrcp.pop %v1699
        %v1722 = vmul.f32 %v1682, %v1721
        %v1723 = vrcp.pop %v1702
        %v1724 = vmul.f32 %v1684, %v1723
        %v1725 = vrcp.pop %v1705
        %v1726 = vmul.f32 %v1686, %v1725
        %v1727 = vrcp.pop %v1708
        %v1728 = vmul.f32 %v1688, %v1727
        %v1729 = vrcp.pop %v1711
        %v1730 = vmul.f32 %v1690, %v1729
        %v1731 = vrcp.pop %v1714
        %v1732 = vmul.f32 %v1692, %v1731
        %v1733 = vrcp.pop %v1717
        %v1734 = vmul.f32 %v1694, %v1733
        %v1735 = vrcp.pop %v1720
        %v1736 = vmul.f32 %v1696, %v1735
        %v1737 = vld [vmem:[#allocation3] sm:$0xff]
        %v1738 = vld [vmem:[#allocation3 + $0x8] sm:$0xff]
        %v1739 = vld [vmem:[#allocation3 + $0x10] sm:$0xff]
        %v1740 = vld [vmem:[#allocation3 + $0x18] sm:$0xff]
        %v1741 = vld [vmem:[#allocation3 + $0x20] sm:$0xff]
        %v1742 = vld [vmem:[#allocation3 + $0x28] sm:$0xff]
        %v1743 = vld [vmem:[#allocation3 + $0x30] sm:$0xff]
        %v1744 = vld [vmem:[#allocation3 + $0x38] sm:$0xff]
        %v1745 = vld [vmem:[#allocation3 + $0x40] sm:$0xff]
        %v1746 = vld [vmem:[#allocation3 + $0x48] sm:$0xff]
        %v1747 = vld [vmem:[#allocation3 + $0x50] sm:$0xff]
        %v1748 = vld [vmem:[#allocation3 + $0x58] sm:$0xff]
        %v1749 = vld [vmem:[#allocation3 + $0x60] sm:$0xff]
        %v1750 = vld [vmem:[#allocation3 + $0x68] sm:$0xff]
        %v1751 = vld [vmem:[#allocation3 + $0x70] sm:$0xff]
        %v1752 = vld [vmem:[#allocation3 + $0x78] sm:$0xff]
        %v1754 = vsel %vm955, %v1722, 0
        %1756 = vmatprep.subr.mxu0 0.0
        %1757 = vmatpush1.msra.mxu0 %v1737
        %1758 = vmatprep.subr.mxu0 0.0
        %1759 = vmatpush1.msra.mxu0 %v1738
        %1760 = vmatprep.subr.mxu0 0.0
        %1761 = vmatpush1.msra.mxu0 0.0
        %1762 = vmatprep.subr.mxu0 0.0
        %1763 = vmatpush1.msra.mxu0 0.0
        %1764 = vmatprep.subr.mxu0 0.0
        %1765 = vmatpush1.msra.mxu0 0.0
        %1766 = vmatprep.subr.mxu0 0.0
        %1767 = vmatpush1.msra.mxu0 0.0
        %1768 = vmatprep.subr.mxu0 0.0
        %1769 = vmatpush1.msra.mxu0 0.0
        %1770 = vmatprep.subr.mxu0 0.0
        %1771 = vmatpush1.msra.mxu0 0.0
        %1772 = vmatprep.subr.mxu0 0.0
        %1773 = vmatpush1.msra.mxu0 0.0
        %1774 = vmatprep.subr.mxu0 0.0
        %1775 = vmatpush1.msra.mxu0 0.0
        %1776 = vmatprep.subr.mxu0 0.0
        %1777 = vmatpush1.msra.mxu0 0.0
        %1778 = vmatprep.subr.mxu0 0.0
        %1779 = vmatpush1.msra.mxu0 0.0
        %1780 = vmatprep.subr.mxu0 0.0
        %1781 = vmatpush1.msra.mxu0 0.0
        %1782 = vmatprep.subr.mxu0 0.0
        %1783 = vmatpush1.msra.mxu0 0.0
        %1784 = vmatprep.subr.mxu0 0.0
        %1785 = vmatpush1.msra.mxu0 0.0
        %1786 = vmatprep.subr.mxu0 0.0
        %1787 = vmatpush1.msra.mxu0 0.0
        %1788 = vmatprep.subr.mxu0 0.0
        %1789 = vmatpush1.msra.mxu0 0.0
        %1790 = vmatprep.subr.mxu0 0.0
        %1791 = vmatpush1.msra.mxu0 0.0
        %1792 = vmatprep.subr.mxu0 0.0
        %1793 = vmatpush1.msra.mxu0 0.0
        %1794 = vmatprep.subr.mxu0 0.0
        %1795 = vmatpush1.msra.mxu0 0.0
        %1796 = vmatprep.subr.mxu0 0.0
        %1797 = vmatpush1.msra.mxu0 0.0
        %1798 = vmatprep.subr.mxu0 0.0
        %1799 = vmatpush1.msra.mxu0 0.0
        %1800 = vmatprep.subr.mxu0 0.0
        %1801 = vmatpush1.msra.mxu0 0.0
        %1802 = vmatprep.subr.mxu0 0.0
        %1803 = vmatpush1.msra.mxu0 0.0
        %1804 = vmatprep.subr.mxu0 0.0
        %1805 = vmatpush1.msra.mxu0 0.0
        %1806 = vmatprep.subr.mxu0 0.0
        %1807 = vmatpush1.msra.mxu0 0.0
        %1808 = vmatprep.subr.mxu0 0.0
        %1809 = vmatpush1.msra.mxu0 0.0
        %1810 = vmatprep.subr.mxu0 0.0
        %1811 = vmatpush1.msra.mxu0 0.0
        %1812 = vmatprep.subr.mxu0 0.0
        %1813 = vmatpush1.msra.mxu0 0.0
        %1814 = vmatprep.subr.mxu0 0.0
        %1815 = vmatpush1.msra.mxu0 0.0
        %1816 = vmatprep.subr.mxu0 0.0
        %1817 = vmatpush1.msra.mxu0 0.0
        %1818 = vmatprep.subr.mxu0 0.0
        %1819 = vmatpush1.msra.mxu0 0.0
        %1820 = vmatprep.mubr.f32.mxu0 0.0
        %1821 = vmatmul.mubr.f32.gmra.mrb[0].mxu0 %v1754
        %v1822 = vpop.f32.mrb[0].mxu0
        %v1823 = vadd.f32 0.0, %v1822
        %v1824 = vpop.f32.mrb[0].mxu0
        %1825 = vdwg.mxu0
        %v1827 = vsel %vm955, %v1724, 0
        %1829 = vmatprep.subr.mxu0 0.0
        %1830 = vmatpush1.msra.mxu0 %v1739
        %1831 = vmatprep.subr.mxu0 0.0
        %1832 = vmatpush1.msra.mxu0 %v1740
        %1833 = vmatprep.subr.mxu0 0.0
        %1834 = vmatpush1.msra.mxu0 0.0
        %1835 = vmatprep.subr.mxu0 0.0
        %1836 = vmatpush1.msra.mxu0 0.0
        %1837 = vmatprep.subr.mxu0 0.0
        %1838 = vmatpush1.msra.mxu0 0.0
        %1839 = vmatprep.subr.mxu0 0.0
        %1840 = vmatpush1.msra.mxu0 0.0
        %1841 = vmatprep.subr.mxu0 0.0
        %1842 = vmatpush1.msra.mxu0 0.0
        %1843 = vmatprep.subr.mxu0 0.0
        %1844 = vmatpush1.msra.mxu0 0.0
        %1845 = vmatprep.subr.mxu0 0.0
        %1846 = vmatpush1.msra.mxu0 0.0
        %1847 = vmatprep.subr.mxu0 0.0
        %1848 = vmatpush1.msra.mxu0 0.0
        %1849 = vmatprep.subr.mxu0 0.0
        %1850 = vmatpush1.msra.mxu0 0.0
        %1851 = vmatprep.subr.mxu0 0.0
        %1852 = vmatpush1.msra.mxu0 0.0
        %1853 = vmatprep.subr.mxu0 0.0
        %1854 = vmatpush1.msra.mxu0 0.0
        %1855 = vmatprep.subr.mxu0 0.0
        %1856 = vmatpush1.msra.mxu0 0.0
        %1857 = vmatprep.subr.mxu0 0.0
        %1858 = vmatpush1.msra.mxu0 0.0
        %1859 = vmatprep.subr.mxu0 0.0
        %1860 = vmatpush1.msra.mxu0 0.0
        %1861 = vmatprep.subr.mxu0 0.0
        %1862 = vmatpush1.msra.mxu0 0.0
        %1863 = vmatprep.subr.mxu0 0.0
        %1864 = vmatpush1.msra.mxu0 0.0
        %1865 = vmatprep.subr.mxu0 0.0
        %1866 = vmatpush1.msra.mxu0 0.0
        %1867 = vmatprep.subr.mxu0 0.0
        %1868 = vmatpush1.msra.mxu0 0.0
        %1869 = vmatprep.subr.mxu0 0.0
        %1870 = vmatpush1.msra.mxu0 0.0
        %1871 = vmatprep.subr.mxu0 0.0
        %1872 = vmatpush1.msra.mxu0 0.0
        %1873 = vmatprep.subr.mxu0 0.0
        %1874 = vmatpush1.msra.mxu0 0.0
        %1875 = vmatprep.subr.mxu0 0.0
        %1876 = vmatpush1.msra.mxu0 0.0
        %1877 = vmatprep.subr.mxu0 0.0
        %1878 = vmatpush1.msra.mxu0 0.0
        %1879 = vmatprep.subr.mxu0 0.0
        %1880 = vmatpush1.msra.mxu0 0.0
        %1881 = vmatprep.subr.mxu0 0.0
        %1882 = vmatpush1.msra.mxu0 0.0
        %1883 = vmatprep.subr.mxu0 0.0
        %1884 = vmatpush1.msra.mxu0 0.0
        %1885 = vmatprep.subr.mxu0 0.0
        %1886 = vmatpush1.msra.mxu0 0.0
        %1887 = vmatprep.subr.mxu0 0.0
        %1888 = vmatpush1.msra.mxu0 0.0
        %1889 = vmatprep.subr.mxu0 0.0
        %1890 = vmatpush1.msra.mxu0 0.0
        %1891 = vmatprep.subr.mxu0 0.0
        %1892 = vmatpush1.msra.mxu0 0.0
        %1893 = vmatprep.mubr.f32.mxu0 0.0
        %1894 = vmatmul.mubr.f32.gmra.mrb[0].mxu0 %v1827
        %v1895 = vpop.f32.mrb[0].mxu0
        %v1896 = vadd.f32 0.0, %v1895
        %v1897 = vpop.f32.mrb[0].mxu0
        %1898 = vdwg.mxu0
        %v1900 = vsel %vm955, %v1726, 0
        %1902 = vmatprep.subr.mxu0 0.0
        %1903 = vmatpush1.msra.mxu0 %v1741
        %1904 = vmatprep.subr.mxu0 0.0
        %1905 = vmatpush1.msra.mxu0 %v1742
        %1906 = vmatprep.subr.mxu0 0.0
        %1907 = vmatpush1.msra.mxu0 0.0
        %1908 = vmatprep.subr.mxu0 0.0
        %1909 = vmatpush1.msra.mxu0 0.0
        %1910 = vmatprep.subr.mxu0 0.0
        %1911 = vmatpush1.msra.mxu0 0.0
        %1912 = vmatprep.subr.mxu0 0.0
        %1913 = vmatpush1.msra.mxu0 0.0
        %1914 = vmatprep.subr.mxu0 0.0
        %1915 = vmatpush1.msra.mxu0 0.0
        %1916 = vmatprep.subr.mxu0 0.0
        %1917 = vmatpush1.msra.mxu0 0.0
        %1918 = vmatprep.subr.mxu0 0.0
        %1919 = vmatpush1.msra.mxu0 0.0
        %1920 = vmatprep.subr.mxu0 0.0
        %1921 = vmatpush1.msra.mxu0 0.0
        %1922 = vmatprep.subr.mxu0 0.0
        %1923 = vmatpush1.msra.mxu0 0.0
        %1924 = vmatprep.subr.mxu0 0.0
        %1925 = vmatpush1.msra.mxu0 0.0
        %1926 = vmatprep.subr.mxu0 0.0
        %1927 = vmatpush1.msra.mxu0 0.0
        %1928 = vmatprep.subr.mxu0 0.0
        %1929 = vmatpush1.msra.mxu0 0.0
        %1930 = vmatprep.subr.mxu0 0.0
        %1931 = vmatpush1.msra.mxu0 0.0
        %1932 = vmatprep.subr.mxu0 0.0
        %1933 = vmatpush1.msra.mxu0 0.0
        %1934 = vmatprep.subr.mxu0 0.0
        %1935 = vmatpush1.msra.mxu0 0.0
        %1936 = vmatprep.subr.mxu0 0.0
        %1937 = vmatpush1.msra.mxu0 0.0
        %1938 = vmatprep.subr.mxu0 0.0
        %1939 = vmatpush1.msra.mxu0 0.0
        %1940 = vmatprep.subr.mxu0 0.0
        %1941 = vmatpush1.msra.mxu0 0.0
        %1942 = vmatprep.subr.mxu0 0.0
        %1943 = vmatpush1.msra.mxu0 0.0
        %1944 = vmatprep.subr.mxu0 0.0
        %1945 = vmatpush1.msra.mxu0 0.0
        %1946 = vmatprep.subr.mxu0 0.0
        %1947 = vmatpush1.msra.mxu0 0.0
        %1948 = vmatprep.subr.mxu0 0.0
        %1949 = vmatpush1.msra.mxu0 0.0
        %1950 = vmatprep.subr.mxu0 0.0
        %1951 = vmatpush1.msra.mxu0 0.0
        %1952 = vmatprep.subr.mxu0 0.0
        %1953 = vmatpush1.msra.mxu0 0.0
        %1954 = vmatprep.subr.mxu0 0.0
        %1955 = vmatpush1.msra.mxu0 0.0
        %1956 = vmatprep.subr.mxu0 0.0
        %1957 = vmatpush1.msra.mxu0 0.0
        %1958 = vmatprep.subr.mxu0 0.0
        %1959 = vmatpush1.msra.mxu0 0.0
        %1960 = vmatprep.subr.mxu0 0.0
        %1961 = vmatpush1.msra.mxu0 0.0
        %1962 = vmatprep.subr.mxu0 0.0
        %1963 = vmatpush1.msra.mxu0 0.0
        %1964 = vmatprep.subr.mxu0 0.0
        %1965 = vmatpush1.msra.mxu0 0.0
        %1966 = vmatprep.mubr.f32.mxu0 0.0
        %1967 = vmatmul.mubr.f32.gmra.mrb[0].mxu0 %v1900
        %v1968 = vpop.f32.mrb[0].mxu0
        %v1969 = vadd.f32 0.0, %v1968
        %v1970 = vpop.f32.mrb[0].mxu0
        %1971 = vdwg.mxu0
        %v1973 = vsel %vm955, %v1728, 0
        %1975 = vmatprep.subr.mxu0 0.0
        %1976 = vmatpush1.msra.mxu0 %v1743
        %1977 = vmatprep.subr.mxu0 0.0
        %1978 = vmatpush1.msra.mxu0 %v1744
        %1979 = vmatprep.subr.mxu0 0.0
        %1980 = vmatpush1.msra.mxu0 0.0
        %1981 = vmatprep.subr.mxu0 0.0
        %1982 = vmatpush1.msra.mxu0 0.0
        %1983 = vmatprep.subr.mxu0 0.0
        %1984 = vmatpush1.msra.mxu0 0.0
        %1985 = vmatprep.subr.mxu0 0.0
        %1986 = vmatpush1.msra.mxu0 0.0
        %1987 = vmatprep.subr.mxu0 0.0
        %1988 = vmatpush1.msra.mxu0 0.0
        %1989 = vmatprep.subr.mxu0 0.0
        %1990 = vmatpush1.msra.mxu0 0.0
        %1991 = vmatprep.subr.mxu0 0.0
        %1992 = vmatpush1.msra.mxu0 0.0
        %1993 = vmatprep.subr.mxu0 0.0
        %1994 = vmatpush1.msra.mxu0 0.0
        %1995 = vmatprep.subr.mxu0 0.0
        %1996 = vmatpush1.msra.mxu0 0.0
        %1997 = vmatprep.subr.mxu0 0.0
        %1998 = vmatpush1.msra.mxu0 0.0
        %1999 = vmatprep.subr.mxu0 0.0
        %2000 = vmatpush1.msra.mxu0 0.0
        %2001 = vmatprep.subr.mxu0 0.0
        %2002 = vmatpush1.msra.mxu0 0.0
        %2003 = vmatprep.subr.mxu0 0.0
        %2004 = vmatpush1.msra.mxu0 0.0
        %2005 = vmatprep.subr.mxu0 0.0
        %2006 = vmatpush1.msra.mxu0 0.0
        %2007 = vmatprep.subr.mxu0 0.0
        %2008 = vmatpush1.msra.mxu0 0.0
        %2009 = vmatprep.subr.mxu0 0.0
        %2010 = vmatpush1.msra.mxu0 0.0
        %2011 = vmatprep.subr.mxu0 0.0
        %2012 = vmatpush1.msra.mxu0 0.0
        %2013 = vmatprep.subr.mxu0 0.0
        %2014 = vmatpush1.msra.mxu0 0.0
        %2015 = vmatprep.subr.mxu0 0.0
        %2016 = vmatpush1.msra.mxu0 0.0
        %2017 = vmatprep.subr.mxu0 0.0
        %2018 = vmatpush1.msra.mxu0 0.0
        %2019 = vmatprep.subr.mxu0 0.0
        %2020 = vmatpush1.msra.mxu0 0.0
        %2021 = vmatprep.subr.mxu0 0.0
        %2022 = vmatpush1.msra.mxu0 0.0
        %2023 = vmatprep.subr.mxu0 0.0
        %2024 = vmatpush1.msra.mxu0 0.0
        %2025 = vmatprep.subr.mxu0 0.0
        %2026 = vmatpush1.msra.mxu0 0.0
        %2027 = vmatprep.subr.mxu0 0.0
        %2028 = vmatpush1.msra.mxu0 0.0
        %2029 = vmatprep.subr.mxu0 0.0
        %2030 = vmatpush1.msra.mxu0 0.0
        %2031 = vmatprep.subr.mxu0 0.0
        %2032 = vmatpush1.msra.mxu0 0.0
        %2033 = vmatprep.subr.mxu0 0.0
        %2034 = vmatpush1.msra.mxu0 0.0
        %2035 = vmatprep.subr.mxu0 0.0
        %2036 = vmatpush1.msra.mxu0 0.0
        %2037 = vmatprep.subr.mxu0 0.0
        %2038 = vmatpush1.msra.mxu0 0.0
        %2039 = vmatprep.mubr.f32.mxu0 0.0
        %2040 = vmatmul.mubr.f32.gmra.mrb[0].mxu0 %v1973
        %v2041 = vpop.f32.mrb[0].mxu0
        %v2042 = vadd.f32 0.0, %v2041
        %v2043 = vpop.f32.mrb[0].mxu0
        %2044 = vdwg.mxu0
        %v2046 = vsel %vm955, %v1730, 0
        %2048 = vmatprep.subr.mxu0 0.0
        %2049 = vmatpush1.msra.mxu0 %v1745
        %2050 = vmatprep.subr.mxu0 0.0
        %2051 = vmatpush1.msra.mxu0 %v1746
        %2052 = vmatprep.subr.mxu0 0.0
        %2053 = vmatpush1.msra.mxu0 0.0
        %2054 = vmatprep.subr.mxu0 0.0
        %2055 = vmatpush1.msra.mxu0 0.0
        %2056 = vmatprep.subr.mxu0 0.0
        %2057 = vmatpush1.msra.mxu0 0.0
        %2058 = vmatprep.subr.mxu0 0.0
        %2059 = vmatpush1.msra.mxu0 0.0
        %2060 = vmatprep.subr.mxu0 0.0
        %2061 = vmatpush1.msra.mxu0 0.0
        %2062 = vmatprep.subr.mxu0 0.0
        %2063 = vmatpush1.msra.mxu0 0.0
        %2064 = vmatprep.subr.mxu0 0.0
        %2065 = vmatpush1.msra.mxu0 0.0
        %2066 = vmatprep.subr.mxu0 0.0
        %2067 = vmatpush1.msra.mxu0 0.0
        %2068 = vmatprep.subr.mxu0 0.0
        %2069 = vmatpush1.msra.mxu0 0.0
        %2070 = vmatprep.subr.mxu0 0.0
        %2071 = vmatpush1.msra.mxu0 0.0
        %2072 = vmatprep.subr.mxu0 0.0
        %2073 = vmatpush1.msra.mxu0 0.0
        %2074 = vmatprep.subr.mxu0 0.0
        %2075 = vmatpush1.msra.mxu0 0.0
        %2076 = vmatprep.subr.mxu0 0.0
        %2077 = vmatpush1.msra.mxu0 0.0
        %2078 = vmatprep.subr.mxu0 0.0
        %2079 = vmatpush1.msra.mxu0 0.0
        %2080 = vmatprep.subr.mxu0 0.0
        %2081 = vmatpush1.msra.mxu0 0.0
        %2082 = vmatprep.subr.mxu0 0.0
        %2083 = vmatpush1.msra.mxu0 0.0
        %2084 = vmatprep.subr.mxu0 0.0
        %2085 = vmatpush1.msra.mxu0 0.0
        %2086 = vmatprep.subr.mxu0 0.0
        %2087 = vmatpush1.msra.mxu0 0.0
        %2088 = vmatprep.subr.mxu0 0.0
        %2089 = vmatpush1.msra.mxu0 0.0
        %2090 = vmatprep.subr.mxu0 0.0
        %2091 = vmatpush1.msra.mxu0 0.0
        %2092 = vmatprep.subr.mxu0 0.0
        %2093 = vmatpush1.msra.mxu0 0.0
        %2094 = vmatprep.subr.mxu0 0.0
        %2095 = vmatpush1.msra.mxu0 0.0
        %2096 = vmatprep.subr.mxu0 0.0
        %2097 = vmatpush1.msra.mxu0 0.0
        %2098 = vmatprep.subr.mxu0 0.0
        %2099 = vmatpush1.msra.mxu0 0.0
        %2100 = vmatprep.subr.mxu0 0.0
        %2101 = vmatpush1.msra.mxu0 0.0
        %2102 = vmatprep.subr.mxu0 0.0
        %2103 = vmatpush1.msra.mxu0 0.0
        %2104 = vmatprep.subr.mxu0 0.0
        %2105 = vmatpush1.msra.mxu0 0.0
        %2106 = vmatprep.subr.mxu0 0.0
        %2107 = vmatpush1.msra.mxu0 0.0
        %2108 = vmatprep.subr.mxu0 0.0
        %2109 = vmatpush1.msra.mxu0 0.0
        %2110 = vmatprep.subr.mxu0 0.0
        %2111 = vmatpush1.msra.mxu0 0.0
        %2112 = vmatprep.mubr.f32.mxu0 0.0
        %2113 = vmatmul.mubr.f32.gmra.mrb[0].mxu0 %v2046
        %v2114 = vpop.f32.mrb[0].mxu0
        %v2115 = vadd.f32 0.0, %v2114
        %v2116 = vpop.f32.mrb[0].mxu0
        %2117 = vdwg.mxu0
        %v2119 = vsel %vm955, %v1732, 0
        %2121 = vmatprep.subr.mxu0 0.0
        %2122 = vmatpush1.msra.mxu0 %v1747
        %2123 = vmatprep.subr.mxu0 0.0
        %2124 = vmatpush1.msra.mxu0 %v1748
        %2125 = vmatprep.subr.mxu0 0.0
        %2126 = vmatpush1.msra.mxu0 0.0
        %2127 = vmatprep.subr.mxu0 0.0
        %2128 = vmatpush1.msra.mxu0 0.0
        %2129 = vmatprep.subr.mxu0 0.0
        %2130 = vmatpush1.msra.mxu0 0.0
        %2131 = vmatprep.subr.mxu0 0.0
        %2132 = vmatpush1.msra.mxu0 0.0
        %2133 = vmatprep.subr.mxu0 0.0
        %2134 = vmatpush1.msra.mxu0 0.0
        %2135 = vmatprep.subr.mxu0 0.0
        %2136 = vmatpush1.msra.mxu0 0.0
        %2137 = vmatprep.subr.mxu0 0.0
        %2138 = vmatpush1.msra.mxu0 0.0
        %2139 = vmatprep.subr.mxu0 0.0
        %2140 = vmatpush1.msra.mxu0 0.0
        %2141 = vmatprep.subr.mxu0 0.0
        %2142 = vmatpush1.msra.mxu0 0.0
        %2143 = vmatprep.subr.mxu0 0.0
        %2144 = vmatpush1.msra.mxu0 0.0
        %2145 = vmatprep.subr.mxu0 0.0
        %2146 = vmatpush1.msra.mxu0 0.0
        %2147 = vmatprep.subr.mxu0 0.0
        %2148 = vmatpush1.msra.mxu0 0.0
        %2149 = vmatprep.subr.mxu0 0.0
        %2150 = vmatpush1.msra.mxu0 0.0
        %2151 = vmatprep.subr.mxu0 0.0
        %2152 = vmatpush1.msra.mxu0 0.0
        %2153 = vmatprep.subr.mxu0 0.0
        %2154 = vmatpush1.msra.mxu0 0.0
        %2155 = vmatprep.subr.mxu0 0.0
        %2156 = vmatpush1.msra.mxu0 0.0
        %2157 = vmatprep.subr.mxu0 0.0
        %2158 = vmatpush1.msra.mxu0 0.0
        %2159 = vmatprep.subr.mxu0 0.0
        %2160 = vmatpush1.msra.mxu0 0.0
        %2161 = vmatprep.subr.mxu0 0.0
        %2162 = vmatpush1.msra.mxu0 0.0
        %2163 = vmatprep.subr.mxu0 0.0
        %2164 = vmatpush1.msra.mxu0 0.0
        %2165 = vmatprep.subr.mxu0 0.0
        %2166 = vmatpush1.msra.mxu0 0.0
        %2167 = vmatprep.subr.mxu0 0.0
        %2168 = vmatpush1.msra.mxu0 0.0
        %2169 = vmatprep.subr.mxu0 0.0
        %2170 = vmatpush1.msra.mxu0 0.0
        %2171 = vmatprep.subr.mxu0 0.0
        %2172 = vmatpush1.msra.mxu0 0.0
        %2173 = vmatprep.subr.mxu0 0.0
        %2174 = vmatpush1.msra.mxu0 0.0
        %2175 = vmatprep.subr.mxu0 0.0
        %2176 = vmatpush1.msra.mxu0 0.0
        %2177 = vmatprep.subr.mxu0 0.0
        %2178 = vmatpush1.msra.mxu0 0.0
        %2179 = vmatprep.subr.mxu0 0.0
        %2180 = vmatpush1.msra.mxu0 0.0
        %2181 = vmatprep.subr.mxu0 0.0
        %2182 = vmatpush1.msra.mxu0 0.0
        %2183 = vmatprep.subr.mxu0 0.0
        %2184 = vmatpush1.msra.mxu0 0.0
        %2185 = vmatprep.mubr.f32.mxu0 0.0
        %2186 = vmatmul.mubr.f32.gmra.mrb[0].mxu0 %v2119
        %v2187 = vpop.f32.mrb[0].mxu0
        %v2188 = vadd.f32 0.0, %v2187
        %v2189 = vpop.f32.mrb[0].mxu0
        %2190 = vdwg.mxu0
        %v2192 = vsel %vm955, %v1734, 0
        %2194 = vmatprep.subr.mxu0 0.0
        %2195 = vmatpush1.msra.mxu0 %v1749
        %2196 = vmatprep.subr.mxu0 0.0
        %2197 = vmatpush1.msra.mxu0 %v1750
        %2198 = vmatprep.subr.mxu0 0.0
        %2199 = vmatpush1.msra.mxu0 0.0
        %2200 = vmatprep.subr.mxu0 0.0
        %2201 = vmatpush1.msra.mxu0 0.0
        %2202 = vmatprep.subr.mxu0 0.0
        %2203 = vmatpush1.msra.mxu0 0.0
        %2204 = vmatprep.subr.mxu0 0.0
        %2205 = vmatpush1.msra.mxu0 0.0
        %2206 = vmatprep.subr.mxu0 0.0
        %2207 = vmatpush1.msra.mxu0 0.0
        %2208 = vmatprep.subr.mxu0 0.0
        %2209 = vmatpush1.msra.mxu0 0.0
        %2210 = vmatprep.subr.mxu0 0.0
        %2211 = vmatpush1.msra.mxu0 0.0
        %2212 = vmatprep.subr.mxu0 0.0
        %2213 = vmatpush1.msra.mxu0 0.0
        %2214 = vmatprep.subr.mxu0 0.0
        %2215 = vmatpush1.msra.mxu0 0.0
        %2216 = vmatprep.subr.mxu0 0.0
        %2217 = vmatpush1.msra.mxu0 0.0
        %2218 = vmatprep.subr.mxu0 0.0
        %2219 = vmatpush1.msra.mxu0 0.0
        %2220 = vmatprep.subr.mxu0 0.0
        %2221 = vmatpush1.msra.mxu0 0.0
        %2222 = vmatprep.subr.mxu0 0.0
        %2223 = vmatpush1.msra.mxu0 0.0
        %2224 = vmatprep.subr.mxu0 0.0
        %2225 = vmatpush1.msra.mxu0 0.0
        %2226 = vmatprep.subr.mxu0 0.0
        %2227 = vmatpush1.msra.mxu0 0.0
        %2228 = vmatprep.subr.mxu0 0.0
        %2229 = vmatpush1.msra.mxu0 0.0
        %2230 = vmatprep.subr.mxu0 0.0
        %2231 = vmatpush1.msra.mxu0 0.0
        %2232 = vmatprep.subr.mxu0 0.0
        %2233 = vmatpush1.msra.mxu0 0.0
        %2234 = vmatprep.subr.mxu0 0.0
        %2235 = vmatpush1.msra.mxu0 0.0
        %2236 = vmatprep.subr.mxu0 0.0
        %2237 = vmatpush1.msra.mxu0 0.0
        %2238 = vmatprep.subr.mxu0 0.0
        %2239 = vmatpush1.msra.mxu0 0.0
        %2240 = vmatprep.subr.mxu0 0.0
        %2241 = vmatpush1.msra.mxu0 0.0
        %2242 = vmatprep.subr.mxu0 0.0
        %2243 = vmatpush1.msra.mxu0 0.0
        %2244 = vmatprep.subr.mxu0 0.0
        %2245 = vmatpush1.msra.mxu0 0.0
        %2246 = vmatprep.subr.mxu0 0.0
        %2247 = vmatpush1.msra.mxu0 0.0
        %2248 = vmatprep.subr.mxu0 0.0
        %2249 = vmatpush1.msra.mxu0 0.0
        %2250 = vmatprep.subr.mxu0 0.0
        %2251 = vmatpush1.msra.mxu0 0.0
        %2252 = vmatprep.subr.mxu0 0.0
        %2253 = vmatpush1.msra.mxu0 0.0
        %2254 = vmatprep.subr.mxu0 0.0
        %2255 = vmatpush1.msra.mxu0 0.0
        %2256 = vmatprep.subr.mxu0 0.0
        %2257 = vmatpush1.msra.mxu0 0.0
        %2258 = vmatprep.mubr.f32.mxu0 0.0
        %2259 = vmatmul.mubr.f32.gmra.mrb[0].mxu0 %v2192
        %v2260 = vpop.f32.mrb[0].mxu0
        %v2261 = vadd.f32 0.0, %v2260
        %v2262 = vpop.f32.mrb[0].mxu0
        %2263 = vdwg.mxu0
        %v2265 = vsel %vm955, %v1736, 0
        %2267 = vmatprep.subr.mxu0 0.0
        %2268 = vmatpush1.msra.mxu0 %v1751
        %2269 = vmatprep.subr.mxu0 0.0
        %2270 = vmatpush1.msra.mxu0 %v1752
        %2271 = vmatprep.subr.mxu0 0.0
        %2272 = vmatpush1.msra.mxu0 0.0
        %2273 = vmatprep.subr.mxu0 0.0
        %2274 = vmatpush1.msra.mxu0 0.0
        %2275 = vmatprep.subr.mxu0 0.0
        %2276 = vmatpush1.msra.mxu0 0.0
        %2277 = vmatprep.subr.mxu0 0.0
        %2278 = vmatpush1.msra.mxu0 0.0
        %2279 = vmatprep.subr.mxu0 0.0
        %2280 = vmatpush1.msra.mxu0 0.0
        %2281 = vmatprep.subr.mxu0 0.0
        %2282 = vmatpush1.msra.mxu0 0.0
        %2283 = vmatprep.subr.mxu0 0.0
        %2284 = vmatpush1.msra.mxu0 0.0
        %2285 = vmatprep.subr.mxu0 0.0
        %2286 = vmatpush1.msra.mxu0 0.0
        %2287 = vmatprep.subr.mxu0 0.0
        %2288 = vmatpush1.msra.mxu0 0.0
        %2289 = vmatprep.subr.mxu0 0.0
        %2290 = vmatpush1.msra.mxu0 0.0
        %2291 = vmatprep.subr.mxu0 0.0
        %2292 = vmatpush1.msra.mxu0 0.0
        %2293 = vmatprep.subr.mxu0 0.0
        %2294 = vmatpush1.msra.mxu0 0.0
        %2295 = vmatprep.subr.mxu0 0.0
        %2296 = vmatpush1.msra.mxu0 0.0
        %2297 = vmatprep.subr.mxu0 0.0
        %2298 = vmatpush1.msra.mxu0 0.0
        %2299 = vmatprep.subr.mxu0 0.0
        %2300 = vmatpush1.msra.mxu0 0.0
        %2301 = vmatprep.subr.mxu0 0.0
        %2302 = vmatpush1.msra.mxu0 0.0
        %2303 = vmatprep.subr.mxu0 0.0
        %2304 = vmatpush1.msra.mxu0 0.0
        %2305 = vmatprep.subr.mxu0 0.0
        %2306 = vmatpush1.msra.mxu0 0.0
        %2307 = vmatprep.subr.mxu0 0.0
        %2308 = vmatpush1.msra.mxu0 0.0
        %2309 = vmatprep.subr.mxu0 0.0
        %2310 = vmatpush1.msra.mxu0 0.0
        %2311 = vmatprep.subr.mxu0 0.0
        %2312 = vmatpush1.msra.mxu0 0.0
        %2313 = vmatprep.subr.mxu0 0.0
        %2314 = vmatpush1.msra.mxu0 0.0
        %2315 = vmatprep.subr.mxu0 0.0
        %2316 = vmatpush1.msra.mxu0 0.0
        %2317 = vmatprep.subr.mxu0 0.0
        %2318 = vmatpush1.msra.mxu0 0.0
        %2319 = vmatprep.subr.mxu0 0.0
        %2320 = vmatpush1.msra.mxu0 0.0
        %2321 = vmatprep.subr.mxu0 0.0
        %2322 = vmatpush1.msra.mxu0 0.0
        %2323 = vmatprep.subr.mxu0 0.0
        %2324 = vmatpush1.msra.mxu0 0.0
        %2325 = vmatprep.subr.mxu0 0.0
        %2326 = vmatpush1.msra.mxu0 0.0
        %2327 = vmatprep.subr.mxu0 0.0
        %2328 = vmatpush1.msra.mxu0 0.0
        %2329 = vmatprep.subr.mxu0 0.0
        %2330 = vmatpush1.msra.mxu0 0.0
        %2331 = vmatprep.mubr.f32.mxu0 0.0
        %2332 = vmatmul.mubr.f32.gmra.mrb[0].mxu0 %v2265
        %v2333 = vpop.f32.mrb[0].mxu0
        %v2334 = vadd.f32 0.0, %v2333
        %v2335 = vpop.f32.mrb[0].mxu0
        %2336 = vdwg.mxu0
        %2337 = vst.msk [vmem:[#allocation5] sm:$0xff] %vm955, %v1823
        %2339 = vrot.lane.b32.xlu0 %v1896, 16
        %v2340 = vpop.permute.xlu0 %2339
        %vm2342 = vcmask 261248
        %2343 = vst.msk [vmem:[#allocation5] sm:$0xff] %vm2342, %v2340
        %2345 = vrot.lane.b32.xlu0 %v1969, 32
        %v2346 = vpop.permute.xlu0 %2345
        %vm2348 = vcmask 392448
        %2349 = vst.msk [vmem:[#allocation5] sm:$0xff] %vm2348, %v2346
        %2351 = vrot.lane.b32.xlu0 %v2042, 48
        %v2352 = vpop.permute.xlu0 %2351
        %vm2354 = vcmask 523648
        %2355 = vst.msk [vmem:[#allocation5] sm:$0xff] %vm2354, %v2352
        %2357 = vrot.lane.b32.xlu0 %v2115, 64
        %v2358 = vpop.permute.xlu0 %2357
        %vm2360 = vcmask 654848
        %2361 = vst.msk [vmem:[#allocation5] sm:$0xff] %vm2360, %v2358
        %2363 = vrot.lane.b32.xlu0 %v2188, 80
        %v2364 = vpop.permute.xlu0 %2363
        %vm2366 = vcmask 786048
        %2367 = vst.msk [vmem:[#allocation5] sm:$0xff] %vm2366, %v2364
        %2369 = vrot.lane.b32.xlu0 %v2261, 96
        %v2370 = vpop.permute.xlu0 %2369
        %vm2372 = vcmask 917248
        %2373 = vst.msk [vmem:[#allocation5] sm:$0xff] %vm2372, %v2370
        %2375 = vrot.lane.b32.xlu0 %v2334, 112
        %v2376 = vpop.permute.xlu0 %2375
        %vm2378 = vcmask 1048448
        %2379 = vst.msk [vmem:[#allocation5] sm:$0xff] %vm2378, %v2376
        %v2380 = vld [vmem:[#allocation5] sm:$0xff]
        %v2381 = vld [vmem:[#allocation12] sm:$0xff]
        %v2382 = vld [vmem:[#allocation12 + $0x8] sm:$0xff]
        %v2383 = vld [vmem:[#allocation12 + $0x10] sm:$0xff]
        %v2384 = vld [vmem:[#allocation12 + $0x18] sm:$0xff]
        %v2385 = vld [vmem:[#allocation12 + $0x20] sm:$0xff]
        %v2386 = vld [vmem:[#allocation12 + $0x28] sm:$0xff]
        %v2387 = vld [vmem:[#allocation12 + $0x30] sm:$0xff]
        %v2388 = vld [vmem:[#allocation12 + $0x38] sm:$0xff]
        %v2389 = vld [vmem:[#allocation12 + $0x40] sm:$0xff]
        %v2390 = vld [vmem:[#allocation12 + $0x48] sm:$0xff]
        %v2391 = vld [vmem:[#allocation12 + $0x50] sm:$0xff]
        %v2392 = vld [vmem:[#allocation12 + $0x58] sm:$0xff]
        %v2393 = vld [vmem:[#allocation12 + $0x60] sm:$0xff]
        %v2394 = vld [vmem:[#allocation12 + $0x68] sm:$0xff]
        %v2395 = vld [vmem:[#allocation12 + $0x70] sm:$0xff]
        %v2396 = vld [vmem:[#allocation12 + $0x78] sm:$0xff]
        %v2397 = vld [vmem:[%s6] sm:$0x1]
        %v2399 = vlaneseq
        %v2400 = vshrl.u32 %v2399, 7
        %v2401 = vsub.s32 0, %v2400
        %v2402 = vrot.slane %v2397, %v2401
        %2404 = vmatprep.subr.mxu0 0.0
        %2405 = vmatpush1.msra.mxu0 %v2381
        %2406 = vmatprep.subr.mxu0 0.0
        %2407 = vmatpush1.msra.mxu0 %v2382
        %2408 = vmatprep.subr.mxu0 0.0
        %2409 = vmatpush1.msra.mxu0 %v2383
        %2410 = vmatprep.subr.mxu0 0.0
        %2411 = vmatpush1.msra.mxu0 %v2384
        %2412 = vmatprep.subr.mxu0 0.0
        %2413 = vmatpush1.msra.mxu0 %v2385
        %2414 = vmatprep.subr.mxu0 0.0
        %2415 = vmatpush1.msra.mxu0 %v2386
        %2416 = vmatprep.subr.mxu0 0.0
        %2417 = vmatpush1.msra.mxu0 %v2387
        %2418 = vmatprep.subr.mxu0 0.0
        %2419 = vmatpush1.msra.mxu0 %v2388
        %2420 = vmatprep.subr.mxu0 0.0
        %2421 = vmatpush1.msra.mxu0 %v2389
        %2422 = vmatprep.subr.mxu0 0.0
        %2423 = vmatpush1.msra.mxu0 %v2390
        %2424 = vmatprep.subr.mxu0 0.0
        %2425 = vmatpush1.msra.mxu0 %v2391
        %2426 = vmatprep.subr.mxu0 0.0
        %2427 = vmatpush1.msra.mxu0 %v2392
        %2428 = vmatprep.subr.mxu0 0.0
        %2429 = vmatpush1.msra.mxu0 %v2393
        %2430 = vmatprep.subr.mxu0 0.0
        %2431 = vmatpush1.msra.mxu0 %v2394
        %2432 = vmatprep.subr.mxu0 0.0
        %2433 = vmatpush1.msra.mxu0 %v2395
        %2434 = vmatprep.subr.mxu0 0.0
        %2435 = vmatpush1.msra.mxu0 %v2396
        %2436 = vmatprep.subr.mxu0 0.0
        %2437 = vmatpush1.msra.mxu0 0.0
        %2438 = vmatprep.subr.mxu0 0.0
        %2439 = vmatpush1.msra.mxu0 0.0
        %2440 = vmatprep.subr.mxu0 0.0
        %2441 = vmatpush1.msra.mxu0 0.0
        %2442 = vmatprep.subr.mxu0 0.0
        %2443 = vmatpush1.msra.mxu0 0.0
        %2444 = vmatprep.subr.mxu0 0.0
        %2445 = vmatpush1.msra.mxu0 0.0
        %2446 = vmatprep.subr.mxu0 0.0
        %2447 = vmatpush1.msra.mxu0 0.0
        %2448 = vmatprep.subr.mxu0 0.0
        %2449 = vmatpush1.msra.mxu0 0.0
        %2450 = vmatprep.subr.mxu0 0.0
        %2451 = vmatpush1.msra.mxu0 0.0
        %2452 = vmatprep.subr.mxu0 0.0
        %2453 = vmatpush1.msra.mxu0 0.0
        %2454 = vmatprep.subr.mxu0 0.0
        %2455 = vmatpush1.msra.mxu0 0.0
        %2456 = vmatprep.subr.mxu0 0.0
        %2457 = vmatpush1.msra.mxu0 0.0
        %2458 = vmatprep.subr.mxu0 0.0
        %2459 = vmatpush1.msra.mxu0 0.0
        %2460 = vmatprep.subr.mxu0 0.0
        %2461 = vmatpush1.msra.mxu0 0.0
        %2462 = vmatprep.subr.mxu0 0.0
        %2463 = vmatpush1.msra.mxu0 0.0
        %2464 = vmatprep.subr.mxu0 0.0
        %2465 = vmatpush1.msra.mxu0 0.0
        %2466 = vmatprep.subr.mxu0 0.0
        %2467 = vmatpush1.msra.mxu0 0.0
        %2468 = vmatprep.mubr.f32.mxu0 0.0
        %2469 = vmatmul.mubr.f32.gmra.mrb[0].mxu0 %v2380
        %v2470 = vpop.f32.mrb[0].mxu0
        %v2471 = vadd.f32 %v2402, %v2470
        %v2472 = vpop.f32.mrb[0].mxu0
        %2473 = vdwg.mxu0
        %v2474 = vadd.f32 %v839, %v2471
        %v2475 = vld [vmem:[%s7] sm:$0x1]
        %v2476 = vld [vmem:[%s8] sm:$0x1]
        %2477 = vadd.xlane.f32.xlu0 %v2474
        %v2478 = vpop.xlane.xlu0 %2477
        %v2479 = vmul.f32 %v2478, %v844
        %v2480 = vsub.f32 %v2474, %v2479
        %v2481 = vmul.f32 %v2480, %v2480
        %2482 = vadd.xlane.f32.xlu0 %v2481
        %v2483 = vpop.xlane.xlu0 %2482
        %v2484 = vmul.f32 %v2483, %v844
        %v2485 = vadd.f32 %v2484, 1e-05
        %v2486 = vrsqrt.pop %v2485
        %v2487 = vmul.f32 %v2480, %v2486
        %v2489 = vlaneseq
        %v2490 = vshrl.u32 %v2489, 7
        %v2491 = vsub.s32 0, %v2490
        %v2492 = vrot.slane %v2475, %v2491
        %v2494 = vmul.f32 %v2487, %v2492
        %v2496 = vlaneseq
        %v2497 = vshrl.u32 %v2496, 7
        %v2498 = vsub.s32 0, %v2497
        %v2499 = vrot.slane %v2476, %v2498
        %v2501 = vadd.f32 %v2494, %v2499
        %v2502 = vld [vmem:[#allocation14] sm:$0xff]
        %v2503 = vld [vmem:[#allocation14 + $0x8] sm:$0xff]
        %v2504 = vld [vmem:[#allocation14 + $0x10] sm:$0xff]
        %v2505 = vld [vmem:[#allocation14 + $0x18] sm:$0xff]
        %v2506 = vld [vmem:[#allocation14 + $0x20] sm:$0xff]
        %v2507 = vld [vmem:[#allocation14 + $0x28] sm:$0xff]
        %v2508 = vld [vmem:[#allocation14 + $0x30] sm:$0xff]
        %v2509 = vld [vmem:[#allocation14 + $0x38] sm:$0xff]
        %v2510 = vld [vmem:[#allocation14 + $0x40] sm:$0xff]
        %v2511 = vld [vmem:[#allocation14 + $0x48] sm:$0xff]
        %v2512 = vld [vmem:[#allocation14 + $0x50] sm:$0xff]
        %v2513 = vld [vmem:[#allocation14 + $0x58] sm:$0xff]
        %v2514 = vld [vmem:[#allocation14 + $0x60] sm:$0xff]
        %v2515 = vld [vmem:[#allocation14 + $0x68] sm:$0xff]
        %v2516 = vld [vmem:[#allocation14 + $0x70] sm:$0xff]
        %v2517 = vld [vmem:[#allocation14 + $0x78] sm:$0xff]
        %v2518 = vld [vmem:[#allocation14 + $0x80] sm:$0xff]
        %v2519 = vld [vmem:[#allocation14 + $0x88] sm:$0xff]
        %v2520 = vld [vmem:[#allocation14 + $0x90] sm:$0xff]
        %v2521 = vld [vmem:[#allocation14 + $0x98] sm:$0xff]
        %v2522 = vld [vmem:[#allocation14 + $0xa0] sm:$0xff]
        %v2523 = vld [vmem:[#allocation14 + $0xa8] sm:$0xff]
        %v2524 = vld [vmem:[#allocation14 + $0xb0] sm:$0xff]
        %v2525 = vld [vmem:[#allocation14 + $0xb8] sm:$0xff]
        %v2526 = vld [vmem:[#allocation14 + $0xc0] sm:$0xff]
        %v2527 = vld [vmem:[#allocation14 + $0xc8] sm:$0xff]
        %v2528 = vld [vmem:[#allocation14 + $0xd0] sm:$0xff]
        %v2529 = vld [vmem:[#allocation14 + $0xd8] sm:$0xff]
        %v2530 = vld [vmem:[#allocation14 + $0xe0] sm:$0xff]
        %v2531 = vld [vmem:[#allocation14 + $0xe8] sm:$0xff]
        %v2532 = vld [vmem:[#allocation14 + $0xf0] sm:$0xff]
        %v2533 = vld [vmem:[#allocation14 + $0xf8] sm:$0xff]
        %v2534 = vld [vmem:[#allocation14 + $0x100] sm:$0xff]
        %v2535 = vld [vmem:[#allocation14 + $0x108] sm:$0xff]
        %v2536 = vld [vmem:[#allocation14 + $0x110] sm:$0xff]
        %v2537 = vld [vmem:[#allocation14 + $0x118] sm:$0xff]
        %v2538 = vld [vmem:[#allocation14 + $0x120] sm:$0xff]
        %v2539 = vld [vmem:[#allocation14 + $0x128] sm:$0xff]
        %v2540 = vld [vmem:[#allocation14 + $0x130] sm:$0xff]
        %v2541 = vld [vmem:[#allocation14 + $0x138] sm:$0xff]
        %v2542 = vld [vmem:[#allocation14 + $0x140] sm:$0xff]
        %v2543 = vld [vmem:[#allocation14 + $0x148] sm:$0xff]
        %v2544 = vld [vmem:[#allocation14 + $0x150] sm:$0xff]
        %v2545 = vld [vmem:[#allocation14 + $0x158] sm:$0xff]
        %v2546 = vld [vmem:[#allocation14 + $0x160] sm:$0xff]
        %v2547 = vld [vmem:[#allocation14 + $0x168] sm:$0xff]
        %v2548 = vld [vmem:[#allocation14 + $0x170] sm:$0xff]
        %v2549 = vld [vmem:[#allocation14 + $0x178] sm:$0xff]
        %v2550 = vld [vmem:[#allocation14 + $0x180] sm:$0xff]
        %v2551 = vld [vmem:[#allocation14 + $0x188] sm:$0xff]
        %v2552 = vld [vmem:[#allocation14 + $0x190] sm:$0xff]
        %v2553 = vld [vmem:[#allocation14 + $0x198] sm:$0xff]
        %v2554 = vld [vmem:[#allocation14 + $0x1a0] sm:$0xff]
        %v2555 = vld [vmem:[#allocation14 + $0x1a8] sm:$0xff]
        %v2556 = vld [vmem:[#allocation14 + $0x1b0] sm:$0xff]
        %v2557 = vld [vmem:[#allocation14 + $0x1b8] sm:$0xff]
        %v2558 = vld [vmem:[#allocation14 + $0x1c0] sm:$0xff]
        %v2559 = vld [vmem:[#allocation14 + $0x1c8] sm:$0xff]
        %v2560 = vld [vmem:[#allocation14 + $0x1d0] sm:$0xff]
        %v2561 = vld [vmem:[#allocation14 + $0x1d8] sm:$0xff]
        %v2562 = vld [vmem:[#allocation14 + $0x1e0] sm:$0xff]
        %v2563 = vld [vmem:[#allocation14 + $0x1e8] sm:$0xff]
        %v2564 = vld [vmem:[#allocation14 + $0x1f0] sm:$0xff]
        %v2565 = vld [vmem:[#allocation14 + $0x1f8] sm:$0xff]
        %v2566 = vld [vmem:[%s10] sm:$0xf]
        %v2568 = vlaneseq
        %v2569 = vshrl.u32 %v2568, 7
        %v2570 = vsub.s32 0, %v2569
        %v2571 = vrot.slane %v2566, %v2570
        %v2572 = vlaneseq
        %v2573 = vshrl.u32 %v2572, 7
        %v2574 = vsub.s32 1, %v2573
        %v2575 = vrot.slane %v2566, %v2574
        %v2576 = vlaneseq
        %v2577 = vshrl.u32 %v2576, 7
        %v2578 = vsub.s32 2, %v2577
        %v2579 = vrot.slane %v2566, %v2578
        %v2580 = vlaneseq
        %v2581 = vshrl.u32 %v2580, 7
        %v2582 = vsub.s32 3, %v2581
        %v2583 = vrot.slane %v2566, %v2582
        %2588 = vmatprep.subr.mxu0 %v2503
        %2589 = vmatpush1.msra.mxu0 %v2502
        %2590 = vmatprep.subr.mxu0 %v2507
        %2591 = vmatpush1.msra.mxu0 %v2506
        %2592 = vmatprep.subr.mxu0 %v2511
        %2593 = vmatpush1.msra.mxu0 %v2510
        %2594 = vmatprep.subr.mxu0 %v2515
        %2595 = vmatpush1.msra.mxu0 %v2514
        %2596 = vmatprep.subr.mxu0 %v2519
        %2597 = vmatpush1.msra.mxu0 %v2518
        %2598 = vmatprep.subr.mxu0 %v2523
        %2599 = vmatpush1.msra.mxu0 %v2522
        %2600 = vmatprep.subr.mxu0 %v2527
        %2601 = vmatpush1.msra.mxu0 %v2526
        %2602 = vmatprep.subr.mxu0 %v2531
        %2603 = vmatpush1.msra.mxu0 %v2530
        %2604 = vmatprep.subr.mxu0 %v2535
        %2605 = vmatpush1.msra.mxu0 %v2534
        %2606 = vmatprep.subr.mxu0 %v2539
        %2607 = vmatpush1.msra.mxu0 %v2538
        %2608 = vmatprep.subr.mxu0 %v2543
        %2609 = vmatpush1.msra.mxu0 %v2542
        %2610 = vmatprep.subr.mxu0 %v2547
        %2611 = vmatpush1.msra.mxu0 %v2546
        %2612 = vmatprep.subr.mxu0 %v2551
        %2613 = vmatpush1.msra.mxu0 %v2550
        %2614 = vmatprep.subr.mxu0 %v2555
        %2615 = vmatpush1.msra.mxu0 %v2554
        %2616 = vmatprep.subr.mxu0 %v2559
        %2617 = vmatpush1.msra.mxu0 %v2558
        %2618 = vmatprep.subr.mxu0 %v2563
        %2619 = vmatpush1.msra.mxu0 %v2562
        %2620 = vmatprep.subr.mxu0 0.0
        %2621 = vmatpush1.msra.mxu0 0.0
        %2622 = vmatprep.subr.mxu0 0.0
        %2623 = vmatpush1.msra.mxu0 0.0
        %2624 = vmatprep.subr.mxu0 0.0
        %2625 = vmatpush1.msra.mxu0 0.0
        %2626 = vmatprep.subr.mxu0 0.0
        %2627 = vmatpush1.msra.mxu0 0.0
        %2628 = vmatprep.subr.mxu0 0.0
        %2629 = vmatpush1.msra.mxu0 0.0
        %2630 = vmatprep.subr.mxu0 0.0
        %2631 = vmatpush1.msra.mxu0 0.0
        %2632 = vmatprep.subr.mxu0 0.0
        %2633 = vmatpush1.msra.mxu0 0.0
        %2634 = vmatprep.subr.mxu0 0.0
        %2635 = vmatpush1.msra.mxu0 0.0
        %2636 = vmatprep.subr.mxu0 0.0
        %2637 = vmatpush1.msra.mxu0 0.0
        %2638 = vmatprep.subr.mxu0 0.0
        %2639 = vmatpush1.msra.mxu0 0.0
        %2640 = vmatprep.subr.mxu0 0.0
        %2641 = vmatpush1.msra.mxu0 0.0
        %2642 = vmatprep.subr.mxu0 0.0
        %2643 = vmatpush1.msra.mxu0 0.0
        %2644 = vmatprep.subr.mxu0 0.0
        %2645 = vmatpush1.msra.mxu0 0.0
        %2646 = vmatprep.subr.mxu0 0.0
        %2647 = vmatpush1.msra.mxu0 0.0
        %2648 = vmatprep.subr.mxu0 0.0
        %2649 = vmatpush1.msra.mxu0 0.0
        %2650 = vmatprep.subr.mxu0 0.0
        %2651 = vmatpush1.msra.mxu0 0.0
        %2652 = vmatprep.mubr.f32.mxu0 0.0
        %2653 = vmatmul.mubr.f32.gmra.mrb[0].mxu0 %v2501
        %v2654 = vpop.f32.mrb[0].mxu0
        %v2655 = vadd.f32 %v2571, %v2654
        %v2656 = vpop.f32.mrb[0].mxu0
        %v2657 = vadd.f32 %v2575, %v2656
        %2658 = vdwg.mxu0
        %2659 = vmatprep.subr.mxu0 %v2505
        %2660 = vmatpush1.msra.mxu0 %v2504
        %2661 = vmatprep.subr.mxu0 %v2509
        %2662 = vmatpush1.msra.mxu0 %v2508
        %2663 = vmatprep.subr.mxu0 %v2513
        %2664 = vmatpush1.msra.mxu0 %v2512
        %2665 = vmatprep.subr.mxu0 %v2517
        %2666 = vmatpush1.msra.mxu0 %v2516
        %2667 = vmatprep.subr.mxu0 %v2521
        %2668 = vmatpush1.msra.mxu0 %v2520
        %2669 = vmatprep.subr.mxu0 %v2525
        %2670 = vmatpush1.msra.mxu0 %v2524
        %2671 = vmatprep.subr.mxu0 %v2529
        %2672 = vmatpush1.msra.mxu0 %v2528
        %2673 = vmatprep.subr.mxu0 %v2533
        %2674 = vmatpush1.msra.mxu0 %v2532
        %2675 = vmatprep.subr.mxu0 %v2537
        %2676 = vmatpush1.msra.mxu0 %v2536
        %2677 = vmatprep.subr.mxu0 %v2541
        %2678 = vmatpush1.msra.mxu0 %v2540
        %2679 = vmatprep.subr.mxu0 %v2545
        %2680 = vmatpush1.msra.mxu0 %v2544
        %2681 = vmatprep.subr.mxu0 %v2549
        %2682 = vmatpush1.msra.mxu0 %v2548
        %2683 = vmatprep.subr.mxu0 %v2553
        %2684 = vmatpush1.msra.mxu0 %v2552
        %2685 = vmatprep.subr.mxu0 %v2557
        %2686 = vmatpush1.msra.mxu0 %v2556
        %2687 = vmatprep.subr.mxu0 %v2561
        %2688 = vmatpush1.msra.mxu0 %v2560
        %2689 = vmatprep.subr.mxu0 %v2565
        %2690 = vmatpush1.msra.mxu0 %v2564
        %2691 = vmatprep.subr.mxu0 0.0
        %2692 = vmatpush1.msra.mxu0 0.0
        %2693 = vmatprep.subr.mxu0 0.0
        %2694 = vmatpush1.msra.mxu0 0.0
        %2695 = vmatprep.subr.mxu0 0.0
        %2696 = vmatpush1.msra.mxu0 0.0
        %2697 = vmatprep.subr.mxu0 0.0
        %2698 = vmatpush1.msra.mxu0 0.0
        %2699 = vmatprep.subr.mxu0 0.0
        %2700 = vmatpush1.msra.mxu0 0.0
        %2701 = vmatprep.subr.mxu0 0.0
        %2702 = vmatpush1.msra.mxu0 0.0
        %2703 = vmatprep.subr.mxu0 0.0
        %2704 = vmatpush1.msra.mxu0 0.0
        %2705 = vmatprep.subr.mxu0 0.0
        %2706 = vmatpush1.msra.mxu0 0.0
        %2707 = vmatprep.subr.mxu0 0.0
        %2708 = vmatpush1.msra.mxu0 0.0
        %2709 = vmatprep.subr.mxu0 0.0
        %2710 = vmatpush1.msra.mxu0 0.0
        %2711 = vmatprep.subr.mxu0 0.0
        %2712 = vmatpush1.msra.mxu0 0.0
        %2713 = vmatprep.subr.mxu0 0.0
        %2714 = vmatpush1.msra.mxu0 0.0
        %2715 = vmatprep.subr.mxu0 0.0
        %2716 = vmatpush1.msra.mxu0 0.0
        %2717 = vmatprep.subr.mxu0 0.0
        %2718 = vmatpush1.msra.mxu0 0.0
        %2719 = vmatprep.subr.mxu0 0.0
        %2720 = vmatpush1.msra.mxu0 0.0
        %2721 = vmatprep.subr.mxu0 0.0
        %2722 = vmatpush1.msra.mxu0 0.0
        %2723 = vmatprep.mubr.f32.mxu0 0.0
        %2724 = vmatmul.mubr.f32.gmra.mrb[0].mxu0 %v2501
        %v2725 = vpop.f32.mrb[0].mxu0
        %v2726 = vadd.f32 %v2579, %v2725
        %v2727 = vpop.f32.mrb[0].mxu0
        %v2728 = vadd.f32 %v2583, %v2727
        %2729 = vdwg.mxu0
        %v2730 = vmul.f32 %v2655, 0.5
        %v2731 = vmul.f32 %v2657, 0.5
        %v2732 = vmul.f32 %v2726, 0.5
        %v2733 = vmul.f32 %v2728, 0.5
        %v2734 = vmul.f32 %v2655, 0.70710677
        %v2735 = vmul.f32 %v2657, 0.70710677
        %v2736 = vmul.f32 %v2726, 0.70710677
        %v2737 = vmul.f32 %v2728, 0.70710677
        %v2738 = verf.f32.pop %v2734
        %v2739 = verf.f32.pop %v2735
        %v2740 = verf.f32.pop %v2736
        %v2741 = verf.f32.pop %v2737
        %v2742 = vadd.f32 %v2738, 1.0
        %v2743 = vadd.f32 %v2739, 1.0
        %v2744 = vadd.f32 %v2740, 1.0
        %v2745 = vadd.f32 %v2741, 1.0
        %v2746 = vmul.f32 %v2730, %v2742
        %v2747 = vmul.f32 %v2731, %v2743
        %v2748 = vmul.f32 %v2732, %v2744
        %v2749 = vmul.f32 %v2733, %v2745
        %v2750 = vld [vmem:[#allocation15] sm:$0xff]
        %v2751 = vld [vmem:[#allocation15 + $0x8] sm:$0xff]
        %v2752 = vld [vmem:[#allocation15 + $0x10] sm:$0xff]
        %v2753 = vld [vmem:[#allocation15 + $0x18] sm:$0xff]
        %v2754 = vld [vmem:[#allocation15 + $0x20] sm:$0xff]
        %v2755 = vld [vmem:[#allocation15 + $0x28] sm:$0xff]
        %v2756 = vld [vmem:[#allocation15 + $0x30] sm:$0xff]
        %v2757 = vld [vmem:[#allocation15 + $0x38] sm:$0xff]
        %v2758 = vld [vmem:[#allocation15 + $0x40] sm:$0xff]
        %v2759 = vld [vmem:[#allocation15 + $0x48] sm:$0xff]
        %v2760 = vld [vmem:[#allocation15 + $0x50] sm:$0xff]
        %v2761 = vld [vmem:[#allocation15 + $0x58] sm:$0xff]
        %v2762 = vld [vmem:[#allocation15 + $0x60] sm:$0xff]
        %v2763 = vld [vmem:[#allocation15 + $0x68] sm:$0xff]
        %v2764 = vld [vmem:[#allocation15 + $0x70] sm:$0xff]
        %v2765 = vld [vmem:[#allocation15 + $0x78] sm:$0xff]
        %v2766 = vld [vmem:[#allocation15 + $0x80] sm:$0xff]
        %v2767 = vld [vmem:[#allocation15 + $0x88] sm:$0xff]
        %v2768 = vld [vmem:[#allocation15 + $0x90] sm:$0xff]
        %v2769 = vld [vmem:[#allocation15 + $0x98] sm:$0xff]
        %v2770 = vld [vmem:[#allocation15 + $0xa0] sm:$0xff]
        %v2771 = vld [vmem:[#allocation15 + $0xa8] sm:$0xff]
        %v2772 = vld [vmem:[#allocation15 + $0xb0] sm:$0xff]
        %v2773 = vld [vmem:[#allocation15 + $0xb8] sm:$0xff]
        %v2774 = vld [vmem:[#allocation15 + $0xc0] sm:$0xff]
        %v2775 = vld [vmem:[#allocation15 + $0xc8] sm:$0xff]
        %v2776 = vld [vmem:[#allocation15 + $0xd0] sm:$0xff]
        %v2777 = vld [vmem:[#allocation15 + $0xd8] sm:$0xff]
        %v2778 = vld [vmem:[#allocation15 + $0xe0] sm:$0xff]
        %v2779 = vld [vmem:[#allocation15 + $0xe8] sm:$0xff]
        %v2780 = vld [vmem:[#allocation15 + $0xf0] sm:$0xff]
        %v2781 = vld [vmem:[#allocation15 + $0xf8] sm:$0xff]
        %v2782 = vld [vmem:[#allocation15 + $0x100] sm:$0xff]
        %v2783 = vld [vmem:[#allocation15 + $0x108] sm:$0xff]
        %v2784 = vld [vmem:[#allocation15 + $0x110] sm:$0xff]
        %v2785 = vld [vmem:[#allocation15 + $0x118] sm:$0xff]
        %v2786 = vld [vmem:[#allocation15 + $0x120] sm:$0xff]
        %v2787 = vld [vmem:[#allocation15 + $0x128] sm:$0xff]
        %v2788 = vld [vmem:[#allocation15 + $0x130] sm:$0xff]
        %v2789 = vld [vmem:[#allocation15 + $0x138] sm:$0xff]
        %v2790 = vld [vmem:[#allocation15 + $0x140] sm:$0xff]
        %v2791 = vld [vmem:[#allocation15 + $0x148] sm:$0xff]
        %v2792 = vld [vmem:[#allocation15 + $0x150] sm:$0xff]
        %v2793 = vld [vmem:[#allocation15 + $0x158] sm:$0xff]
        %v2794 = vld [vmem:[#allocation15 + $0x160] sm:$0xff]
        %v2795 = vld [vmem:[#allocation15 + $0x168] sm:$0xff]
        %v2796 = vld [vmem:[#allocation15 + $0x170] sm:$0xff]
        %v2797 = vld [vmem:[#allocation15 + $0x178] sm:$0xff]
        %v2798 = vld [vmem:[#allocation15 + $0x180] sm:$0xff]
        %v2799 = vld [vmem:[#allocation15 + $0x188] sm:$0xff]
        %v2800 = vld [vmem:[#allocation15 + $0x190] sm:$0xff]
        %v2801 = vld [vmem:[#allocation15 + $0x198] sm:$0xff]
        %v2802 = vld [vmem:[#allocation15 + $0x1a0] sm:$0xff]
        %v2803 = vld [vmem:[#allocation15 + $0x1a8] sm:$0xff]
        %v2804 = vld [vmem:[#allocation15 + $0x1b0] sm:$0xff]
        %v2805 = vld [vmem:[#allocation15 + $0x1b8] sm:$0xff]
        %v2806 = vld [vmem:[#allocation15 + $0x1c0] sm:$0xff]
        %v2807 = vld [vmem:[#allocation15 + $0x1c8] sm:$0xff]
        %v2808 = vld [vmem:[#allocation15 + $0x1d0] sm:$0xff]
        %v2809 = vld [vmem:[#allocation15 + $0x1d8] sm:$0xff]
        %v2810 = vld [vmem:[#allocation15 + $0x1e0] sm:$0xff]
        %v2811 = vld [vmem:[#allocation15 + $0x1e8] sm:$0xff]
        %v2812 = vld [vmem:[#allocation15 + $0x1f0] sm:$0xff]
        %v2813 = vld [vmem:[#allocation15 + $0x1f8] sm:$0xff]
        %v2814 = vld [vmem:[%s12] sm:$0x1]
        %v2816 = vlaneseq
        %v2817 = vshrl.u32 %v2816, 7
        %v2818 = vsub.s32 0, %v2817
        %v2819 = vrot.slane %v2814, %v2818
        %2821 = vmatprep.subr.mxu0 0.0
        %2822 = vmatpush1.msra.mxu0 %v2750
        %2823 = vmatprep.subr.mxu0 0.0
        %2824 = vmatpush1.msra.mxu0 %v2751
        %2825 = vmatprep.subr.mxu0 0.0
        %2826 = vmatpush1.msra.mxu0 %v2752
        %2827 = vmatprep.subr.mxu0 0.0
        %2828 = vmatpush1.msra.mxu0 %v2753
        %2829 = vmatprep.subr.mxu0 0.0
        %2830 = vmatpush1.msra.mxu0 %v2754
        %2831 = vmatprep.subr.mxu0 0.0
        %2832 = vmatpush1.msra.mxu0 %v2755
        %2833 = vmatprep.subr.mxu0 0.0
        %2834 = vmatpush1.msra.mxu0 %v2756
        %2835 = vmatprep.subr.mxu0 0.0
        %2836 = vmatpush1.msra.mxu0 %v2757
        %2837 = vmatprep.subr.mxu0 0.0
        %2838 = vmatpush1.msra.mxu0 %v2758
        %2839 = vmatprep.subr.mxu0 0.0
        %2840 = vmatpush1.msra.mxu0 %v2759
        %2841 = vmatprep.subr.mxu0 0.0
        %2842 = vmatpush1.msra.mxu0 %v2760
        %2843 = vmatprep.subr.mxu0 0.0
        %2844 = vmatpush1.msra.mxu0 %v2761
        %2845 = vmatprep.subr.mxu0 0.0
        %2846 = vmatpush1.msra.mxu0 %v2762
        %2847 = vmatprep.subr.mxu0 0.0
        %2848 = vmatpush1.msra.mxu0 %v2763
        %2849 = vmatprep.subr.mxu0 0.0
        %2850 = vmatpush1.msra.mxu0 %v2764
        %2851 = vmatprep.subr.mxu0 0.0
        %2852 = vmatpush1.msra.mxu0 %v2765
        %2853 = vmatprep.subr.mxu0 0.0
        %2854 = vmatpush1.msra.mxu0 %v2766
        %2855 = vmatprep.subr.mxu0 0.0
        %2856 = vmatpush1.msra.mxu0 %v2767
        %2857 = vmatprep.subr.mxu0 0.0
        %2858 = vmatpush1.msra.mxu0 %v2768
        %2859 = vmatprep.subr.mxu0 0.0
        %2860 = vmatpush1.msra.mxu0 %v2769
        %2861 = vmatprep.subr.mxu0 0.0
        %2862 = vmatpush1.msra.mxu0 %v2770
        %2863 = vmatprep.subr.mxu0 0.0
        %2864 = vmatpush1.msra.mxu0 %v2771
        %2865 = vmatprep.subr.mxu0 0.0
        %2866 = vmatpush1.msra.mxu0 %v2772
        %2867 = vmatprep.subr.mxu0 0.0
        %2868 = vmatpush1.msra.mxu0 %v2773
        %2869 = vmatprep.subr.mxu0 0.0
        %2870 = vmatpush1.msra.mxu0 %v2774
        %2871 = vmatprep.subr.mxu0 0.0
        %2872 = vmatpush1.msra.mxu0 %v2775
        %2873 = vmatprep.subr.mxu0 0.0
        %2874 = vmatpush1.msra.mxu0 %v2776
        %2875 = vmatprep.subr.mxu0 0.0
        %2876 = vmatpush1.msra.mxu0 %v2777
        %2877 = vmatprep.subr.mxu0 0.0
        %2878 = vmatpush1.msra.mxu0 %v2778
        %2879 = vmatprep.subr.mxu0 0.0
        %2880 = vmatpush1.msra.mxu0 %v2779
        %2881 = vmatprep.subr.mxu0 0.0
        %2882 = vmatpush1.msra.mxu0 %v2780
        %2883 = vmatprep.subr.mxu0 0.0
        %2884 = vmatpush1.msra.mxu0 %v2781
        %2885 = vmatprep.mubr.f32.mxu0 %v2747
        %2886 = vmatmul.mubr.f32.gmra.mrb[0].mxu0 %v2746
        %v2887 = vpop.f32.mrb[0].mxu0
        %v2888 = vadd.f32 %v2819, %v2887
        %v2889 = vpop.f32.mrb[0].mxu0
        %2890 = vdwg.mxu0
        %2891 = vmatprep.subr.mxu0 0.0
        %2892 = vmatpush1.msra.mxu0 %v2782
        %2893 = vmatprep.subr.mxu0 0.0
        %2894 = vmatpush1.msra.mxu0 %v2783
        %2895 = vmatprep.subr.mxu0 0.0
        %2896 = vmatpush1.msra.mxu0 %v2784
        %2897 = vmatprep.subr.mxu0 0.0
        %2898 = vmatpush1.msra.mxu0 %v2785
        %2899 = vmatprep.subr.mxu0 0.0
        %2900 = vmatpush1.msra.mxu0 %v2786
        %2901 = vmatprep.subr.mxu0 0.0
        %2902 = vmatpush1.msra.mxu0 %v2787
        %2903 = vmatprep.subr.mxu0 0.0
        %2904 = vmatpush1.msra.mxu0 %v2788
        %2905 = vmatprep.subr.mxu0 0.0
        %2906 = vmatpush1.msra.mxu0 %v2789
        %2907 = vmatprep.subr.mxu0 0.0
        %2908 = vmatpush1.msra.mxu0 %v2790
        %2909 = vmatprep.subr.mxu0 0.0
        %2910 = vmatpush1.msra.mxu0 %v2791
        %2911 = vmatprep.subr.mxu0 0.0
        %2912 = vmatpush1.msra.mxu0 %v2792
        %2913 = vmatprep.subr.mxu0 0.0
        %2914 = vmatpush1.msra.mxu0 %v2793
        %2915 = vmatprep.subr.mxu0 0.0
        %2916 = vmatpush1.msra.mxu0 %v2794
        %2917 = vmatprep.subr.mxu0 0.0
        %2918 = vmatpush1.msra.mxu0 %v2795
        %2919 = vmatprep.subr.mxu0 0.0
        %2920 = vmatpush1.msra.mxu0 %v2796
        %2921 = vmatprep.subr.mxu0 0.0
        %2922 = vmatpush1.msra.mxu0 %v2797
        %2923 = vmatprep.subr.mxu0 0.0
        %2924 = vmatpush1.msra.mxu0 %v2798
        %2925 = vmatprep.subr.mxu0 0.0
        %2926 = vmatpush1.msra.mxu0 %v2799
        %2927 = vmatprep.subr.mxu0 0.0
        %2928 = vmatpush1.msra.mxu0 %v2800
        %2929 = vmatprep.subr.mxu0 0.0
        %2930 = vmatpush1.msra.mxu0 %v2801
        %2931 = vmatprep.subr.mxu0 0.0
        %2932 = vmatpush1.msra.mxu0 %v2802
        %2933 = vmatprep.subr.mxu0 0.0
        %2934 = vmatpush1.msra.mxu0 %v2803
        %2935 = vmatprep.subr.mxu0 0.0
        %2936 = vmatpush1.msra.mxu0 %v2804
        %2937 = vmatprep.subr.mxu0 0.0
        %2938 = vmatpush1.msra.mxu0 %v2805
        %2939 = vmatprep.subr.mxu0 0.0
        %2940 = vmatpush1.msra.mxu0 %v2806
        %2941 = vmatprep.subr.mxu0 0.0
        %2942 = vmatpush1.msra.mxu0 %v2807
        %2943 = vmatprep.subr.mxu0 0.0
        %2944 = vmatpush1.msra.mxu0 %v2808
        %2945 = vmatprep.subr.mxu0 0.0
        %2946 = vmatpush1.msra.mxu0 %v2809
        %2947 = vmatprep.subr.mxu0 0.0
        %2948 = vmatpush1.msra.mxu0 %v2810
        %2949 = vmatprep.subr.mxu0 0.0
        %2950 = vmatpush1.msra.mxu0 %v2811
        %2951 = vmatprep.subr.mxu0 0.0
        %2952 = vmatpush1.msra.mxu0 %v2812
        %2953 = vmatprep.subr.mxu0 0.0
        %2954 = vmatpush1.msra.mxu0 %v2813
        %2955 = vmatprep.mubr.f32.mxu0 %v2749
        %2956 = vmatmul.mubr.f32.gmra.mrb[0].mxu0 %v2748
        %v2957 = vpop.f32.mrb[0].mxu0
        %v2958 = vadd.f32 %v2888, %v2957
        %v2959 = vpop.f32.mrb[0].mxu0
        %2960 = vdwg.mxu0
        %v2961 = vadd.f32 %v2474, %v2958
        %2962 = vst [vmem:[%s545] sm:$0xff] %v2961
        %s2963 = sand.u32 %s333, 1
        %s2964 = scalar_lea.sflag [#allocation8], %s2963
        %s2965 = sand.u32 %s333, 1
        %s2966 = smul.addr %s2965, 8
        %s2967 = scalar_lea.vmem [#allocation17], %s2966
        // Predicated region
        $region101: #{tpu_custom_call.1} parent=71 // pred_check
          %p2968 = pneg %p343
        $region102: #{tpu_custom_call.1} parent=71 // pred_check_branch
          %2970 = sbr.rel (%p2968) target = $region104
        $region103: #{tpu_custom_call.1} parent=71 // pred_region
          %s2972 = ssub.s32 128, 128
          %2973 = vsyncadd %s2964, %s2972
          %s2974 = smul.addr %s37, 2
          %s2975 = sadd.s32 %s38, %s2974
          %s2976 = smul.addr %s2975, 128
          %s2977 = scalar_lea.hbm %s13, %s2976
          %s2979 = sshll.u32 %s2967, 4
          %s2980 = int_to_ptr.vmem [resolvable:$true] %s2979
          %2982 = dma.vmem_to_hbm [thread:$0]  %s2980, 128, %s2977, %s2964
        $region104: #{tpu_custom_call.1} parent=71 // pred_fallthru
          _
      $region72: #{tpu_custom_call.1} parent=5 // pred_fallthru
        _
      %p2983 = scmp.le.s32.totalorder 2, %s28
      // Predicated region
      $region105: #{tpu_custom_call.1} parent=5 // pred_check
        %p2984 = pneg %p2983
      $region106: #{tpu_custom_call.1} parent=5 // pred_check_branch
        %2986 = sbr.rel (%p2984) target = $region108
      $region107: #{tpu_custom_call.1} parent=5 // pred_region
        %s2987 = ssub.s32 %s28, 2
        // Predicated region
        $region109: #{tpu_custom_call.1} parent=107 // pred_check
          %p2988 = pneg %p349
        $region110: #{tpu_custom_call.1} parent=107 // pred_check_branch
          %2990 = sbr.rel (%p2988) target = $region112
        $region111: #{tpu_custom_call.1} parent=107 // pred_region
          %s2991 = sand.u32 %s334, 1
          %s2992 = scalar_lea.sflag [#allocation8], %s2991
          %s2993 = sand.u32 %s334, 1
          %s2994 = smul.addr %s2993, 8
          %s2995 = scalar_lea.vmem [#allocation17], %s2994
          %2996 = dma.done %s2992, 128
        $region112: #{tpu_custom_call.1} parent=107 // pred_fallthru
          _
      $region108: #{tpu_custom_call.1} parent=5 // pred_fallthru
        _
    $region6: #{tpu_custom_call.1} parent=1 // loop_footer
      %s32 = sadd.s32 1, %s28
    $region7: #{tpu_custom_call.1} parent=1 // loop_footer_branch
      %27 = sbr.rel target = $region3
    $region8: #{tpu_custom_call.1} parent=1 // loop_exit
      _
    %2997 = vsyncpa [#allocation7], 1
    %s2998 = scalar_lea.sflag [#allocation7], 1
    %2999 = vsyncpa %s2998, 1
    %3000 = vsyncpa [#allocation10], 1
    %3001 = vsyncpa [#allocation13], 1
    %3002 = vsyncpa [#allocation16], 1
    %3003 = vsyncpa [#allocation8], 1
    %s3004 = scalar_lea.sflag [#allocation8], 1
    %3005 = vsyncpa %s3004, 1

</llo_original>
